<compile_context>
chip_gen: v7x
topology: tpu7x:2x2x1
jax: 0.10.0
libtpu: 0.0.40
codegen_flags: <defaults>
</compile_context>

<pallas_src>
import jax
import jax.numpy as jnp
from jax import lax
from jax.experimental import pallas as pl
from jax.experimental.pallas import tpu as pltpu

# ---------------- problem sizes (small but TPU-aligned) ----------------
B = 256   # batch
S = 8     # sequence length
V = 512   # vocab size            (128-multiple -> lane-dense counts tile)
D = 128   # embedding dim         (128-multiple)
H = 128   # MLP hidden dim        (128-multiple)
O = 128   # MLP output dim        (128-multiple -> unmasked output store)
TB = 128  # batch rows per grid step (>=128 so the MXU sees a full M tile)


def stacked_kernel(ids_ref, emb_ref, w1_ref, b1_ref, w2_ref, b2_ref, out_ref):
    ids = ids_ref[...]                                        # [TB, S] int32

    # ---- embedding lookup fused with mean pooling, executed on the MXU ----
    # counts[b, v] = (# occurrences of token v in row b) / S
    # pooled[b, :] = counts @ emb  ==  mean_s emb[ids[b, s]]
    vocab_iota = lax.broadcasted_iota(jnp.int32, (TB, V), 1)  # [TB, V]
    counts = jnp.zeros((TB, V), jnp.int32)
    for s in range(S):  # static unroll; S is tiny, live set stays one [TB,V] tile
        counts = counts + (ids[:, s:s + 1] == vocab_iota).astype(jnp.int32)
    # k/S with k<=S=8 is exact in bf16, so the bf16 cast loses nothing.
    counts_bf = (counts.astype(jnp.float32) * (1.0 / S)).astype(jnp.bfloat16)

    pooled = jnp.dot(counts_bf, emb_ref[...],
                     preferred_element_type=jnp.float32)      # [TB, D] f32

    # ---- MLP: Linear -> ReLU -> Linear (bf16 MXU inputs, f32 accumulate) ----
    h = jnp.dot(pooled.astype(jnp.bfloat16), w1_ref[...],
                preferred_element_type=jnp.float32) + b1_ref[...]
    h = jnp.maximum(h, 0.0)                                   # [TB, H] f32
    out = jnp.dot(h.astype(jnp.bfloat16), w2_ref[...],
                  preferred_element_type=jnp.float32) + b2_ref[...]
    out_ref[...] = out                                        # [TB, O] f32


def stacked_forward(ids, emb, w1, b1, w2, b2):
    grid = (B // TB,)

    # Weights / table: constant block index -> resident across the batch grid.
    resident = lambda shp: pl.BlockSpec(shp, lambda i: (0,) * len(shp))

    flops = 2 * B * (V * D + D * H + H * O)
    bytes_accessed = (ids.size * 4 + emb.size * 2 + w1.size * 2 + b1.size * 4
                      + w2.size * 2 + b2.size * 4 + B * O * 4)

    return pl.pallas_call(
        stacked_kernel,
        out_shape=jax.ShapeDtypeStruct((B, O), jnp.float32),
        grid_spec=pltpu.PrefetchScalarGridSpec(
            num_scalar_prefetch=0,
            grid=grid,
            in_specs=[
                pl.BlockSpec((TB, S), lambda i: (i, 0)),   # ids: batch-tiled
                resident((V, D)),                          # embedding table
                resident((D, H)),                          # W1
                resident((1, H)),                          # b1
                resident((H, O)),                          # W2
                resident((1, O)),                          # b2
            ],
            out_specs=pl.BlockSpec((TB, O), lambda i: (i, 0)),
        ),
        compiler_params=pltpu.CompilerParams(
            # batch axis is independent -> megacore-shardable on v7x
            dimension_semantics=("parallel",),
            # small footprint (<2 MiB live); 32 MiB fits every generation,
            # including v7x's 64 MiB physical VMEM.
            vmem_limit_bytes=32 * 1024 * 1024,
        ),
        cost_estimate=pl.CostEstimate(
            flops=flops, transcendentals=0, bytes_accessed=bytes_accessed),
    )(ids, emb, w1, b1, w2, b2)


def reference_forward(ids, emb, w1, b1, w2, b2):
    emb32 = emb.astype(jnp.float32)
    w132 = w1.astype(jnp.float32)
    w232 = w2.astype(jnp.float32)
    gathered = emb32[ids]                        # [B, S, D]
    pooled = jnp.mean(gathered, axis=1)          # [B, D]
    h = jnp.maximum(pooled @ w132 + b1, 0.0)     # [B, H]
    return h @ w232 + b2                         # [B, O]


if __name__ == "__main__":
    key = jax.random.PRNGKey(0)
    k_ids, k_emb, k_w1, k_b1, k_w2, k_b2 = jax.random.split(key, 6)

    ids = jax.random.randint(k_ids, (B, S), 0, V, dtype=jnp.int32)
    emb = (jax.random.normal(k_emb, (V, D), jnp.float32) * 0.1).astype(jnp.bfloat16)
    w1 = (jax.random.normal(k_w1, (D, H), jnp.float32) * 0.1).astype(jnp.bfloat16)
    b1 = jax.random.normal(k_b1, (1, H), jnp.float32) * 0.1
    w2 = (jax.random.normal(k_w2, (H, O), jnp.float32) * 0.1).astype(jnp.bfloat16)
    b2 = jax.random.normal(k_b2, (1, O), jnp.float32) * 0.1

    out = jax.block_until_ready(stacked_forward(ids, emb, w1, b1, w2, b2))
    ref = reference_forward(ids, emb, w1, b1, w2, b2)

    assert out.shape == (B, O)
    max_err = jnp.max(jnp.abs(out - ref))
    assert jnp.allclose(out, ref, atol=2e-2, rtol=2e-2), (
        f"mismatch vs reference (max abs err {max_err})")
    print("KERNEL_OK")
</pallas_src>

<mosaic_0001>
module attributes {stable_mosaic.version = 11 : i64} {
  func.func @stacked_kernel(%arg0: i32, %arg1: memref<128x8xi32, #tpu.memory_space<vmem>>, %arg2: memref<512x128xbf16, #tpu.memory_space<vmem>>, %arg3: memref<128x128xbf16, #tpu.memory_space<vmem>>, %arg4: memref<1x128xf32, #tpu.memory_space<vmem>>, %arg5: memref<128x128xbf16, #tpu.memory_space<vmem>>, %arg6: memref<1x128xf32, #tpu.memory_space<vmem>>, %arg7: memref<128x128xf32, #tpu.memory_space<vmem>>) attributes {dimension_semantics = [#tpu.dimension_semantics<parallel>], iteration_bounds = array<i64: 2>, scalar_prefetch = 0 : i64, scratch_operands = 0 : i64, tpu.core_type = #tpu.core_type<tc>, window_params = [{transform_indices = @transform_0, window_bounds = array<i64: 128, 8>}, {pipeline_mode = #tpu.pipeline_mode<synchronous>, transform_indices = @transform_1, window_bounds = array<i64: 512, 128>}, {pipeline_mode = #tpu.pipeline_mode<synchronous>, transform_indices = @transform_2, window_bounds = array<i64: 128, 128>}, {pipeline_mode = #tpu.pipeline_mode<synchronous>, transform_indices = @transform_3, window_bounds = array<i64: 1, 128>}, {pipeline_mode = #tpu.pipeline_mode<synchronous>, transform_indices = @transform_4, window_bounds = array<i64: 128, 128>}, {pipeline_mode = #tpu.pipeline_mode<synchronous>, transform_indices = @transform_5, window_bounds = array<i64: 1, 128>}, {transform_indices = @transform_6, window_bounds = array<i64: 128, 128>}]} {
    %c0 = arith.constant 0 : index
    %c0_0 = arith.constant 0 : index
    %0 = vector.load %arg1[%c0, %c0_0] : memref<128x8xi32, #tpu.memory_space<vmem>>, vector<128x8xi32>
    %1 = tpu.iota {dimensions = array<i32: 1>} : vector<128x512xi32>
    %c0_i32 = arith.constant 0 : i32
    %2 = vector.broadcast %c0_i32 : i32 to vector<128x512xi32>
    %3 = vector.extract_strided_slice %0 {offsets = [0, 0], sizes = [128, 1], strides = [1, 1]} : vector<128x8xi32> to vector<128x1xi32>
    %4 = vector.broadcast %3 : vector<128x1xi32> to vector<128x512xi32>
    %5 = arith.cmpi eq, %4, %1 : vector<128x512xi32>
    %6 = arith.extui %5 : vector<128x512xi1> to vector<128x512xi32>
    %7 = arith.addi %2, %6 : vector<128x512xi32>
    %8 = vector.extract_strided_slice %0 {offsets = [0, 1], sizes = [128, 1], strides = [1, 1]} : vector<128x8xi32> to vector<128x1xi32>
    %9 = vector.broadcast %8 : vector<128x1xi32> to vector<128x512xi32>
    %10 = arith.cmpi eq, %9, %1 : vector<128x512xi32>
    %11 = arith.extui %10 : vector<128x512xi1> to vector<128x512xi32>
    %12 = arith.addi %7, %11 : vector<128x512xi32>
    %13 = vector.extract_strided_slice %0 {offsets = [0, 2], sizes = [128, 1], strides = [1, 1]} : vector<128x8xi32> to vector<128x1xi32>
    %14 = vector.broadcast %13 : vector<128x1xi32> to vector<128x512xi32>
    %15 = arith.cmpi eq, %14, %1 : vector<128x512xi32>
    %16 = arith.extui %15 : vector<128x512xi1> to vector<128x512xi32>
    %17 = arith.addi %12, %16 : vector<128x512xi32>
    %18 = vector.extract_strided_slice %0 {offsets = [0, 3], sizes = [128, 1], strides = [1, 1]} : vector<128x8xi32> to vector<128x1xi32>
    %19 = vector.broadcast %18 : vector<128x1xi32> to vector<128x512xi32>
    %20 = arith.cmpi eq, %19, %1 : vector<128x512xi32>
    %21 = arith.extui %20 : vector<128x512xi1> to vector<128x512xi32>
    %22 = arith.addi %17, %21 : vector<128x512xi32>
    %23 = vector.extract_strided_slice %0 {offsets = [0, 4], sizes = [128, 1], strides = [1, 1]} : vector<128x8xi32> to vector<128x1xi32>
    %24 = vector.broadcast %23 : vector<128x1xi32> to vector<128x512xi32>
    %25 = arith.cmpi eq, %24, %1 : vector<128x512xi32>
    %26 = arith.extui %25 : vector<128x512xi1> to vector<128x512xi32>
    %27 = arith.addi %22, %26 : vector<128x512xi32>
    %28 = vector.extract_strided_slice %0 {offsets = [0, 5], sizes = [128, 1], strides = [1, 1]} : vector<128x8xi32> to vector<128x1xi32>
    %29 = vector.broadcast %28 : vector<128x1xi32> to vector<128x512xi32>
    %30 = arith.cmpi eq, %29, %1 : vector<128x512xi32>
    %31 = arith.extui %30 : vector<128x512xi1> to vector<128x512xi32>
    %32 = arith.addi %27, %31 : vector<128x512xi32>
    %33 = vector.extract_strided_slice %0 {offsets = [0, 6], sizes = [128, 1], strides = [1, 1]} : vector<128x8xi32> to vector<128x1xi32>
    %34 = vector.broadcast %33 : vector<128x1xi32> to vector<128x512xi32>
    %35 = arith.cmpi eq, %34, %1 : vector<128x512xi32>
    %36 = arith.extui %35 : vector<128x512xi1> to vector<128x512xi32>
    %37 = arith.addi %32, %36 : vector<128x512xi32>
    %38 = vector.extract_strided_slice %0 {offsets = [0, 7], sizes = [128, 1], strides = [1, 1]} : vector<128x8xi32> to vector<128x1xi32>
    %39 = vector.broadcast %38 : vector<128x1xi32> to vector<128x512xi32>
    %40 = arith.cmpi eq, %39, %1 : vector<128x512xi32>
    %41 = arith.extui %40 : vector<128x512xi1> to vector<128x512xi32>
    %42 = arith.addi %37, %41 : vector<128x512xi32>
    %43 = arith.sitofp %42 : vector<128x512xi32> to vector<128x512xf32>
    %cst = arith.constant 1.250000e-01 : f32
    %44 = vector.broadcast %cst : f32 to vector<128x512xf32>
    %45 = arith.mulf %43, %44 : vector<128x512xf32>
    %46 = arith.truncf %45 : vector<128x512xf32> to vector<128x512xbf16>
    %c0_1 = arith.constant 0 : index
    %c0_2 = arith.constant 0 : index
    %47 = vector.load %arg2[%c0_1, %c0_2] : memref<512x128xbf16, #tpu.memory_space<vmem>>, vector<512x128xbf16>
    %cst_3 = arith.constant dense<0.000000e+00> : vector<128x128xf32>
    %48 = tpu.matmul %46, %47, %cst_3 {dimension_numbers = #tpu.dot_dimension_numbers<[1], [0], [0], [1], [0, 0, 1, 1], [], []>} : vector<128x512xbf16>, vector<512x128xbf16>, vector<128x128xf32> -> vector<128x128xf32>
    %49 = arith.truncf %48 : vector<128x128xf32> to vector<128x128xbf16>
    %c0_4 = arith.constant 0 : index
    %c0_5 = arith.constant 0 : index
    %50 = vector.load %arg3[%c0_4, %c0_5] : memref<128x128xbf16, #tpu.memory_space<vmem>>, vector<128x128xbf16>
    %cst_6 = arith.constant dense<0.000000e+00> : vector<128x128xf32>
    %51 = tpu.matmul %49, %50, %cst_6 {dimension_numbers = #tpu.dot_dimension_numbers<[1], [0], [0], [1], [0, 0, 1, 1], [], []>} : vector<128x128xbf16>, vector<128x128xbf16>, vector<128x128xf32> -> vector<128x128xf32>
    %c0_7 = arith.constant 0 : index
    %c0_8 = arith.constant 0 : index
    %52 = vector.load %arg4[%c0_7, %c0_8] : memref<1x128xf32, #tpu.memory_space<vmem>>, vector<1x128xf32>
    %53 = vector.broadcast %52 : vector<1x128xf32> to vector<128x128xf32>
    %54 = arith.addf %51, %53 : vector<128x128xf32>
    %cst_9 = arith.constant 0.000000e+00 : f32
    %55 = vector.broadcast %cst_9 : f32 to vector<128x128xf32>
    %56 = arith.maximumf %54, %55 : vector<128x128xf32>
    %57 = arith.truncf %56 : vector<128x128xf32> to vector<128x128xbf16>
    %c0_10 = arith.constant 0 : index
    %c0_11 = arith.constant 0 : index
    %58 = vector.load %arg5[%c0_10, %c0_11] : memref<128x128xbf16, #tpu.memory_space<vmem>>, vector<128x128xbf16>
    %cst_12 = arith.constant dense<0.000000e+00> : vector<128x128xf32>
    %59 = tpu.matmul %57, %58, %cst_12 {dimension_numbers = #tpu.dot_dimension_numbers<[1], [0], [0], [1], [0, 0, 1, 1], [], []>} : vector<128x128xbf16>, vector<128x128xbf16>, vector<128x128xf32> -> vector<128x128xf32>
    %c0_13 = arith.constant 0 : index
    %c0_14 = arith.constant 0 : index
    %60 = vector.load %arg6[%c0_13, %c0_14] : memref<1x128xf32, #tpu.memory_space<vmem>>, vector<1x128xf32>
    %61 = vector.broadcast %60 : vector<1x128xf32> to vector<128x128xf32>
    %62 = arith.addf %59, %61 : vector<128x128xf32>
    %c0_15 = arith.constant 0 : index
    %c0_16 = arith.constant 0 : index
    %63 = vector.load %arg7[%c0_15, %c0_16] : memref<128x128xf32, #tpu.memory_space<vmem>>, vector<128x128xf32>
    tpu.vector_store %arg7[%c0_15, %c0_16], %62 {strides = array<i32>} : memref<128x128xf32, #tpu.memory_space<vmem>>, vector<128x128xf32>,
    return
  }
  func.func @transform_0(%arg0: i32) -> (i32, i32) {
    %c0_i32 = arith.constant 0 : i32
    %c0_i32_0 = arith.constant 0 : i32
    return %arg0, %c0_i32 : i32, i32
  }
  func.func @transform_1(%arg0: i32) -> (i32, i32) {
    %c0_i32 = arith.constant 0 : i32
    %c0_i32_0 = arith.constant 0 : i32
    %c0_i32_1 = arith.constant 0 : i32
    return %c0_i32, %c0_i32_0 : i32, i32
  }
  func.func @transform_2(%arg0: i32) -> (i32, i32) {
    %c0_i32 = arith.constant 0 : i32
    %c0_i32_0 = arith.constant 0 : i32
    %c0_i32_1 = arith.constant 0 : i32
    return %c0_i32, %c0_i32_0 : i32, i32
  }
  func.func @transform_3(%arg0: i32) -> (i32, i32) {
    %c0_i32 = arith.constant 0 : i32
    %c0_i32_0 = arith.constant 0 : i32
    %c0_i32_1 = arith.constant 0 : i32
    return %c0_i32, %c0_i32_0 : i32, i32
  }
  func.func @transform_4(%arg0: i32) -> (i32, i32) {
    %c0_i32 = arith.constant 0 : i32
    %c0_i32_0 = arith.constant 0 : i32
    %c0_i32_1 = arith.constant 0 : i32
    return %c0_i32, %c0_i32_0 : i32, i32
  }
  func.func @transform_5(%arg0: i32) -> (i32, i32) {
    %c0_i32 = arith.constant 0 : i32
    %c0_i32_0 = arith.constant 0 : i32
    %c0_i32_1 = arith.constant 0 : i32
    return %c0_i32, %c0_i32_0 : i32, i32
  }
  func.func @transform_6(%arg0: i32) -> (i32, i32) {
    %c0_i32 = arith.constant 0 : i32
    %c0_i32_0 = arith.constant 0 : i32
    return %arg0, %c0_i32 : i32, i32
  }
}

</mosaic_0001>

<llo_original>
// kernel: tpu_custom_call.1
$region0: #{tpu_custom_call.1}
  #allocation0 [shape = 'u32[]', space=smem, size = 0x4, offset = 0x4, fixed_abs, tag = 'smem constant byte address 0x4 - core index']
  #allocation1 [shape = 'u32[144,128]{1,0:T(1,128)}', space=vmem, size = 0x12000, scoped, tag = 'internal scratch']
  %s0 = inlined_call_operand.vmem [shape: s32[256,8], index: 0, kind: input, shape index: {}]
  %s1 = inlined_call_operand.vmem [shape: bf16[512,128], index: 1, kind: input, shape index: {}]
  %s2 = inlined_call_operand.hbm [shape: bf16[128,128], index: 2, kind: input, shape index: {}]
  %s3 = inlined_call_operand.vmem [shape: f32[1,128], index: 3, kind: input, shape index: {}]
  %s4 = inlined_call_operand.hbm [shape: bf16[128,128], index: 4, kind: input, shape index: {}]
  %s5 = inlined_call_operand.vmem [shape: f32[1,128], index: 5, kind: input, shape index: {}]
  %s6 = inlined_call_operand.hbm [shape: f32[256,128], index: 6, kind: output, shape index: {}]
  %s7 = sld [smem:[#allocation0]]
  $region65: #{tpu_custom_call.1} parent=0
    _
  %s9 = ssub.s32 1, %s7
  %s10 = scalar_select 0, %s9, %s7
  $region1: #{tpu_custom_call.1} parent=0
    #allocation2 [shape = 'u8[32768]{0}', space=vmem, size = 0x8000, scoped, tag = 'input window, operand 2, single buffered']
    #allocation3 [shape = 's32[2]{0}', space=sflag, size = 0x8, scoped, tag = 'scoped memory for tpu_custom_call.1']
    #allocation4 [shape = 's32[2]{0}', space=sflag, size = 0x8, scoped, tag = 'scoped memory for tpu_custom_call.1']
    #allocation5 [shape = 'u8[32768]{0}', space=vmem, size = 0x8000, scoped, tag = 'input window, operand 4, single buffered']
    #allocation6 [shape = 's32[1]{0}', space=sflag, size = 0x4, scoped, tag = 'scoped memory for tpu_custom_call.1']
    #allocation7 [shape = 'u8[131072]{0}', space=vmem, size = 0x20000, scoped, tag = 'output window, operand 0']
    %11 = vsyncpa [#allocation3], 0
    %12 = vsyncpa [#allocation6], 0
    %13 = vsyncpa [#allocation4], 0
    %s14 = scalar_lea.sflag [#allocation4], 1
    %15 = vsyncpa %s14, 0
    loop: start=0, step=1, limit=4
    $region2: #{tpu_custom_call.1} parent=1 // loop_pre_header
      _
    $region3: #{tpu_custom_call.1} parent=1 // loop_header
      %s17 = sphi 0, %s21
      %p18 = scmp.ge.s32.totalorder %s17, 4
      %s27 = sphi 0, %s29
      %s30 = sphi 0, %s27
      %s31 = sphi 0, %s30
      %s47 = sphi 0, %s31
      %s51 = sphi 0, %s51
      %s53 = sphi 0, %s51
      %s54 = sphi 0, %s53
      %s68 = sphi 0, %s54
      %s72 = sphi 0, %s72
      %s74 = sphi 0, %s72
      %s75 = sphi 0, %s74
      %s89 = sphi 0, %s75
      %s93 = sphi 0, %s93
      %s95 = sphi 0, %s93
      %s96 = sphi 0, %s95
      %s110 = sphi 0, %s96
      %s114 = sphi 0, %s114
      %s116 = sphi 0, %s114
      %s117 = sphi 0, %s116
      %s131 = sphi 0, %s117
      %s135 = sphi 0, %s135
      %s137 = sphi 0, %s135
      %s138 = sphi 0, %s137
      %s152 = sphi 0, %s138
      %s158 = sphi 0, %s160
      %s161 = sphi 0, %s158
      %s162 = sphi 0, %s161
      %s178 = sphi 0, %s162
    $region4: #{tpu_custom_call.1} parent=1 // loop_header_branch
      %20 = sbr.rel (%p18) target = $region8
    $region5: #{tpu_custom_call.1} parent=1 // loop_body
      %s22 = ssub.s32 %s17, 1
      %s23 = ssub.s32 %s17, 2
      %s24 = sadd.s32 %s17, 1
      %s25 = ssub.s32 %s17, %s24
      %p26 = scmp.eq.s32.totalorder %s25, 0
      %s28 = sadd.s32 %s27, 1
      %s29 = scalar_select %p26, %s27, %s28
      %p32 = pneg %p26
      %p33 = scmp.eq.s32.totalorder %s17, 1
      %p34 = por %p32, %p33
      %p35 = scmp.ne.s32.totalorder %s27, %s30
      %p36 = scmp.eq.s32.totalorder %s17, 0
      %p37 = por %p35, %p36
      %p38 = scmp.ne.s32.totalorder %s27, %s30
      %p39 = scmp.eq.s32.totalorder %s22, 1
      %p40 = por %p38, %p39
      %p41 = scmp.ne.s32.totalorder %s30, %s31
      %p42 = scmp.eq.s32.totalorder %s22, 0
      %p43 = por %p41, %p42
      %p44 = scmp.ne.s32.totalorder %s30, %s31
      %p45 = scmp.eq.s32.totalorder %s23, 1
      %p46 = por %p44, %p45
      %p48 = scmp.ne.s32.totalorder %s31, %s47
      %p49 = scmp.eq.s32.totalorder %s23, 0
      %p50 = por %p48, %p49
      %s52 = sadd.s32 %s51, 1
      %p55 = scmp.eq.s32.totalorder %s17, 1
      %p56 = scmp.ne.s32.totalorder %s51, %s53
      %p57 = scmp.eq.s32.totalorder %s17, 0
      %p58 = por %p56, %p57
      %p59 = scmp.ne.s32.totalorder %s51, %s53
      %p60 = scmp.eq.s32.totalorder %s22, 1
      %p61 = por %p59, %p60
      %p62 = scmp.ne.s32.totalorder %s53, %s54
      %p63 = scmp.eq.s32.totalorder %s22, 0
      %p64 = por %p62, %p63
      %p65 = scmp.ne.s32.totalorder %s53, %s54
      %p66 = scmp.eq.s32.totalorder %s23, 1
      %p67 = por %p65, %p66
      %p69 = scmp.ne.s32.totalorder %s54, %s68
      %p70 = scmp.eq.s32.totalorder %s23, 0
      %p71 = por %p69, %p70
      %s73 = sadd.s32 %s72, 1
      %p76 = scmp.eq.s32.totalorder %s17, 1
      %p77 = scmp.ne.s32.totalorder %s72, %s74
      %p78 = scmp.eq.s32.totalorder %s17, 0
      %p79 = por %p77, %p78
      %p80 = scmp.ne.s32.totalorder %s72, %s74
      %p81 = scmp.eq.s32.totalorder %s22, 1
      %p82 = por %p80, %p81
      %p83 = scmp.ne.s32.totalorder %s74, %s75
      %p84 = scmp.eq.s32.totalorder %s22, 0
      %p85 = por %p83, %p84
      %p86 = scmp.ne.s32.totalorder %s74, %s75
      %p87 = scmp.eq.s32.totalorder %s23, 1
      %p88 = por %p86, %p87
      %p90 = scmp.ne.s32.totalorder %s75, %s89
      %p91 = scmp.eq.s32.totalorder %s23, 0
      %p92 = por %p90, %p91
      %s94 = sadd.s32 %s93, 1
      %p97 = scmp.eq.s32.totalorder %s17, 1
      %p98 = scmp.ne.s32.totalorder %s93, %s95
      %p99 = scmp.eq.s32.totalorder %s17, 0
      %p100 = por %p98, %p99
      %p101 = scmp.ne.s32.totalorder %s93, %s95
      %p102 = scmp.eq.s32.totalorder %s22, 1
      %p103 = por %p101, %p102
      %p104 = scmp.ne.s32.totalorder %s95, %s96
      %p105 = scmp.eq.s32.totalorder %s22, 0
      %p106 = por %p104, %p105
      %p107 = scmp.ne.s32.totalorder %s95, %s96
      %p108 = scmp.eq.s32.totalorder %s23, 1
      %p109 = por %p107, %p108
      %p111 = scmp.ne.s32.totalorder %s96, %s110
      %p112 = scmp.eq.s32.totalorder %s23, 0
      %p113 = por %p111, %p112
      %s115 = sadd.s32 %s114, 1
      %p118 = scmp.eq.s32.totalorder %s17, 1
      %p119 = scmp.ne.s32.totalorder %s114, %s116
      %p120 = scmp.eq.s32.totalorder %s17, 0
      %p121 = por %p119, %p120
      %p122 = scmp.ne.s32.totalorder %s114, %s116
      %p123 = scmp.eq.s32.totalorder %s22, 1
      %p124 = por %p122, %p123
      %p125 = scmp.ne.s32.totalorder %s116, %s117
      %p126 = scmp.eq.s32.totalorder %s22, 0
      %p127 = por %p125, %p126
      %p128 = scmp.ne.s32.totalorder %s116, %s117
      %p129 = scmp.eq.s32.totalorder %s23, 1
      %p130 = por %p128, %p129
      %p132 = scmp.ne.s32.totalorder %s117, %s131
      %p133 = scmp.eq.s32.totalorder %s23, 0
      %p134 = por %p132, %p133
      %s136 = sadd.s32 %s135, 1
      %p139 = scmp.eq.s32.totalorder %s17, 1
      %p140 = scmp.ne.s32.totalorder %s135, %s137
      %p141 = scmp.eq.s32.totalorder %s17, 0
      %p142 = por %p140, %p141
      %p143 = scmp.ne.s32.totalorder %s135, %s137
      %p144 = scmp.eq.s32.totalorder %s22, 1
      %p145 = por %p143, %p144
      %p146 = scmp.ne.s32.totalorder %s137, %s138
      %p147 = scmp.eq.s32.totalorder %s22, 0
      %p148 = por %p146, %p147
      %p149 = scmp.ne.s32.totalorder %s137, %s138
      %p150 = scmp.eq.s32.totalorder %s23, 1
      %p151 = por %p149, %p150
      %p153 = scmp.ne.s32.totalorder %s138, %s152
      %p154 = scmp.eq.s32.totalorder %s23, 0
      %p155 = por %p153, %p154
      %s156 = ssub.s32 %s17, %s24
      %p157 = scmp.eq.s32.totalorder %s156, 0
      %s159 = sadd.s32 %s158, 1
      %s160 = scalar_select %p157, %s158, %s159
      %p163 = pneg %p157
      %p164 = scmp.eq.s32.totalorder %s17, 1
      %p165 = por %p163, %p164
      %p166 = scmp.ne.s32.totalorder %s158, %s161
      %p167 = scmp.eq.s32.totalorder %s17, 0
      %p168 = por %p166, %p167
      %p169 = scmp.ne.s32.totalorder %s158, %s161
      %p170 = scmp.eq.s32.totalorder %s22, 1
      %p171 = por %p169, %p170
      %p172 = scmp.ne.s32.totalorder %s161, %s162
      %p173 = scmp.eq.s32.totalorder %s22, 0
      %p174 = por %p172, %p173
      %p175 = scmp.ne.s32.totalorder %s161, %s162
      %p176 = scmp.eq.s32.totalorder %s23, 1
      %p177 = por %p175, %p176
      %p179 = scmp.ne.s32.totalorder %s162, %s178
      %p180 = scmp.eq.s32.totalorder %s23, 0
      %p181 = por %p179, %p180
      %p182 = scmp.le.s32.totalorder 1, %s17
      %p183 = scmp.lt.s32.totalorder %s17, 3
      %p184 = pnand %p182, %p183
      %p185 = pneg %p184
      // Predicated region
      $region9: #{tpu_custom_call.1} parent=5 // pred_check
        _
      $region10: #{tpu_custom_call.1} parent=5 // pred_check_branch
        %187 = sbr.rel (%p184) target = $region12
      $region11: #{tpu_custom_call.1} parent=5 // pred_region
        %s188 = ssub.s32 %s17, 1
        // Predicated region
        $region13: #{tpu_custom_call.1} parent=11 // pred_check
          %p189 = pneg %p64
        $region14: #{tpu_custom_call.1} parent=11 // pred_check_branch
          %191 = sbr.rel (%p189) target = $region16
        $region15: #{tpu_custom_call.1} parent=11 // pred_region
          _
        $region16: #{tpu_custom_call.1} parent=11 // pred_fallthru
          _
        // Predicated region
        $region17: #{tpu_custom_call.1} parent=11 // pred_check
          %p192 = pneg %p85
        $region18: #{tpu_custom_call.1} parent=11 // pred_check_branch
          %194 = sbr.rel (%p192) target = $region20
        $region19: #{tpu_custom_call.1} parent=11 // pred_region
          %s196 = ssub.s32 1024, 1024
          %197 = vsyncadd [#allocation3], %s196
          %s198 = sshll.u32 [#allocation2], 4
          %s199 = int_to_ptr.vmem [resolvable:$true] %s198
          %204 = dma.hbm_to_vmem [thread:$0]  %s2, 1024, %s199, [#allocation3], 64, 64, 4
        $region20: #{tpu_custom_call.1} parent=11 // pred_fallthru
          _
        // Predicated region
        $region21: #{tpu_custom_call.1} parent=11 // pred_check
          %p205 = pneg %p106
        $region22: #{tpu_custom_call.1} parent=11 // pred_check_branch
          %207 = sbr.rel (%p205) target = $region24
        $region23: #{tpu_custom_call.1} parent=11 // pred_region
          _
        $region24: #{tpu_custom_call.1} parent=11 // pred_fallthru
          _
        // Predicated region
        $region25: #{tpu_custom_call.1} parent=11 // pred_check
          %p208 = pneg %p127
        $region26: #{tpu_custom_call.1} parent=11 // pred_check_branch
          %210 = sbr.rel (%p208) target = $region28
        $region27: #{tpu_custom_call.1} parent=11 // pred_region
          %s212 = ssub.s32 1024, 1024
          %213 = vsyncadd [#allocation6], %s212
          %s214 = sshll.u32 [#allocation5], 4
          %s215 = int_to_ptr.vmem [resolvable:$true] %s214
          %220 = dma.hbm_to_vmem [thread:$0]  %s4, 1024, %s215, [#allocation6], 64, 64, 4
        $region28: #{tpu_custom_call.1} parent=11 // pred_fallthru
          _
        // Predicated region
        $region29: #{tpu_custom_call.1} parent=11 // pred_check
          %p221 = pneg %p148
        $region30: #{tpu_custom_call.1} parent=11 // pred_check_branch
          %223 = sbr.rel (%p221) target = $region32
        $region31: #{tpu_custom_call.1} parent=11 // pred_region
          _
        $region32: #{tpu_custom_call.1} parent=11 // pred_fallthru
          _
      $region12: #{tpu_custom_call.1} parent=5 // pred_fallthru
        _
      %p224 = scmp.lt.s32.totalorder %s17, 2
      // Predicated region
      $region33: #{tpu_custom_call.1} parent=5 // pred_check
        %p225 = pneg %p224
      $region34: #{tpu_custom_call.1} parent=5 // pred_check_branch
        %227 = sbr.rel (%p225) target = $region36
      $region35: #{tpu_custom_call.1} parent=5 // pred_region
        // Predicated region
        $region37: #{tpu_custom_call.1} parent=35 // pred_check
          %p228 = pneg %p37
        $region38: #{tpu_custom_call.1} parent=35 // pred_check_branch
          %230 = sbr.rel (%p228) target = $region40
        $region39: #{tpu_custom_call.1} parent=35 // pred_region
          %s231 = smul.u32 16, %s17
          %p232 = scmp.lt.s32.totalorder %s231, 31
          %s233 = scalar_select %p232, %s231, 31
          %s234 = smul.addr %s233, 8
          %s235 = scalar_lea.vmem %s0, %s234
          %s236 = smul.u32 16, %s17
        $region40: #{tpu_custom_call.1} parent=35 // pred_fallthru
          _
      $region36: #{tpu_custom_call.1} parent=5 // pred_fallthru
        _
      %p237 = scmp.le.s32.totalorder 1, %s17
      %p238 = scmp.lt.s32.totalorder %s17, 3
      %p239 = pnand %p237, %p238
      %p240 = pneg %p239
      // Predicated region
      $region41: #{tpu_custom_call.1} parent=5 // pred_check
        _
      $region42: #{tpu_custom_call.1} parent=5 // pred_check_branch
        %242 = sbr.rel (%p239) target = $region44
      $region43: #{tpu_custom_call.1} parent=5 // pred_region
        %s243 = ssub.s32 %s17, 1
        // Predicated region
        $region45: #{tpu_custom_call.1} parent=43 // pred_check
          %p244 = pneg %p85
        $region46: #{tpu_custom_call.1} parent=43 // pred_check_branch
          %246 = sbr.rel (%p244) target = $region48
        $region47: #{tpu_custom_call.1} parent=43 // pred_region
          %247 = dma.done [#allocation3], 1024
        $region48: #{tpu_custom_call.1} parent=43 // pred_fallthru
          _
        // Predicated region
        $region49: #{tpu_custom_call.1} parent=43 // pred_check
          %p248 = pneg %p127
        $region50: #{tpu_custom_call.1} parent=43 // pred_check_branch
          %250 = sbr.rel (%p248) target = $region52
        $region51: #{tpu_custom_call.1} parent=43 // pred_region
          %251 = dma.done [#allocation6], 1024
        $region52: #{tpu_custom_call.1} parent=43 // pred_fallthru
          _
        %s252 = smul.u32 16, %s22
        %p253 = scmp.lt.s32.totalorder %s252, 31
        %s254 = scalar_select %p253, %s252, 31
        %s255 = smul.addr %s254, 8
        %s256 = scalar_lea.vmem %s0, %s255
        %p257 = pneg %p43
        %p258 = pneg %p40
        %p259 = pneg %p64
        %p260 = pneg %p61
        %p261 = pneg %p85
        %p262 = pneg %p82
        %p263 = pneg %p106
        %p264 = pneg %p103
        %p265 = pneg %p127
        %p266 = pneg %p124
        %p267 = pneg %p148
        %p268 = pneg %p145
        %p269 = pneg %p174
        %p270 = pneg %p171
        %s271 = sand.u32 %s161, 1
        %s272 = scalar_lea.sflag [#allocation4], %s271
        %s273 = sand.u32 %s161, 1
        %s274 = smul.addr %s273, 128
        %s275 = scalar_lea.vmem [#allocation7], %s274
        %s276 = smul.u32 16, %s22
        %p277 = scmp.lt.s32.totalorder %s276, 31
        %s278 = scalar_select %p277, %s276, 31
        %s279 = smul.addr %s278, 8
        %s280 = scalar_lea.vmem %s0, %s279
        %s281 = smul.u32 16, %s22
        %s282 = smul.u32 16, %s22
        %v284 = vld [vmem:[%s280] sm:$0xff]
        %v285 = vld [vmem:[%s280 + $0x8] sm:$0xff]
        %v286 = vld [vmem:[%s280 + $0x10] sm:$0xff]
        %v287 = vld [vmem:[%s280 + $0x18] sm:$0xff]
        %v288 = vld [vmem:[%s280 + $0x20] sm:$0xff]
        %v289 = vld [vmem:[%s280 + $0x28] sm:$0xff]
        %v290 = vld [vmem:[%s280 + $0x30] sm:$0xff]
        %v291 = vld [vmem:[%s280 + $0x38] sm:$0xff]
        %v292 = vld [vmem:[%s280 + $0x40] sm:$0xff]
        %v293 = vld [vmem:[%s280 + $0x48] sm:$0xff]
        %v294 = vld [vmem:[%s280 + $0x50] sm:$0xff]
        %v295 = vld [vmem:[%s280 + $0x58] sm:$0xff]
        %v296 = vld [vmem:[%s280 + $0x60] sm:$0xff]
        %v297 = vld [vmem:[%s280 + $0x68] sm:$0xff]
        %v298 = vld [vmem:[%s280 + $0x70] sm:$0xff]
        %v299 = vld [vmem:[%s280 + $0x78] sm:$0xff]
        %v300 = vlaneseq
        %v301 = vand.u32 %v300, 127
        %v302 = vadd.s32 %v301, 128
        %v303 = vadd.s32 %v301, 256
        %v304 = vadd.s32 %v301, 384
        %305 = vset.pattern.permute.xlu0 0
        %306 = vperm.xlu0 %305, %v284
        %v307 = vpop.permute.xlu0 %306
        %308 = vset.pattern.permute.xlu0 0
        %309 = vperm.xlu0 %308, %v285
        %v310 = vpop.permute.xlu0 %309
        %311 = vset.pattern.permute.xlu0 0
        %312 = vperm.xlu0 %311, %v286
        %v313 = vpop.permute.xlu0 %312
        %314 = vset.pattern.permute.xlu0 0
        %315 = vperm.xlu0 %314, %v287
        %v316 = vpop.permute.xlu0 %315
        %317 = vset.pattern.permute.xlu0 0
        %318 = vperm.xlu0 %317, %v288
        %v319 = vpop.permute.xlu0 %318
        %320 = vset.pattern.permute.xlu0 0
        %321 = vperm.xlu0 %320, %v289
        %v322 = vpop.permute.xlu0 %321
        %323 = vset.pattern.permute.xlu0 0
        %324 = vperm.xlu0 %323, %v290
        %v325 = vpop.permute.xlu0 %324
        %326 = vset.pattern.permute.xlu0 0
        %327 = vperm.xlu0 %326, %v291
        %v328 = vpop.permute.xlu0 %327
        %329 = vset.pattern.permute.xlu0 0
        %330 = vperm.xlu0 %329, %v292
        %v331 = vpop.permute.xlu0 %330
        %332 = vset.pattern.permute.xlu0 0
        %333 = vperm.xlu0 %332, %v293
        %v334 = vpop.permute.xlu0 %333
        %335 = vset.pattern.permute.xlu0 0
        %336 = vperm.xlu0 %335, %v294
        %v337 = vpop.permute.xlu0 %336
        %338 = vset.pattern.permute.xlu0 0
        %339 = vperm.xlu0 %338, %v295
        %v340 = vpop.permute.xlu0 %339
        %341 = vset.pattern.permute.xlu0 0
        %342 = vperm.xlu0 %341, %v296
        %v343 = vpop.permute.xlu0 %342
        %344 = vset.pattern.permute.xlu0 0
        %345 = vperm.xlu0 %344, %v297
        %v346 = vpop.permute.xlu0 %345
        %347 = vset.pattern.permute.xlu0 0
        %348 = vperm.xlu0 %347, %v298
        %v349 = vpop.permute.xlu0 %348
        %350 = vset.pattern.permute.xlu0 0
        %351 = vperm.xlu0 %350, %v299
        %v352 = vpop.permute.xlu0 %351
        %vm353 = vcmp.eq.s32.totalorder %v307, %v301
        %vm354 = vcmp.eq.s32.totalorder %v307, %v302
        %vm355 = vcmp.eq.s32.totalorder %v307, %v303
        %vm356 = vcmp.eq.s32.totalorder %v307, %v304
        %vm357 = vcmp.eq.s32.totalorder %v310, %v301
        %vm358 = vcmp.eq.s32.totalorder %v310, %v302
        %vm359 = vcmp.eq.s32.totalorder %v310, %v303
        %vm360 = vcmp.eq.s32.totalorder %v310, %v304
        %vm361 = vcmp.eq.s32.totalorder %v313, %v301
        %vm362 = vcmp.eq.s32.totalorder %v313, %v302
        %vm363 = vcmp.eq.s32.totalorder %v313, %v303
        %vm364 = vcmp.eq.s32.totalorder %v313, %v304
        %vm365 = vcmp.eq.s32.totalorder %v316, %v301
        %vm366 = vcmp.eq.s32.totalorder %v316, %v302
        %vm367 = vcmp.eq.s32.totalorder %v316, %v303
        %vm368 = vcmp.eq.s32.totalorder %v316, %v304
        %vm369 = vcmp.eq.s32.totalorder %v319, %v301
        %vm370 = vcmp.eq.s32.totalorder %v319, %v302
        %vm371 = vcmp.eq.s32.totalorder %v319, %v303
        %vm372 = vcmp.eq.s32.totalorder %v319, %v304
        %vm373 = vcmp.eq.s32.totalorder %v322, %v301
        %vm374 = vcmp.eq.s32.totalorder %v322, %v302
        %vm375 = vcmp.eq.s32.totalorder %v322, %v303
        %vm376 = vcmp.eq.s32.totalorder %v322, %v304
        %vm377 = vcmp.eq.s32.totalorder %v325, %v301
        %vm378 = vcmp.eq.s32.totalorder %v325, %v302
        %vm379 = vcmp.eq.s32.totalorder %v325, %v303
        %vm380 = vcmp.eq.s32.totalorder %v325, %v304
        %vm381 = vcmp.eq.s32.totalorder %v328, %v301
        %vm382 = vcmp.eq.s32.totalorder %v328, %v302
        %vm383 = vcmp.eq.s32.totalorder %v328, %v303
        %vm384 = vcmp.eq.s32.totalorder %v328, %v304
        %vm385 = vcmp.eq.s32.totalorder %v331, %v301
        %vm386 = vcmp.eq.s32.totalorder %v331, %v302
        %vm387 = vcmp.eq.s32.totalorder %v331, %v303
        %vm388 = vcmp.eq.s32.totalorder %v331, %v304
        %vm389 = vcmp.eq.s32.totalorder %v334, %v301
        %vm390 = vcmp.eq.s32.totalorder %v334, %v302
        %vm391 = vcmp.eq.s32.totalorder %v334, %v303
        %vm392 = vcmp.eq.s32.totalorder %v334, %v304
        %vm393 = vcmp.eq.s32.totalorder %v337, %v301
        %vm394 = vcmp.eq.s32.totalorder %v337, %v302
        %vm395 = vcmp.eq.s32.totalorder %v337, %v303
        %vm396 = vcmp.eq.s32.totalorder %v337, %v304
        %vm397 = vcmp.eq.s32.totalorder %v340, %v301
        %vm398 = vcmp.eq.s32.totalorder %v340, %v302
        %vm399 = vcmp.eq.s32.totalorder %v340, %v303
        %vm400 = vcmp.eq.s32.totalorder %v340, %v304
        %vm401 = vcmp.eq.s32.totalorder %v343, %v301
        %vm402 = vcmp.eq.s32.totalorder %v343, %v302
        %vm403 = vcmp.eq.s32.totalorder %v343, %v303
        %vm404 = vcmp.eq.s32.totalorder %v343, %v304
        %vm405 = vcmp.eq.s32.totalorder %v346, %v301
        %vm406 = vcmp.eq.s32.totalorder %v346, %v302
        %vm407 = vcmp.eq.s32.totalorder %v346, %v303
        %vm408 = vcmp.eq.s32.totalorder %v346, %v304
        %vm409 = vcmp.eq.s32.totalorder %v349, %v301
        %vm410 = vcmp.eq.s32.totalorder %v349, %v302
        %vm411 = vcmp.eq.s32.totalorder %v349, %v303
        %vm412 = vcmp.eq.s32.totalorder %v349, %v304
        %vm413 = vcmp.eq.s32.totalorder %v352, %v301
        %vm414 = vcmp.eq.s32.totalorder %v352, %v302
        %vm415 = vcmp.eq.s32.totalorder %v352, %v303
        %vm416 = vcmp.eq.s32.totalorder %v352, %v304
        %v417 = vsel %vm353, 1, 0
        %v418 = vsel %vm354, 1, 0
        %v419 = vsel %vm355, 1, 0
        %v420 = vsel %vm356, 1, 0
        %v421 = vsel %vm357, 1, 0
        %v422 = vsel %vm358, 1, 0
        %v423 = vsel %vm359, 1, 0
        %v424 = vsel %vm360, 1, 0
        %v425 = vsel %vm361, 1, 0
        %v426 = vsel %vm362, 1, 0
        %v427 = vsel %vm363, 1, 0
        %v428 = vsel %vm364, 1, 0
        %v429 = vsel %vm365, 1, 0
        %v430 = vsel %vm366, 1, 0
        %v431 = vsel %vm367, 1, 0
        %v432 = vsel %vm368, 1, 0
        %v433 = vsel %vm369, 1, 0
        %v434 = vsel %vm370, 1, 0
        %v435 = vsel %vm371, 1, 0
        %v436 = vsel %vm372, 1, 0
        %v437 = vsel %vm373, 1, 0
        %v438 = vsel %vm374, 1, 0
        %v439 = vsel %vm375, 1, 0
        %v440 = vsel %vm376, 1, 0
        %v441 = vsel %vm377, 1, 0
        %v442 = vsel %vm378, 1, 0
        %v443 = vsel %vm379, 1, 0
        %v444 = vsel %vm380, 1, 0
        %v445 = vsel %vm381, 1, 0
        %v446 = vsel %vm382, 1, 0
        %v447 = vsel %vm383, 1, 0
        %v448 = vsel %vm384, 1, 0
        %v449 = vsel %vm385, 1, 0
        %v450 = vsel %vm386, 1, 0
        %v451 = vsel %vm387, 1, 0
        %v452 = vsel %vm388, 1, 0
        %v453 = vsel %vm389, 1, 0
        %v454 = vsel %vm390, 1, 0
        %v455 = vsel %vm391, 1, 0
        %v456 = vsel %vm392, 1, 0
        %v457 = vsel %vm393, 1, 0
        %v458 = vsel %vm394, 1, 0
        %v459 = vsel %vm395, 1, 0
        %v460 = vsel %vm396, 1, 0
        %v461 = vsel %vm397, 1, 0
        %v462 = vsel %vm398, 1, 0
        %v463 = vsel %vm399, 1, 0
        %v464 = vsel %vm400, 1, 0
        %v465 = vsel %vm401, 1, 0
        %v466 = vsel %vm402, 1, 0
        %v467 = vsel %vm403, 1, 0
        %v468 = vsel %vm404, 1, 0
        %v469 = vsel %vm405, 1, 0
        %v470 = vsel %vm406, 1, 0
        %v471 = vsel %vm407, 1, 0
        %v472 = vsel %vm408, 1, 0
        %v473 = vsel %vm409, 1, 0
        %v474 = vsel %vm410, 1, 0
        %v475 = vsel %vm411, 1, 0
        %v476 = vsel %vm412, 1, 0
        %v477 = vsel %vm413, 1, 0
        %v478 = vsel %vm414, 1, 0
        %v479 = vsel %vm415, 1, 0
        %v480 = vsel %vm416, 1, 0
        %481 = vset.pattern.permute.xlu0 1
        %482 = vperm.xlu0 %481, %v284
        %v483 = vpop.permute.xlu0 %482
        %484 = vset.pattern.permute.xlu0 1
        %485 = vperm.xlu0 %484, %v285
        %v486 = vpop.permute.xlu0 %485
        %487 = vset.pattern.permute.xlu0 1
        %488 = vperm.xlu0 %487, %v286
        %v489 = vpop.permute.xlu0 %488
        %490 = vset.pattern.permute.xlu0 1
        %491 = vperm.xlu0 %490, %v287
        %v492 = vpop.permute.xlu0 %491
        %493 = vset.pattern.permute.xlu0 1
        %494 = vperm.xlu0 %493, %v288
        %v495 = vpop.permute.xlu0 %494
        %496 = vset.pattern.permute.xlu0 1
        %497 = vperm.xlu0 %496, %v289
        %v498 = vpop.permute.xlu0 %497
        %499 = vset.pattern.permute.xlu0 1
        %500 = vperm.xlu0 %499, %v290
        %v501 = vpop.permute.xlu0 %500
        %502 = vset.pattern.permute.xlu0 1
        %503 = vperm.xlu0 %502, %v291
        %v504 = vpop.permute.xlu0 %503
        %505 = vset.pattern.permute.xlu0 1
        %506 = vperm.xlu0 %505, %v292
        %v507 = vpop.permute.xlu0 %506
        %508 = vset.pattern.permute.xlu0 1
        %509 = vperm.xlu0 %508, %v293
        %v510 = vpop.permute.xlu0 %509
        %511 = vset.pattern.permute.xlu0 1
        %512 = vperm.xlu0 %511, %v294
        %v513 = vpop.permute.xlu0 %512
        %514 = vset.pattern.permute.xlu0 1
        %515 = vperm.xlu0 %514, %v295
        %v516 = vpop.permute.xlu0 %515
        %517 = vset.pattern.permute.xlu0 1
        %518 = vperm.xlu0 %517, %v296
        %v519 = vpop.permute.xlu0 %518
        %520 = vset.pattern.permute.xlu0 1
        %521 = vperm.xlu0 %520, %v297
        %v522 = vpop.permute.xlu0 %521
        %523 = vset.pattern.permute.xlu0 1
        %524 = vperm.xlu0 %523, %v298
        %v525 = vpop.permute.xlu0 %524
        %526 = vset.pattern.permute.xlu0 1
        %527 = vperm.xlu0 %526, %v299
        %v528 = vpop.permute.xlu0 %527
        %vm529 = vcmp.eq.s32.totalorder %v483, %v301
        %vm530 = vcmp.eq.s32.totalorder %v483, %v302
        %vm531 = vcmp.eq.s32.totalorder %v483, %v303
        %vm532 = vcmp.eq.s32.totalorder %v483, %v304
        %vm533 = vcmp.eq.s32.totalorder %v486, %v301
        %vm534 = vcmp.eq.s32.totalorder %v486, %v302
        %vm535 = vcmp.eq.s32.totalorder %v486, %v303
        %vm536 = vcmp.eq.s32.totalorder %v486, %v304
        %vm537 = vcmp.eq.s32.totalorder %v489, %v301
        %vm538 = vcmp.eq.s32.totalorder %v489, %v302
        %vm539 = vcmp.eq.s32.totalorder %v489, %v303
        %vm540 = vcmp.eq.s32.totalorder %v489, %v304
        %vm541 = vcmp.eq.s32.totalorder %v492, %v301
        %vm542 = vcmp.eq.s32.totalorder %v492, %v302
        %vm543 = vcmp.eq.s32.totalorder %v492, %v303
        %vm544 = vcmp.eq.s32.totalorder %v492, %v304
        %vm545 = vcmp.eq.s32.totalorder %v495, %v301
        %vm546 = vcmp.eq.s32.totalorder %v495, %v302
        %vm547 = vcmp.eq.s32.totalorder %v495, %v303
        %vm548 = vcmp.eq.s32.totalorder %v495, %v304
        %vm549 = vcmp.eq.s32.totalorder %v498, %v301
        %vm550 = vcmp.eq.s32.totalorder %v498, %v302
        %vm551 = vcmp.eq.s32.totalorder %v498, %v303
        %vm552 = vcmp.eq.s32.totalorder %v498, %v304
        %vm553 = vcmp.eq.s32.totalorder %v501, %v301
        %vm554 = vcmp.eq.s32.totalorder %v501, %v302
        %vm555 = vcmp.eq.s32.totalorder %v501, %v303
        %vm556 = vcmp.eq.s32.totalorder %v501, %v304
        %vm557 = vcmp.eq.s32.totalorder %v504, %v301
        %vm558 = vcmp.eq.s32.totalorder %v504, %v302
        %vm559 = vcmp.eq.s32.totalorder %v504, %v303
        %vm560 = vcmp.eq.s32.totalorder %v504, %v304
        %vm561 = vcmp.eq.s32.totalorder %v507, %v301
        %vm562 = vcmp.eq.s32.totalorder %v507, %v302
        %vm563 = vcmp.eq.s32.totalorder %v507, %v303
        %vm564 = vcmp.eq.s32.totalorder %v507, %v304
        %vm565 = vcmp.eq.s32.totalorder %v510, %v301
        %vm566 = vcmp.eq.s32.totalorder %v510, %v302
        %vm567 = vcmp.eq.s32.totalorder %v510, %v303
        %vm568 = vcmp.eq.s32.totalorder %v510, %v304
        %vm569 = vcmp.eq.s32.totalorder %v513, %v301
        %vm570 = vcmp.eq.s32.totalorder %v513, %v302
        %vm571 = vcmp.eq.s32.totalorder %v513, %v303
        %vm572 = vcmp.eq.s32.totalorder %v513, %v304
        %vm573 = vcmp.eq.s32.totalorder %v516, %v301
        %vm574 = vcmp.eq.s32.totalorder %v516, %v302
        %vm575 = vcmp.eq.s32.totalorder %v516, %v303
        %vm576 = vcmp.eq.s32.totalorder %v516, %v304
        %vm577 = vcmp.eq.s32.totalorder %v519, %v301
        %vm578 = vcmp.eq.s32.totalorder %v519, %v302
        %vm579 = vcmp.eq.s32.totalorder %v519, %v303
        %vm580 = vcmp.eq.s32.totalorder %v519, %v304
        %vm581 = vcmp.eq.s32.totalorder %v522, %v301
        %vm582 = vcmp.eq.s32.totalorder %v522, %v302
        %vm583 = vcmp.eq.s32.totalorder %v522, %v303
        %vm584 = vcmp.eq.s32.totalorder %v522, %v304
        %vm585 = vcmp.eq.s32.totalorder %v525, %v301
        %vm586 = vcmp.eq.s32.totalorder %v525, %v302
        %vm587 = vcmp.eq.s32.totalorder %v525, %v303
        %vm588 = vcmp.eq.s32.totalorder %v525, %v304
        %vm589 = vcmp.eq.s32.totalorder %v528, %v301
        %vm590 = vcmp.eq.s32.totalorder %v528, %v302
        %vm591 = vcmp.eq.s32.totalorder %v528, %v303
        %vm592 = vcmp.eq.s32.totalorder %v528, %v304
        %v593 = vsel %vm529, 1, 0
        %v594 = vsel %vm530, 1, 0
        %v595 = vsel %vm531, 1, 0
        %v596 = vsel %vm532, 1, 0
        %v597 = vsel %vm533, 1, 0
        %v598 = vsel %vm534, 1, 0
        %v599 = vsel %vm535, 1, 0
        %v600 = vsel %vm536, 1, 0
        %v601 = vsel %vm537, 1, 0
        %v602 = vsel %vm538, 1, 0
        %v603 = vsel %vm539, 1, 0
        %v604 = vsel %vm540, 1, 0
        %v605 = vsel %vm541, 1, 0
        %v606 = vsel %vm542, 1, 0
        %v607 = vsel %vm543, 1, 0
        %v608 = vsel %vm544, 1, 0
        %v609 = vsel %vm545, 1, 0
        %v610 = vsel %vm546, 1, 0
        %v611 = vsel %vm547, 1, 0
        %v612 = vsel %vm548, 1, 0
        %v613 = vsel %vm549, 1, 0
        %v614 = vsel %vm550, 1, 0
        %v615 = vsel %vm551, 1, 0
        %v616 = vsel %vm552, 1, 0
        %v617 = vsel %vm553, 1, 0
        %v618 = vsel %vm554, 1, 0
        %v619 = vsel %vm555, 1, 0
        %v620 = vsel %vm556, 1, 0
        %v621 = vsel %vm557, 1, 0
        %v622 = vsel %vm558, 1, 0
        %v623 = vsel %vm559, 1, 0
        %v624 = vsel %vm560, 1, 0
        %v625 = vsel %vm561, 1, 0
        %v626 = vsel %vm562, 1, 0
        %v627 = vsel %vm563, 1, 0
        %v628 = vsel %vm564, 1, 0
        %v629 = vsel %vm565, 1, 0
        %v630 = vsel %vm566, 1, 0
        %v631 = vsel %vm567, 1, 0
        %v632 = vsel %vm568, 1, 0
        %v633 = vsel %vm569, 1, 0
        %v634 = vsel %vm570, 1, 0
        %v635 = vsel %vm571, 1, 0
        %v636 = vsel %vm572, 1, 0
        %v637 = vsel %vm573, 1, 0
        %v638 = vsel %vm574, 1, 0
        %v639 = vsel %vm575, 1, 0
        %v640 = vsel %vm576, 1, 0
        %v641 = vsel %vm577, 1, 0
        %v642 = vsel %vm578, 1, 0
        %v643 = vsel %vm579, 1, 0
        %v644 = vsel %vm580, 1, 0
        %v645 = vsel %vm581, 1, 0
        %v646 = vsel %vm582, 1, 0
        %v647 = vsel %vm583, 1, 0
        %v648 = vsel %vm584, 1, 0
        %v649 = vsel %vm585, 1, 0
        %v650 = vsel %vm586, 1, 0
        %v651 = vsel %vm587, 1, 0
        %v652 = vsel %vm588, 1, 0
        %v653 = vsel %vm589, 1, 0
        %v654 = vsel %vm590, 1, 0
        %v655 = vsel %vm591, 1, 0
        %v656 = vsel %vm592, 1, 0
        %v657 = vadd.s32 %v417, %v593
        %v658 = vadd.s32 %v418, %v594
        %v659 = vadd.s32 %v419, %v595
        %v660 = vadd.s32 %v420, %v596
        %v661 = vadd.s32 %v421, %v597
        %v662 = vadd.s32 %v422, %v598
        %v663 = vadd.s32 %v423, %v599
        %v664 = vadd.s32 %v424, %v600
        %v665 = vadd.s32 %v425, %v601
        %v666 = vadd.s32 %v426, %v602
        %v667 = vadd.s32 %v427, %v603
        %v668 = vadd.s32 %v428, %v604
        %v669 = vadd.s32 %v429, %v605
        %v670 = vadd.s32 %v430, %v606
        %v671 = vadd.s32 %v431, %v607
        %v672 = vadd.s32 %v432, %v608
        %v673 = vadd.s32 %v433, %v609
        %v674 = vadd.s32 %v434, %v610
        %v675 = vadd.s32 %v435, %v611
        %v676 = vadd.s32 %v436, %v612
        %v677 = vadd.s32 %v437, %v613
        %v678 = vadd.s32 %v438, %v614
        %v679 = vadd.s32 %v439, %v615
        %v680 = vadd.s32 %v440, %v616
        %v681 = vadd.s32 %v441, %v617
        %v682 = vadd.s32 %v442, %v618
        %v683 = vadd.s32 %v443, %v619
        %v684 = vadd.s32 %v444, %v620
        %v685 = vadd.s32 %v445, %v621
        %v686 = vadd.s32 %v446, %v622
        %v687 = vadd.s32 %v447, %v623
        %v688 = vadd.s32 %v448, %v624
        %v689 = vadd.s32 %v449, %v625
        %v690 = vadd.s32 %v450, %v626
        %v691 = vadd.s32 %v451, %v627
        %v692 = vadd.s32 %v452, %v628
        %v693 = vadd.s32 %v453, %v629
        %v694 = vadd.s32 %v454, %v630
        %v695 = vadd.s32 %v455, %v631
        %v696 = vadd.s32 %v456, %v632
        %v697 = vadd.s32 %v457, %v633
        %v698 = vadd.s32 %v458, %v634
        %v699 = vadd.s32 %v459, %v635
        %v700 = vadd.s32 %v460, %v636
        %v701 = vadd.s32 %v461, %v637
        %v702 = vadd.s32 %v462, %v638
        %v703 = vadd.s32 %v463, %v639
        %v704 = vadd.s32 %v464, %v640
        %v705 = vadd.s32 %v465, %v641
        %v706 = vadd.s32 %v466, %v642
        %v707 = vadd.s32 %v467, %v643
        %v708 = vadd.s32 %v468, %v644
        %v709 = vadd.s32 %v469, %v645
        %v710 = vadd.s32 %v470, %v646
        %v711 = vadd.s32 %v471, %v647
        %v712 = vadd.s32 %v472, %v648
        %v713 = vadd.s32 %v473, %v649
        %v714 = vadd.s32 %v474, %v650
        %v715 = vadd.s32 %v475, %v651
        %v716 = vadd.s32 %v476, %v652
        %v717 = vadd.s32 %v477, %v653
        %v718 = vadd.s32 %v478, %v654
        %v719 = vadd.s32 %v479, %v655
        %v720 = vadd.s32 %v480, %v656
        %721 = vset.pattern.permute.xlu0 2
        %722 = vperm.xlu0 %721, %v284
        %v723 = vpop.permute.xlu0 %722
        %724 = vset.pattern.permute.xlu0 2
        %725 = vperm.xlu0 %724, %v285
        %v726 = vpop.permute.xlu0 %725
        %727 = vset.pattern.permute.xlu0 2
        %728 = vperm.xlu0 %727, %v286
        %v729 = vpop.permute.xlu0 %728
        %730 = vset.pattern.permute.xlu0 2
        %731 = vperm.xlu0 %730, %v287
        %v732 = vpop.permute.xlu0 %731
        %733 = vset.pattern.permute.xlu0 2
        %734 = vperm.xlu0 %733, %v288
        %v735 = vpop.permute.xlu0 %734
        %736 = vset.pattern.permute.xlu0 2
        %737 = vperm.xlu0 %736, %v289
        %v738 = vpop.permute.xlu0 %737
        %739 = vset.pattern.permute.xlu0 2
        %740 = vperm.xlu0 %739, %v290
        %v741 = vpop.permute.xlu0 %740
        %742 = vset.pattern.permute.xlu0 2
        %743 = vperm.xlu0 %742, %v291
        %v744 = vpop.permute.xlu0 %743
        %745 = vset.pattern.permute.xlu0 2
        %746 = vperm.xlu0 %745, %v292
        %v747 = vpop.permute.xlu0 %746
        %748 = vset.pattern.permute.xlu0 2
        %749 = vperm.xlu0 %748, %v293
        %v750 = vpop.permute.xlu0 %749
        %751 = vset.pattern.permute.xlu0 2
        %752 = vperm.xlu0 %751, %v294
        %v753 = vpop.permute.xlu0 %752
        %754 = vset.pattern.permute.xlu0 2
        %755 = vperm.xlu0 %754, %v295
        %v756 = vpop.permute.xlu0 %755
        %757 = vset.pattern.permute.xlu0 2
        %758 = vperm.xlu0 %757, %v296
        %v759 = vpop.permute.xlu0 %758
        %760 = vset.pattern.permute.xlu0 2
        %761 = vperm.xlu0 %760, %v297
        %v762 = vpop.permute.xlu0 %761
        %763 = vset.pattern.permute.xlu0 2
        %764 = vperm.xlu0 %763, %v298
        %v765 = vpop.permute.xlu0 %764
        %766 = vset.pattern.permute.xlu0 2
        %767 = vperm.xlu0 %766, %v299
        %v768 = vpop.permute.xlu0 %767
        %vm769 = vcmp.eq.s32.totalorder %v723, %v301
        %vm770 = vcmp.eq.s32.totalorder %v723, %v302
        %vm771 = vcmp.eq.s32.totalorder %v723, %v303
        %vm772 = vcmp.eq.s32.totalorder %v723, %v304
        %vm773 = vcmp.eq.s32.totalorder %v726, %v301
        %vm774 = vcmp.eq.s32.totalorder %v726, %v302
        %vm775 = vcmp.eq.s32.totalorder %v726, %v303
        %vm776 = vcmp.eq.s32.totalorder %v726, %v304
        %vm777 = vcmp.eq.s32.totalorder %v729, %v301
        %vm778 = vcmp.eq.s32.totalorder %v729, %v302
        %vm779 = vcmp.eq.s32.totalorder %v729, %v303
        %vm780 = vcmp.eq.s32.totalorder %v729, %v304
        %vm781 = vcmp.eq.s32.totalorder %v732, %v301
        %vm782 = vcmp.eq.s32.totalorder %v732, %v302
        %vm783 = vcmp.eq.s32.totalorder %v732, %v303
        %vm784 = vcmp.eq.s32.totalorder %v732, %v304
        %vm785 = vcmp.eq.s32.totalorder %v735, %v301
        %vm786 = vcmp.eq.s32.totalorder %v735, %v302
        %vm787 = vcmp.eq.s32.totalorder %v735, %v303
        %vm788 = vcmp.eq.s32.totalorder %v735, %v304
        %vm789 = vcmp.eq.s32.totalorder %v738, %v301
        %vm790 = vcmp.eq.s32.totalorder %v738, %v302
        %vm791 = vcmp.eq.s32.totalorder %v738, %v303
        %vm792 = vcmp.eq.s32.totalorder %v738, %v304
        %vm793 = vcmp.eq.s32.totalorder %v741, %v301
        %vm794 = vcmp.eq.s32.totalorder %v741, %v302
        %vm795 = vcmp.eq.s32.totalorder %v741, %v303
        %vm796 = vcmp.eq.s32.totalorder %v741, %v304
        %vm797 = vcmp.eq.s32.totalorder %v744, %v301
        %vm798 = vcmp.eq.s32.totalorder %v744, %v302
        %vm799 = vcmp.eq.s32.totalorder %v744, %v303
        %vm800 = vcmp.eq.s32.totalorder %v744, %v304
        %vm801 = vcmp.eq.s32.totalorder %v747, %v301
        %vm802 = vcmp.eq.s32.totalorder %v747, %v302
        %vm803 = vcmp.eq.s32.totalorder %v747, %v303
        %vm804 = vcmp.eq.s32.totalorder %v747, %v304
        %vm805 = vcmp.eq.s32.totalorder %v750, %v301
        %vm806 = vcmp.eq.s32.totalorder %v750, %v302
        %vm807 = vcmp.eq.s32.totalorder %v750, %v303
        %vm808 = vcmp.eq.s32.totalorder %v750, %v304
        %vm809 = vcmp.eq.s32.totalorder %v753, %v301
        %vm810 = vcmp.eq.s32.totalorder %v753, %v302
        %vm811 = vcmp.eq.s32.totalorder %v753, %v303
        %vm812 = vcmp.eq.s32.totalorder %v753, %v304
        %vm813 = vcmp.eq.s32.totalorder %v756, %v301
        %vm814 = vcmp.eq.s32.totalorder %v756, %v302
        %vm815 = vcmp.eq.s32.totalorder %v756, %v303
        %vm816 = vcmp.eq.s32.totalorder %v756, %v304
        %vm817 = vcmp.eq.s32.totalorder %v759, %v301
        %vm818 = vcmp.eq.s32.totalorder %v759, %v302
        %vm819 = vcmp.eq.s32.totalorder %v759, %v303
        %vm820 = vcmp.eq.s32.totalorder %v759, %v304
        %vm821 = vcmp.eq.s32.totalorder %v762, %v301
        %vm822 = vcmp.eq.s32.totalorder %v762, %v302
        %vm823 = vcmp.eq.s32.totalorder %v762, %v303
        %vm824 = vcmp.eq.s32.totalorder %v762, %v304
        %vm825 = vcmp.eq.s32.totalorder %v765, %v301
        %vm826 = vcmp.eq.s32.totalorder %v765, %v302
        %vm827 = vcmp.eq.s32.totalorder %v765, %v303
        %vm828 = vcmp.eq.s32.totalorder %v765, %v304
        %vm829 = vcmp.eq.s32.totalorder %v768, %v301
        %vm830 = vcmp.eq.s32.totalorder %v768, %v302
        %vm831 = vcmp.eq.s32.totalorder %v768, %v303
        %vm832 = vcmp.eq.s32.totalorder %v768, %v304
        %v833 = vsel %vm769, 1, 0
        %v834 = vsel %vm770, 1, 0
        %v835 = vsel %vm771, 1, 0
        %v836 = vsel %vm772, 1, 0
        %v837 = vsel %vm773, 1, 0
        %v838 = vsel %vm774, 1, 0
        %v839 = vsel %vm775, 1, 0
        %v840 = vsel %vm776, 1, 0
        %v841 = vsel %vm777, 1, 0
        %v842 = vsel %vm778, 1, 0
        %v843 = vsel %vm779, 1, 0
        %v844 = vsel %vm780, 1, 0
        %v845 = vsel %vm781, 1, 0
        %v846 = vsel %vm782, 1, 0
        %v847 = vsel %vm783, 1, 0
        %v848 = vsel %vm784, 1, 0
        %v849 = vsel %vm785, 1, 0
        %v850 = vsel %vm786, 1, 0
        %v851 = vsel %vm787, 1, 0
        %v852 = vsel %vm788, 1, 0
        %v853 = vsel %vm789, 1, 0
        %v854 = vsel %vm790, 1, 0
        %v855 = vsel %vm791, 1, 0
        %v856 = vsel %vm792, 1, 0
        %v857 = vsel %vm793, 1, 0
        %v858 = vsel %vm794, 1, 0
        %v859 = vsel %vm795, 1, 0
        %v860 = vsel %vm796, 1, 0
        %v861 = vsel %vm797, 1, 0
        %v862 = vsel %vm798, 1, 0
        %v863 = vsel %vm799, 1, 0
        %v864 = vsel %vm800, 1, 0
        %v865 = vsel %vm801, 1, 0
        %v866 = vsel %vm802, 1, 0
        %v867 = vsel %vm803, 1, 0
        %v868 = vsel %vm804, 1, 0
        %v869 = vsel %vm805, 1, 0
        %v870 = vsel %vm806, 1, 0
        %v871 = vsel %vm807, 1, 0
        %v872 = vsel %vm808, 1, 0
        %v873 = vsel %vm809, 1, 0
        %v874 = vsel %vm810, 1, 0
        %v875 = vsel %vm811, 1, 0
        %v876 = vsel %vm812, 1, 0
        %v877 = vsel %vm813, 1, 0
        %v878 = vsel %vm814, 1, 0
        %v879 = vsel %vm815, 1, 0
        %v880 = vsel %vm816, 1, 0
        %v881 = vsel %vm817, 1, 0
        %v882 = vsel %vm818, 1, 0
        %v883 = vsel %vm819, 1, 0
        %v884 = vsel %vm820, 1, 0
        %v885 = vsel %vm821, 1, 0
        %v886 = vsel %vm822, 1, 0
        %v887 = vsel %vm823, 1, 0
        %v888 = vsel %vm824, 1, 0
        %v889 = vsel %vm825, 1, 0
        %v890 = vsel %vm826, 1, 0
        %v891 = vsel %vm827, 1, 0
        %v892 = vsel %vm828, 1, 0
        %v893 = vsel %vm829, 1, 0
        %v894 = vsel %vm830, 1, 0
        %v895 = vsel %vm831, 1, 0
        %v896 = vsel %vm832, 1, 0
        %v897 = vadd.s32 %v657, %v833
        %v898 = vadd.s32 %v658, %v834
        %v899 = vadd.s32 %v659, %v835
        %v900 = vadd.s32 %v660, %v836
        %v901 = vadd.s32 %v661, %v837
        %v902 = vadd.s32 %v662, %v838
        %v903 = vadd.s32 %v663, %v839
        %v904 = vadd.s32 %v664, %v840
        %v905 = vadd.s32 %v665, %v841
        %v906 = vadd.s32 %v666, %v842
        %v907 = vadd.s32 %v667, %v843
        %v908 = vadd.s32 %v668, %v844
        %v909 = vadd.s32 %v669, %v845
        %v910 = vadd.s32 %v670, %v846
        %v911 = vadd.s32 %v671, %v847
        %v912 = vadd.s32 %v672, %v848
        %v913 = vadd.s32 %v673, %v849
        %v914 = vadd.s32 %v674, %v850
        %v915 = vadd.s32 %v675, %v851
        %v916 = vadd.s32 %v676, %v852
        %v917 = vadd.s32 %v677, %v853
        %v918 = vadd.s32 %v678, %v854
        %v919 = vadd.s32 %v679, %v855
        %v920 = vadd.s32 %v680, %v856
        %v921 = vadd.s32 %v681, %v857
        %v922 = vadd.s32 %v682, %v858
        %v923 = vadd.s32 %v683, %v859
        %v924 = vadd.s32 %v684, %v860
        %v925 = vadd.s32 %v685, %v861
        %v926 = vadd.s32 %v686, %v862
        %v927 = vadd.s32 %v687, %v863
        %v928 = vadd.s32 %v688, %v864
        %v929 = vadd.s32 %v689, %v865
        %v930 = vadd.s32 %v690, %v866
        %v931 = vadd.s32 %v691, %v867
        %v932 = vadd.s32 %v692, %v868
        %v933 = vadd.s32 %v693, %v869
        %v934 = vadd.s32 %v694, %v870
        %v935 = vadd.s32 %v695, %v871
        %v936 = vadd.s32 %v696, %v872
        %v937 = vadd.s32 %v697, %v873
        %v938 = vadd.s32 %v698, %v874
        %v939 = vadd.s32 %v699, %v875
        %v940 = vadd.s32 %v700, %v876
        %v941 = vadd.s32 %v701, %v877
        %v942 = vadd.s32 %v702, %v878
        %v943 = vadd.s32 %v703, %v879
        %v944 = vadd.s32 %v704, %v880
        %v945 = vadd.s32 %v705, %v881
        %v946 = vadd.s32 %v706, %v882
        %v947 = vadd.s32 %v707, %v883
        %v948 = vadd.s32 %v708, %v884
        %v949 = vadd.s32 %v709, %v885
        %v950 = vadd.s32 %v710, %v886
        %v951 = vadd.s32 %v711, %v887
        %v952 = vadd.s32 %v712, %v888
        %v953 = vadd.s32 %v713, %v889
        %v954 = vadd.s32 %v714, %v890
        %v955 = vadd.s32 %v715, %v891
        %v956 = vadd.s32 %v716, %v892
        %v957 = vadd.s32 %v717, %v893
        %v958 = vadd.s32 %v718, %v894
        %v959 = vadd.s32 %v719, %v895
        %v960 = vadd.s32 %v720, %v896
        %961 = vset.pattern.permute.xlu0 3
        %962 = vperm.xlu0 %961, %v284
        %v963 = vpop.permute.xlu0 %962
        %964 = vset.pattern.permute.xlu0 3
        %965 = vperm.xlu0 %964, %v285
        %v966 = vpop.permute.xlu0 %965
        %967 = vset.pattern.permute.xlu0 3
        %968 = vperm.xlu0 %967, %v286
        %v969 = vpop.permute.xlu0 %968
        %970 = vset.pattern.permute.xlu0 3
        %971 = vperm.xlu0 %970, %v287
        %v972 = vpop.permute.xlu0 %971
        %973 = vset.pattern.permute.xlu0 3
        %974 = vperm.xlu0 %973, %v288
        %v975 = vpop.permute.xlu0 %974
        %976 = vset.pattern.permute.xlu0 3
        %977 = vperm.xlu0 %976, %v289
        %v978 = vpop.permute.xlu0 %977
        %979 = vset.pattern.permute.xlu0 3
        %980 = vperm.xlu0 %979, %v290
        %v981 = vpop.permute.xlu0 %980
        %982 = vset.pattern.permute.xlu0 3
        %983 = vperm.xlu0 %982, %v291
        %v984 = vpop.permute.xlu0 %983
        %985 = vset.pattern.permute.xlu0 3
        %986 = vperm.xlu0 %985, %v292
        %v987 = vpop.permute.xlu0 %986
        %988 = vset.pattern.permute.xlu0 3
        %989 = vperm.xlu0 %988, %v293
        %v990 = vpop.permute.xlu0 %989
        %991 = vset.pattern.permute.xlu0 3
        %992 = vperm.xlu0 %991, %v294
        %v993 = vpop.permute.xlu0 %992
        %994 = vset.pattern.permute.xlu0 3
        %995 = vperm.xlu0 %994, %v295
        %v996 = vpop.permute.xlu0 %995
        %997 = vset.pattern.permute.xlu0 3
        %998 = vperm.xlu0 %997, %v296
        %v999 = vpop.permute.xlu0 %998
        %1000 = vset.pattern.permute.xlu0 3
        %1001 = vperm.xlu0 %1000, %v297
        %v1002 = vpop.permute.xlu0 %1001
        %1003 = vset.pattern.permute.xlu0 3
        %1004 = vperm.xlu0 %1003, %v298
        %v1005 = vpop.permute.xlu0 %1004
        %1006 = vset.pattern.permute.xlu0 3
        %1007 = vperm.xlu0 %1006, %v299
        %v1008 = vpop.permute.xlu0 %1007
        %vm1009 = vcmp.eq.s32.totalorder %v963, %v301
        %vm1010 = vcmp.eq.s32.totalorder %v963, %v302
        %vm1011 = vcmp.eq.s32.totalorder %v963, %v303
        %vm1012 = vcmp.eq.s32.totalorder %v963, %v304
        %vm1013 = vcmp.eq.s32.totalorder %v966, %v301
        %vm1014 = vcmp.eq.s32.totalorder %v966, %v302
        %vm1015 = vcmp.eq.s32.totalorder %v966, %v303
        %vm1016 = vcmp.eq.s32.totalorder %v966, %v304
        %vm1017 = vcmp.eq.s32.totalorder %v969, %v301
        %vm1018 = vcmp.eq.s32.totalorder %v969, %v302
        %vm1019 = vcmp.eq.s32.totalorder %v969, %v303
        %vm1020 = vcmp.eq.s32.totalorder %v969, %v304
        %vm1021 = vcmp.eq.s32.totalorder %v972, %v301
        %vm1022 = vcmp.eq.s32.totalorder %v972, %v302
        %vm1023 = vcmp.eq.s32.totalorder %v972, %v303
        %vm1024 = vcmp.eq.s32.totalorder %v972, %v304
        %vm1025 = vcmp.eq.s32.totalorder %v975, %v301
        %vm1026 = vcmp.eq.s32.totalorder %v975, %v302
        %vm1027 = vcmp.eq.s32.totalorder %v975, %v303
        %vm1028 = vcmp.eq.s32.totalorder %v975, %v304
        %vm1029 = vcmp.eq.s32.totalorder %v978, %v301
        %vm1030 = vcmp.eq.s32.totalorder %v978, %v302
        %vm1031 = vcmp.eq.s32.totalorder %v978, %v303
        %vm1032 = vcmp.eq.s32.totalorder %v978, %v304
        %vm1033 = vcmp.eq.s32.totalorder %v981, %v301
        %vm1034 = vcmp.eq.s32.totalorder %v981, %v302
        %vm1035 = vcmp.eq.s32.totalorder %v981, %v303
        %vm1036 = vcmp.eq.s32.totalorder %v981, %v304
        %vm1037 = vcmp.eq.s32.totalorder %v984, %v301
        %vm1038 = vcmp.eq.s32.totalorder %v984, %v302
        %vm1039 = vcmp.eq.s32.totalorder %v984, %v303
        %vm1040 = vcmp.eq.s32.totalorder %v984, %v304
        %vm1041 = vcmp.eq.s32.totalorder %v987, %v301
        %vm1042 = vcmp.eq.s32.totalorder %v987, %v302
        %vm1043 = vcmp.eq.s32.totalorder %v987, %v303
        %vm1044 = vcmp.eq.s32.totalorder %v987, %v304
        %vm1045 = vcmp.eq.s32.totalorder %v990, %v301
        %vm1046 = vcmp.eq.s32.totalorder %v990, %v302
        %vm1047 = vcmp.eq.s32.totalorder %v990, %v303
        %vm1048 = vcmp.eq.s32.totalorder %v990, %v304
        %vm1049 = vcmp.eq.s32.totalorder %v993, %v301
        %vm1050 = vcmp.eq.s32.totalorder %v993, %v302
        %vm1051 = vcmp.eq.s32.totalorder %v993, %v303
        %vm1052 = vcmp.eq.s32.totalorder %v993, %v304
        %vm1053 = vcmp.eq.s32.totalorder %v996, %v301
        %vm1054 = vcmp.eq.s32.totalorder %v996, %v302
        %vm1055 = vcmp.eq.s32.totalorder %v996, %v303
        %vm1056 = vcmp.eq.s32.totalorder %v996, %v304
        %vm1057 = vcmp.eq.s32.totalorder %v999, %v301
        %vm1058 = vcmp.eq.s32.totalorder %v999, %v302
        %vm1059 = vcmp.eq.s32.totalorder %v999, %v303
        %vm1060 = vcmp.eq.s32.totalorder %v999, %v304
        %vm1061 = vcmp.eq.s32.totalorder %v1002, %v301
        %vm1062 = vcmp.eq.s32.totalorder %v1002, %v302
        %vm1063 = vcmp.eq.s32.totalorder %v1002, %v303
        %vm1064 = vcmp.eq.s32.totalorder %v1002, %v304
        %vm1065 = vcmp.eq.s32.totalorder %v1005, %v301
        %vm1066 = vcmp.eq.s32.totalorder %v1005, %v302
        %vm1067 = vcmp.eq.s32.totalorder %v1005, %v303
        %vm1068 = vcmp.eq.s32.totalorder %v1005, %v304
        %vm1069 = vcmp.eq.s32.totalorder %v1008, %v301
        %vm1070 = vcmp.eq.s32.totalorder %v1008, %v302
        %vm1071 = vcmp.eq.s32.totalorder %v1008, %v303
        %vm1072 = vcmp.eq.s32.totalorder %v1008, %v304
        %v1073 = vsel %vm1009, 1, 0
        %v1074 = vsel %vm1010, 1, 0
        %v1075 = vsel %vm1011, 1, 0
        %v1076 = vsel %vm1012, 1, 0
        %v1077 = vsel %vm1013, 1, 0
        %v1078 = vsel %vm1014, 1, 0
        %v1079 = vsel %vm1015, 1, 0
        %v1080 = vsel %vm1016, 1, 0
        %v1081 = vsel %vm1017, 1, 0
        %v1082 = vsel %vm1018, 1, 0
        %v1083 = vsel %vm1019, 1, 0
        %v1084 = vsel %vm1020, 1, 0
        %v1085 = vsel %vm1021, 1, 0
        %v1086 = vsel %vm1022, 1, 0
        %v1087 = vsel %vm1023, 1, 0
        %v1088 = vsel %vm1024, 1, 0
        %v1089 = vsel %vm1025, 1, 0
        %v1090 = vsel %vm1026, 1, 0
        %v1091 = vsel %vm1027, 1, 0
        %v1092 = vsel %vm1028, 1, 0
        %v1093 = vsel %vm1029, 1, 0
        %v1094 = vsel %vm1030, 1, 0
        %v1095 = vsel %vm1031, 1, 0
        %v1096 = vsel %vm1032, 1, 0
        %v1097 = vsel %vm1033, 1, 0
        %v1098 = vsel %vm1034, 1, 0
        %v1099 = vsel %vm1035, 1, 0
        %v1100 = vsel %vm1036, 1, 0
        %v1101 = vsel %vm1037, 1, 0
        %v1102 = vsel %vm1038, 1, 0
        %v1103 = vsel %vm1039, 1, 0
        %v1104 = vsel %vm1040, 1, 0
        %v1105 = vsel %vm1041, 1, 0
        %v1106 = vsel %vm1042, 1, 0
        %v1107 = vsel %vm1043, 1, 0
        %v1108 = vsel %vm1044, 1, 0
        %v1109 = vsel %vm1045, 1, 0
        %v1110 = vsel %vm1046, 1, 0
        %v1111 = vsel %vm1047, 1, 0
        %v1112 = vsel %vm1048, 1, 0
        %v1113 = vsel %vm1049, 1, 0
        %v1114 = vsel %vm1050, 1, 0
        %v1115 = vsel %vm1051, 1, 0
        %v1116 = vsel %vm1052, 1, 0
        %v1117 = vsel %vm1053, 1, 0
        %v1118 = vsel %vm1054, 1, 0
        %v1119 = vsel %vm1055, 1, 0
        %v1120 = vsel %vm1056, 1, 0
        %v1121 = vsel %vm1057, 1, 0
        %v1122 = vsel %vm1058, 1, 0
        %v1123 = vsel %vm1059, 1, 0
        %v1124 = vsel %vm1060, 1, 0
        %v1125 = vsel %vm1061, 1, 0
        %v1126 = vsel %vm1062, 1, 0
        %v1127 = vsel %vm1063, 1, 0
        %v1128 = vsel %vm1064, 1, 0
        %v1129 = vsel %vm1065, 1, 0
        %v1130 = vsel %vm1066, 1, 0
        %v1131 = vsel %vm1067, 1, 0
        %v1132 = vsel %vm1068, 1, 0
        %v1133 = vsel %vm1069, 1, 0
        %v1134 = vsel %vm1070, 1, 0
        %v1135 = vsel %vm1071, 1, 0
        %v1136 = vsel %vm1072, 1, 0
        %v1137 = vadd.s32 %v897, %v1073
        %v1138 = vadd.s32 %v898, %v1074
        %v1139 = vadd.s32 %v899, %v1075
        %v1140 = vadd.s32 %v900, %v1076
        %v1141 = vadd.s32 %v901, %v1077
        %v1142 = vadd.s32 %v902, %v1078
        %v1143 = vadd.s32 %v903, %v1079
        %v1144 = vadd.s32 %v904, %v1080
        %v1145 = vadd.s32 %v905, %v1081
        %v1146 = vadd.s32 %v906, %v1082
        %v1147 = vadd.s32 %v907, %v1083
        %v1148 = vadd.s32 %v908, %v1084
        %v1149 = vadd.s32 %v909, %v1085
        %v1150 = vadd.s32 %v910, %v1086
        %v1151 = vadd.s32 %v911, %v1087
        %v1152 = vadd.s32 %v912, %v1088
        %v1153 = vadd.s32 %v913, %v1089
        %v1154 = vadd.s32 %v914, %v1090
        %v1155 = vadd.s32 %v915, %v1091
        %v1156 = vadd.s32 %v916, %v1092
        %v1157 = vadd.s32 %v917, %v1093
        %v1158 = vadd.s32 %v918, %v1094
        %v1159 = vadd.s32 %v919, %v1095
        %v1160 = vadd.s32 %v920, %v1096
        %v1161 = vadd.s32 %v921, %v1097
        %v1162 = vadd.s32 %v922, %v1098
        %v1163 = vadd.s32 %v923, %v1099
        %v1164 = vadd.s32 %v924, %v1100
        %v1165 = vadd.s32 %v925, %v1101
        %v1166 = vadd.s32 %v926, %v1102
        %v1167 = vadd.s32 %v927, %v1103
        %v1168 = vadd.s32 %v928, %v1104
        %v1169 = vadd.s32 %v929, %v1105
        %v1170 = vadd.s32 %v930, %v1106
        %v1171 = vadd.s32 %v931, %v1107
        %v1172 = vadd.s32 %v932, %v1108
        %v1173 = vadd.s32 %v933, %v1109
        %v1174 = vadd.s32 %v934, %v1110
        %v1175 = vadd.s32 %v935, %v1111
        %v1176 = vadd.s32 %v936, %v1112
        %v1177 = vadd.s32 %v937, %v1113
        %v1178 = vadd.s32 %v938, %v1114
        %v1179 = vadd.s32 %v939, %v1115
        %v1180 = vadd.s32 %v940, %v1116
        %v1181 = vadd.s32 %v941, %v1117
        %v1182 = vadd.s32 %v942, %v1118
        %v1183 = vadd.s32 %v943, %v1119
        %v1184 = vadd.s32 %v944, %v1120
        %v1185 = vadd.s32 %v945, %v1121
        %v1186 = vadd.s32 %v946, %v1122
        %v1187 = vadd.s32 %v947, %v1123
        %v1188 = vadd.s32 %v948, %v1124
        %v1189 = vadd.s32 %v949, %v1125
        %v1190 = vadd.s32 %v950, %v1126
        %v1191 = vadd.s32 %v951, %v1127
        %v1192 = vadd.s32 %v952, %v1128
        %v1193 = vadd.s32 %v953, %v1129
        %v1194 = vadd.s32 %v954, %v1130
        %v1195 = vadd.s32 %v955, %v1131
        %v1196 = vadd.s32 %v956, %v1132
        %v1197 = vadd.s32 %v957, %v1133
        %v1198 = vadd.s32 %v958, %v1134
        %v1199 = vadd.s32 %v959, %v1135
        %v1200 = vadd.s32 %v960, %v1136
        %1201 = vset.pattern.permute.xlu0 4
        %1202 = vperm.xlu0 %1201, %v284
        %v1203 = vpop.permute.xlu0 %1202
        %1204 = vset.pattern.permute.xlu0 4
        %1205 = vperm.xlu0 %1204, %v285
        %v1206 = vpop.permute.xlu0 %1205
        %1207 = vset.pattern.permute.xlu0 4
        %1208 = vperm.xlu0 %1207, %v286
        %v1209 = vpop.permute.xlu0 %1208
        %1210 = vset.pattern.permute.xlu0 4
        %1211 = vperm.xlu0 %1210, %v287
        %v1212 = vpop.permute.xlu0 %1211
        %1213 = vset.pattern.permute.xlu0 4
        %1214 = vperm.xlu0 %1213, %v288
        %v1215 = vpop.permute.xlu0 %1214
        %1216 = vset.pattern.permute.xlu0 4
        %1217 = vperm.xlu0 %1216, %v289
        %v1218 = vpop.permute.xlu0 %1217
        %1219 = vset.pattern.permute.xlu0 4
        %1220 = vperm.xlu0 %1219, %v290
        %v1221 = vpop.permute.xlu0 %1220
        %1222 = vset.pattern.permute.xlu0 4
        %1223 = vperm.xlu0 %1222, %v291
        %v1224 = vpop.permute.xlu0 %1223
        %1225 = vset.pattern.permute.xlu0 4
        %1226 = vperm.xlu0 %1225, %v292
        %v1227 = vpop.permute.xlu0 %1226
        %1228 = vset.pattern.permute.xlu0 4
        %1229 = vperm.xlu0 %1228, %v293
        %v1230 = vpop.permute.xlu0 %1229
        %1231 = vset.pattern.permute.xlu0 4
        %1232 = vperm.xlu0 %1231, %v294
        %v1233 = vpop.permute.xlu0 %1232
        %1234 = vset.pattern.permute.xlu0 4
        %1235 = vperm.xlu0 %1234, %v295
        %v1236 = vpop.permute.xlu0 %1235
        %1237 = vset.pattern.permute.xlu0 4
        %1238 = vperm.xlu0 %1237, %v296
        %v1239 = vpop.permute.xlu0 %1238
        %1240 = vset.pattern.permute.xlu0 4
        %1241 = vperm.xlu0 %1240, %v297
        %v1242 = vpop.permute.xlu0 %1241
        %1243 = vset.pattern.permute.xlu0 4
        %1244 = vperm.xlu0 %1243, %v298
        %v1245 = vpop.permute.xlu0 %1244
        %1246 = vset.pattern.permute.xlu0 4
        %1247 = vperm.xlu0 %1246, %v299
        %v1248 = vpop.permute.xlu0 %1247
        %vm1249 = vcmp.eq.s32.totalorder %v1203, %v301
        %vm1250 = vcmp.eq.s32.totalorder %v1203, %v302
        %vm1251 = vcmp.eq.s32.totalorder %v1203, %v303
        %vm1252 = vcmp.eq.s32.totalorder %v1203, %v304
        %vm1253 = vcmp.eq.s32.totalorder %v1206, %v301
        %vm1254 = vcmp.eq.s32.totalorder %v1206, %v302
        %vm1255 = vcmp.eq.s32.totalorder %v1206, %v303
        %vm1256 = vcmp.eq.s32.totalorder %v1206, %v304
        %vm1257 = vcmp.eq.s32.totalorder %v1209, %v301
        %vm1258 = vcmp.eq.s32.totalorder %v1209, %v302
        %vm1259 = vcmp.eq.s32.totalorder %v1209, %v303
        %vm1260 = vcmp.eq.s32.totalorder %v1209, %v304
        %vm1261 = vcmp.eq.s32.totalorder %v1212, %v301
        %vm1262 = vcmp.eq.s32.totalorder %v1212, %v302
        %vm1263 = vcmp.eq.s32.totalorder %v1212, %v303
        %vm1264 = vcmp.eq.s32.totalorder %v1212, %v304
        %vm1265 = vcmp.eq.s32.totalorder %v1215, %v301
        %vm1266 = vcmp.eq.s32.totalorder %v1215, %v302
        %vm1267 = vcmp.eq.s32.totalorder %v1215, %v303
        %vm1268 = vcmp.eq.s32.totalorder %v1215, %v304
        %vm1269 = vcmp.eq.s32.totalorder %v1218, %v301
        %vm1270 = vcmp.eq.s32.totalorder %v1218, %v302
        %vm1271 = vcmp.eq.s32.totalorder %v1218, %v303
        %vm1272 = vcmp.eq.s32.totalorder %v1218, %v304
        %vm1273 = vcmp.eq.s32.totalorder %v1221, %v301
        %vm1274 = vcmp.eq.s32.totalorder %v1221, %v302
        %vm1275 = vcmp.eq.s32.totalorder %v1221, %v303
        %vm1276 = vcmp.eq.s32.totalorder %v1221, %v304
        %vm1277 = vcmp.eq.s32.totalorder %v1224, %v301
        %vm1278 = vcmp.eq.s32.totalorder %v1224, %v302
        %vm1279 = vcmp.eq.s32.totalorder %v1224, %v303
        %vm1280 = vcmp.eq.s32.totalorder %v1224, %v304
        %vm1281 = vcmp.eq.s32.totalorder %v1227, %v301
        %vm1282 = vcmp.eq.s32.totalorder %v1227, %v302
        %vm1283 = vcmp.eq.s32.totalorder %v1227, %v303
        %vm1284 = vcmp.eq.s32.totalorder %v1227, %v304
        %vm1285 = vcmp.eq.s32.totalorder %v1230, %v301
        %vm1286 = vcmp.eq.s32.totalorder %v1230, %v302
        %vm1287 = vcmp.eq.s32.totalorder %v1230, %v303
        %vm1288 = vcmp.eq.s32.totalorder %v1230, %v304
        %vm1289 = vcmp.eq.s32.totalorder %v1233, %v301
        %vm1290 = vcmp.eq.s32.totalorder %v1233, %v302
        %vm1291 = vcmp.eq.s32.totalorder %v1233, %v303
        %vm1292 = vcmp.eq.s32.totalorder %v1233, %v304
        %vm1293 = vcmp.eq.s32.totalorder %v1236, %v301
        %vm1294 = vcmp.eq.s32.totalorder %v1236, %v302
        %vm1295 = vcmp.eq.s32.totalorder %v1236, %v303
        %vm1296 = vcmp.eq.s32.totalorder %v1236, %v304
        %vm1297 = vcmp.eq.s32.totalorder %v1239, %v301
        %vm1298 = vcmp.eq.s32.totalorder %v1239, %v302
        %vm1299 = vcmp.eq.s32.totalorder %v1239, %v303
        %vm1300 = vcmp.eq.s32.totalorder %v1239, %v304
        %vm1301 = vcmp.eq.s32.totalorder %v1242, %v301
        %vm1302 = vcmp.eq.s32.totalorder %v1242, %v302
        %vm1303 = vcmp.eq.s32.totalorder %v1242, %v303
        %vm1304 = vcmp.eq.s32.totalorder %v1242, %v304
        %vm1305 = vcmp.eq.s32.totalorder %v1245, %v301
        %vm1306 = vcmp.eq.s32.totalorder %v1245, %v302
        %vm1307 = vcmp.eq.s32.totalorder %v1245, %v303
        %vm1308 = vcmp.eq.s32.totalorder %v1245, %v304
        %vm1309 = vcmp.eq.s32.totalorder %v1248, %v301
        %vm1310 = vcmp.eq.s32.totalorder %v1248, %v302
        %vm1311 = vcmp.eq.s32.totalorder %v1248, %v303
        %vm1312 = vcmp.eq.s32.totalorder %v1248, %v304
        %v1313 = vsel %vm1249, 1, 0
        %v1314 = vsel %vm1250, 1, 0
        %v1315 = vsel %vm1251, 1, 0
        %v1316 = vsel %vm1252, 1, 0
        %v1317 = vsel %vm1253, 1, 0
        %v1318 = vsel %vm1254, 1, 0
        %v1319 = vsel %vm1255, 1, 0
        %v1320 = vsel %vm1256, 1, 0
        %v1321 = vsel %vm1257, 1, 0
        %v1322 = vsel %vm1258, 1, 0
        %v1323 = vsel %vm1259, 1, 0
        %v1324 = vsel %vm1260, 1, 0
        %v1325 = vsel %vm1261, 1, 0
        %v1326 = vsel %vm1262, 1, 0
        %v1327 = vsel %vm1263, 1, 0
        %v1328 = vsel %vm1264, 1, 0
        %v1329 = vsel %vm1265, 1, 0
        %v1330 = vsel %vm1266, 1, 0
        %v1331 = vsel %vm1267, 1, 0
        %v1332 = vsel %vm1268, 1, 0
        %v1333 = vsel %vm1269, 1, 0
        %v1334 = vsel %vm1270, 1, 0
        %v1335 = vsel %vm1271, 1, 0
        %v1336 = vsel %vm1272, 1, 0
        %v1337 = vsel %vm1273, 1, 0
        %v1338 = vsel %vm1274, 1, 0
        %v1339 = vsel %vm1275, 1, 0
        %v1340 = vsel %vm1276, 1, 0
        %v1341 = vsel %vm1277, 1, 0
        %v1342 = vsel %vm1278, 1, 0
        %v1343 = vsel %vm1279, 1, 0
        %v1344 = vsel %vm1280, 1, 0
        %v1345 = vsel %vm1281, 1, 0
        %v1346 = vsel %vm1282, 1, 0
        %v1347 = vsel %vm1283, 1, 0
        %v1348 = vsel %vm1284, 1, 0
        %v1349 = vsel %vm1285, 1, 0
        %v1350 = vsel %vm1286, 1, 0
        %v1351 = vsel %vm1287, 1, 0
        %v1352 = vsel %vm1288, 1, 0
        %v1353 = vsel %vm1289, 1, 0
        %v1354 = vsel %vm1290, 1, 0
        %v1355 = vsel %vm1291, 1, 0
        %v1356 = vsel %vm1292, 1, 0
        %v1357 = vsel %vm1293, 1, 0
        %v1358 = vsel %vm1294, 1, 0
        %v1359 = vsel %vm1295, 1, 0
        %v1360 = vsel %vm1296, 1, 0
        %v1361 = vsel %vm1297, 1, 0
        %v1362 = vsel %vm1298, 1, 0
        %v1363 = vsel %vm1299, 1, 0
        %v1364 = vsel %vm1300, 1, 0
        %v1365 = vsel %vm1301, 1, 0
        %v1366 = vsel %vm1302, 1, 0
        %v1367 = vsel %vm1303, 1, 0
        %v1368 = vsel %vm1304, 1, 0
        %v1369 = vsel %vm1305, 1, 0
        %v1370 = vsel %vm1306, 1, 0
        %v1371 = vsel %vm1307, 1, 0
        %v1372 = vsel %vm1308, 1, 0
        %v1373 = vsel %vm1309, 1, 0
        %v1374 = vsel %vm1310, 1, 0
        %v1375 = vsel %vm1311, 1, 0
        %v1376 = vsel %vm1312, 1, 0
        %v1377 = vadd.s32 %v1137, %v1313
        %v1378 = vadd.s32 %v1138, %v1314
        %v1379 = vadd.s32 %v1139, %v1315
        %v1380 = vadd.s32 %v1140, %v1316
        %v1381 = vadd.s32 %v1141, %v1317
        %v1382 = vadd.s32 %v1142, %v1318
        %v1383 = vadd.s32 %v1143, %v1319
        %v1384 = vadd.s32 %v1144, %v1320
        %v1385 = vadd.s32 %v1145, %v1321
        %v1386 = vadd.s32 %v1146, %v1322
        %v1387 = vadd.s32 %v1147, %v1323
        %v1388 = vadd.s32 %v1148, %v1324
        %v1389 = vadd.s32 %v1149, %v1325
        %v1390 = vadd.s32 %v1150, %v1326
        %v1391 = vadd.s32 %v1151, %v1327
        %v1392 = vadd.s32 %v1152, %v1328
        %v1393 = vadd.s32 %v1153, %v1329
        %v1394 = vadd.s32 %v1154, %v1330
        %v1395 = vadd.s32 %v1155, %v1331
        %v1396 = vadd.s32 %v1156, %v1332
        %v1397 = vadd.s32 %v1157, %v1333
        %v1398 = vadd.s32 %v1158, %v1334
        %v1399 = vadd.s32 %v1159, %v1335
        %v1400 = vadd.s32 %v1160, %v1336
        %v1401 = vadd.s32 %v1161, %v1337
        %v1402 = vadd.s32 %v1162, %v1338
        %v1403 = vadd.s32 %v1163, %v1339
        %v1404 = vadd.s32 %v1164, %v1340
        %v1405 = vadd.s32 %v1165, %v1341
        %v1406 = vadd.s32 %v1166, %v1342
        %v1407 = vadd.s32 %v1167, %v1343
        %v1408 = vadd.s32 %v1168, %v1344
        %v1409 = vadd.s32 %v1169, %v1345
        %v1410 = vadd.s32 %v1170, %v1346
        %v1411 = vadd.s32 %v1171, %v1347
        %v1412 = vadd.s32 %v1172, %v1348
        %v1413 = vadd.s32 %v1173, %v1349
        %v1414 = vadd.s32 %v1174, %v1350
        %v1415 = vadd.s32 %v1175, %v1351
        %v1416 = vadd.s32 %v1176, %v1352
        %v1417 = vadd.s32 %v1177, %v1353
        %v1418 = vadd.s32 %v1178, %v1354
        %v1419 = vadd.s32 %v1179, %v1355
        %v1420 = vadd.s32 %v1180, %v1356
        %v1421 = vadd.s32 %v1181, %v1357
        %v1422 = vadd.s32 %v1182, %v1358
        %v1423 = vadd.s32 %v1183, %v1359
        %v1424 = vadd.s32 %v1184, %v1360
        %v1425 = vadd.s32 %v1185, %v1361
        %v1426 = vadd.s32 %v1186, %v1362
        %v1427 = vadd.s32 %v1187, %v1363
        %v1428 = vadd.s32 %v1188, %v1364
        %v1429 = vadd.s32 %v1189, %v1365
        %v1430 = vadd.s32 %v1190, %v1366
        %v1431 = vadd.s32 %v1191, %v1367
        %v1432 = vadd.s32 %v1192, %v1368
        %v1433 = vadd.s32 %v1193, %v1369
        %v1434 = vadd.s32 %v1194, %v1370
        %v1435 = vadd.s32 %v1195, %v1371
        %v1436 = vadd.s32 %v1196, %v1372
        %v1437 = vadd.s32 %v1197, %v1373
        %v1438 = vadd.s32 %v1198, %v1374
        %v1439 = vadd.s32 %v1199, %v1375
        %v1440 = vadd.s32 %v1200, %v1376
        %1441 = vset.pattern.permute.xlu0 5
        %1442 = vperm.xlu0 %1441, %v284
        %v1443 = vpop.permute.xlu0 %1442
        %1444 = vset.pattern.permute.xlu0 5
        %1445 = vperm.xlu0 %1444, %v285
        %v1446 = vpop.permute.xlu0 %1445
        %1447 = vset.pattern.permute.xlu0 5
        %1448 = vperm.xlu0 %1447, %v286
        %v1449 = vpop.permute.xlu0 %1448
        %1450 = vset.pattern.permute.xlu0 5
        %1451 = vperm.xlu0 %1450, %v287
        %v1452 = vpop.permute.xlu0 %1451
        %1453 = vset.pattern.permute.xlu0 5
        %1454 = vperm.xlu0 %1453, %v288
        %v1455 = vpop.permute.xlu0 %1454
        %1456 = vset.pattern.permute.xlu0 5
        %1457 = vperm.xlu0 %1456, %v289
        %v1458 = vpop.permute.xlu0 %1457
        %1459 = vset.pattern.permute.xlu0 5
        %1460 = vperm.xlu0 %1459, %v290
        %v1461 = vpop.permute.xlu0 %1460
        %1462 = vset.pattern.permute.xlu0 5
        %1463 = vperm.xlu0 %1462, %v291
        %v1464 = vpop.permute.xlu0 %1463
        %1465 = vset.pattern.permute.xlu0 5
        %1466 = vperm.xlu0 %1465, %v292
        %v1467 = vpop.permute.xlu0 %1466
        %1468 = vset.pattern.permute.xlu0 5
        %1469 = vperm.xlu0 %1468, %v293
        %v1470 = vpop.permute.xlu0 %1469
        %1471 = vset.pattern.permute.xlu0 5
        %1472 = vperm.xlu0 %1471, %v294
        %v1473 = vpop.permute.xlu0 %1472
        %1474 = vset.pattern.permute.xlu0 5
        %1475 = vperm.xlu0 %1474, %v295
        %v1476 = vpop.permute.xlu0 %1475
        %1477 = vset.pattern.permute.xlu0 5
        %1478 = vperm.xlu0 %1477, %v296
        %v1479 = vpop.permute.xlu0 %1478
        %1480 = vset.pattern.permute.xlu0 5
        %1481 = vperm.xlu0 %1480, %v297
        %v1482 = vpop.permute.xlu0 %1481
        %1483 = vset.pattern.permute.xlu0 5
        %1484 = vperm.xlu0 %1483, %v298
        %v1485 = vpop.permute.xlu0 %1484
        %1486 = vset.pattern.permute.xlu0 5
        %1487 = vperm.xlu0 %1486, %v299
        %v1488 = vpop.permute.xlu0 %1487
        %vm1489 = vcmp.eq.s32.totalorder %v1443, %v301
        %vm1490 = vcmp.eq.s32.totalorder %v1443, %v302
        %vm1491 = vcmp.eq.s32.totalorder %v1443, %v303
        %vm1492 = vcmp.eq.s32.totalorder %v1443, %v304
        %vm1493 = vcmp.eq.s32.totalorder %v1446, %v301
        %vm1494 = vcmp.eq.s32.totalorder %v1446, %v302
        %vm1495 = vcmp.eq.s32.totalorder %v1446, %v303
        %vm1496 = vcmp.eq.s32.totalorder %v1446, %v304
        %vm1497 = vcmp.eq.s32.totalorder %v1449, %v301
        %vm1498 = vcmp.eq.s32.totalorder %v1449, %v302
        %vm1499 = vcmp.eq.s32.totalorder %v1449, %v303
        %vm1500 = vcmp.eq.s32.totalorder %v1449, %v304
        %vm1501 = vcmp.eq.s32.totalorder %v1452, %v301
        %vm1502 = vcmp.eq.s32.totalorder %v1452, %v302
        %vm1503 = vcmp.eq.s32.totalorder %v1452, %v303
        %vm1504 = vcmp.eq.s32.totalorder %v1452, %v304
        %vm1505 = vcmp.eq.s32.totalorder %v1455, %v301
        %vm1506 = vcmp.eq.s32.totalorder %v1455, %v302
        %vm1507 = vcmp.eq.s32.totalorder %v1455, %v303
        %vm1508 = vcmp.eq.s32.totalorder %v1455, %v304
        %vm1509 = vcmp.eq.s32.totalorder %v1458, %v301
        %vm1510 = vcmp.eq.s32.totalorder %v1458, %v302
        %vm1511 = vcmp.eq.s32.totalorder %v1458, %v303
        %vm1512 = vcmp.eq.s32.totalorder %v1458, %v304
        %vm1513 = vcmp.eq.s32.totalorder %v1461, %v301
        %vm1514 = vcmp.eq.s32.totalorder %v1461, %v302
        %vm1515 = vcmp.eq.s32.totalorder %v1461, %v303
        %vm1516 = vcmp.eq.s32.totalorder %v1461, %v304
        %vm1517 = vcmp.eq.s32.totalorder %v1464, %v301
        %vm1518 = vcmp.eq.s32.totalorder %v1464, %v302
        %vm1519 = vcmp.eq.s32.totalorder %v1464, %v303
        %vm1520 = vcmp.eq.s32.totalorder %v1464, %v304
        %vm1521 = vcmp.eq.s32.totalorder %v1467, %v301
        %vm1522 = vcmp.eq.s32.totalorder %v1467, %v302
        %vm1523 = vcmp.eq.s32.totalorder %v1467, %v303
        %vm1524 = vcmp.eq.s32.totalorder %v1467, %v304
        %vm1525 = vcmp.eq.s32.totalorder %v1470, %v301
        %vm1526 = vcmp.eq.s32.totalorder %v1470, %v302
        %vm1527 = vcmp.eq.s32.totalorder %v1470, %v303
        %vm1528 = vcmp.eq.s32.totalorder %v1470, %v304
        %vm1529 = vcmp.eq.s32.totalorder %v1473, %v301
        %vm1530 = vcmp.eq.s32.totalorder %v1473, %v302
        %vm1531 = vcmp.eq.s32.totalorder %v1473, %v303
        %vm1532 = vcmp.eq.s32.totalorder %v1473, %v304
        %vm1533 = vcmp.eq.s32.totalorder %v1476, %v301
        %vm1534 = vcmp.eq.s32.totalorder %v1476, %v302
        %vm1535 = vcmp.eq.s32.totalorder %v1476, %v303
        %vm1536 = vcmp.eq.s32.totalorder %v1476, %v304
        %vm1537 = vcmp.eq.s32.totalorder %v1479, %v301
        %vm1538 = vcmp.eq.s32.totalorder %v1479, %v302
        %vm1539 = vcmp.eq.s32.totalorder %v1479, %v303
        %vm1540 = vcmp.eq.s32.totalorder %v1479, %v304
        %vm1541 = vcmp.eq.s32.totalorder %v1482, %v301
        %vm1542 = vcmp.eq.s32.totalorder %v1482, %v302
        %vm1543 = vcmp.eq.s32.totalorder %v1482, %v303
        %vm1544 = vcmp.eq.s32.totalorder %v1482, %v304
        %vm1545 = vcmp.eq.s32.totalorder %v1485, %v301
        %vm1546 = vcmp.eq.s32.totalorder %v1485, %v302
        %vm1547 = vcmp.eq.s32.totalorder %v1485, %v303
        %vm1548 = vcmp.eq.s32.totalorder %v1485, %v304
        %vm1549 = vcmp.eq.s32.totalorder %v1488, %v301
        %vm1550 = vcmp.eq.s32.totalorder %v1488, %v302
        %vm1551 = vcmp.eq.s32.totalorder %v1488, %v303
        %vm1552 = vcmp.eq.s32.totalorder %v1488, %v304
        %v1553 = vsel %vm1489, 1, 0
        %v1554 = vsel %vm1490, 1, 0
        %v1555 = vsel %vm1491, 1, 0
        %v1556 = vsel %vm1492, 1, 0
        %v1557 = vsel %vm1493, 1, 0
        %v1558 = vsel %vm1494, 1, 0
        %v1559 = vsel %vm1495, 1, 0
        %v1560 = vsel %vm1496, 1, 0
        %v1561 = vsel %vm1497, 1, 0
        %v1562 = vsel %vm1498, 1, 0
        %v1563 = vsel %vm1499, 1, 0
        %v1564 = vsel %vm1500, 1, 0
        %v1565 = vsel %vm1501, 1, 0
        %v1566 = vsel %vm1502, 1, 0
        %v1567 = vsel %vm1503, 1, 0
        %v1568 = vsel %vm1504, 1, 0
        %v1569 = vsel %vm1505, 1, 0
        %v1570 = vsel %vm1506, 1, 0
        %v1571 = vsel %vm1507, 1, 0
        %v1572 = vsel %vm1508, 1, 0
        %v1573 = vsel %vm1509, 1, 0
        %v1574 = vsel %vm1510, 1, 0
        %v1575 = vsel %vm1511, 1, 0
        %v1576 = vsel %vm1512, 1, 0
        %v1577 = vsel %vm1513, 1, 0
        %v1578 = vsel %vm1514, 1, 0
        %v1579 = vsel %vm1515, 1, 0
        %v1580 = vsel %vm1516, 1, 0
        %v1581 = vsel %vm1517, 1, 0
        %v1582 = vsel %vm1518, 1, 0
        %v1583 = vsel %vm1519, 1, 0
        %v1584 = vsel %vm1520, 1, 0
        %v1585 = vsel %vm1521, 1, 0
        %v1586 = vsel %vm1522, 1, 0
        %v1587 = vsel %vm1523, 1, 0
        %v1588 = vsel %vm1524, 1, 0
        %v1589 = vsel %vm1525, 1, 0
        %v1590 = vsel %vm1526, 1, 0
        %v1591 = vsel %vm1527, 1, 0
        %v1592 = vsel %vm1528, 1, 0
        %v1593 = vsel %vm1529, 1, 0
        %v1594 = vsel %vm1530, 1, 0
        %v1595 = vsel %vm1531, 1, 0
        %v1596 = vsel %vm1532, 1, 0
        %v1597 = vsel %vm1533, 1, 0
        %v1598 = vsel %vm1534, 1, 0
        %v1599 = vsel %vm1535, 1, 0
        %v1600 = vsel %vm1536, 1, 0
        %v1601 = vsel %vm1537, 1, 0
        %v1602 = vsel %vm1538, 1, 0
        %v1603 = vsel %vm1539, 1, 0
        %v1604 = vsel %vm1540, 1, 0
        %v1605 = vsel %vm1541, 1, 0
        %v1606 = vsel %vm1542, 1, 0
        %v1607 = vsel %vm1543, 1, 0
        %v1608 = vsel %vm1544, 1, 0
        %v1609 = vsel %vm1545, 1, 0
        %v1610 = vsel %vm1546, 1, 0
        %v1611 = vsel %vm1547, 1, 0
        %v1612 = vsel %vm1548, 1, 0
        %v1613 = vsel %vm1549, 1, 0
        %v1614 = vsel %vm1550, 1, 0
        %v1615 = vsel %vm1551, 1, 0
        %v1616 = vsel %vm1552, 1, 0
        %v1617 = vadd.s32 %v1377, %v1553
        %v1618 = vadd.s32 %v1378, %v1554
        %v1619 = vadd.s32 %v1379, %v1555
        %v1620 = vadd.s32 %v1380, %v1556
        %v1621 = vadd.s32 %v1381, %v1557
        %v1622 = vadd.s32 %v1382, %v1558
        %v1623 = vadd.s32 %v1383, %v1559
        %v1624 = vadd.s32 %v1384, %v1560
        %v1625 = vadd.s32 %v1385, %v1561
        %v1626 = vadd.s32 %v1386, %v1562
        %v1627 = vadd.s32 %v1387, %v1563
        %v1628 = vadd.s32 %v1388, %v1564
        %v1629 = vadd.s32 %v1389, %v1565
        %v1630 = vadd.s32 %v1390, %v1566
        %v1631 = vadd.s32 %v1391, %v1567
        %v1632 = vadd.s32 %v1392, %v1568
        %v1633 = vadd.s32 %v1393, %v1569
        %v1634 = vadd.s32 %v1394, %v1570
        %v1635 = vadd.s32 %v1395, %v1571
        %v1636 = vadd.s32 %v1396, %v1572
        %v1637 = vadd.s32 %v1397, %v1573
        %v1638 = vadd.s32 %v1398, %v1574
        %v1639 = vadd.s32 %v1399, %v1575
        %v1640 = vadd.s32 %v1400, %v1576
        %v1641 = vadd.s32 %v1401, %v1577
        %v1642 = vadd.s32 %v1402, %v1578
        %v1643 = vadd.s32 %v1403, %v1579
        %v1644 = vadd.s32 %v1404, %v1580
        %v1645 = vadd.s32 %v1405, %v1581
        %v1646 = vadd.s32 %v1406, %v1582
        %v1647 = vadd.s32 %v1407, %v1583
        %v1648 = vadd.s32 %v1408, %v1584
        %v1649 = vadd.s32 %v1409, %v1585
        %v1650 = vadd.s32 %v1410, %v1586
        %v1651 = vadd.s32 %v1411, %v1587
        %v1652 = vadd.s32 %v1412, %v1588
        %v1653 = vadd.s32 %v1413, %v1589
        %v1654 = vadd.s32 %v1414, %v1590
        %v1655 = vadd.s32 %v1415, %v1591
        %v1656 = vadd.s32 %v1416, %v1592
        %v1657 = vadd.s32 %v1417, %v1593
        %v1658 = vadd.s32 %v1418, %v1594
        %v1659 = vadd.s32 %v1419, %v1595
        %v1660 = vadd.s32 %v1420, %v1596
        %v1661 = vadd.s32 %v1421, %v1597
        %v1662 = vadd.s32 %v1422, %v1598
        %v1663 = vadd.s32 %v1423, %v1599
        %v1664 = vadd.s32 %v1424, %v1600
        %v1665 = vadd.s32 %v1425, %v1601
        %v1666 = vadd.s32 %v1426, %v1602
        %v1667 = vadd.s32 %v1427, %v1603
        %v1668 = vadd.s32 %v1428, %v1604
        %v1669 = vadd.s32 %v1429, %v1605
        %v1670 = vadd.s32 %v1430, %v1606
        %v1671 = vadd.s32 %v1431, %v1607
        %v1672 = vadd.s32 %v1432, %v1608
        %v1673 = vadd.s32 %v1433, %v1609
        %v1674 = vadd.s32 %v1434, %v1610
        %v1675 = vadd.s32 %v1435, %v1611
        %v1676 = vadd.s32 %v1436, %v1612
        %v1677 = vadd.s32 %v1437, %v1613
        %v1678 = vadd.s32 %v1438, %v1614
        %v1679 = vadd.s32 %v1439, %v1615
        %v1680 = vadd.s32 %v1440, %v1616
        %1681 = vset.pattern.permute.xlu0 6
        %1682 = vperm.xlu0 %1681, %v284
        %v1683 = vpop.permute.xlu0 %1682
        %1684 = vset.pattern.permute.xlu0 6
        %1685 = vperm.xlu0 %1684, %v285
        %v1686 = vpop.permute.xlu0 %1685
        %1687 = vset.pattern.permute.xlu0 6
        %1688 = vperm.xlu0 %1687, %v286
        %v1689 = vpop.permute.xlu0 %1688
        %1690 = vset.pattern.permute.xlu0 6
        %1691 = vperm.xlu0 %1690, %v287
        %v1692 = vpop.permute.xlu0 %1691
        %1693 = vset.pattern.permute.xlu0 6
        %1694 = vperm.xlu0 %1693, %v288
        %v1695 = vpop.permute.xlu0 %1694
        %1696 = vset.pattern.permute.xlu0 6
        %1697 = vperm.xlu0 %1696, %v289
        %v1698 = vpop.permute.xlu0 %1697
        %1699 = vset.pattern.permute.xlu0 6
        %1700 = vperm.xlu0 %1699, %v290
        %v1701 = vpop.permute.xlu0 %1700
        %1702 = vset.pattern.permute.xlu0 6
        %1703 = vperm.xlu0 %1702, %v291
        %v1704 = vpop.permute.xlu0 %1703
        %1705 = vset.pattern.permute.xlu0 6
        %1706 = vperm.xlu0 %1705, %v292
        %v1707 = vpop.permute.xlu0 %1706
        %1708 = vset.pattern.permute.xlu0 6
        %1709 = vperm.xlu0 %1708, %v293
        %v1710 = vpop.permute.xlu0 %1709
        %1711 = vset.pattern.permute.xlu0 6
        %1712 = vperm.xlu0 %1711, %v294
        %v1713 = vpop.permute.xlu0 %1712
        %1714 = vset.pattern.permute.xlu0 6
        %1715 = vperm.xlu0 %1714, %v295
        %v1716 = vpop.permute.xlu0 %1715
        %1717 = vset.pattern.permute.xlu0 6
        %1718 = vperm.xlu0 %1717, %v296
        %v1719 = vpop.permute.xlu0 %1718
        %1720 = vset.pattern.permute.xlu0 6
        %1721 = vperm.xlu0 %1720, %v297
        %v1722 = vpop.permute.xlu0 %1721
        %1723 = vset.pattern.permute.xlu0 6
        %1724 = vperm.xlu0 %1723, %v298
        %v1725 = vpop.permute.xlu0 %1724
        %1726 = vset.pattern.permute.xlu0 6
        %1727 = vperm.xlu0 %1726, %v299
        %v1728 = vpop.permute.xlu0 %1727
        %vm1729 = vcmp.eq.s32.totalorder %v1683, %v301
        %vm1730 = vcmp.eq.s32.totalorder %v1683, %v302
        %vm1731 = vcmp.eq.s32.totalorder %v1683, %v303
        %vm1732 = vcmp.eq.s32.totalorder %v1683, %v304
        %vm1733 = vcmp.eq.s32.totalorder %v1686, %v301
        %vm1734 = vcmp.eq.s32.totalorder %v1686, %v302
        %vm1735 = vcmp.eq.s32.totalorder %v1686, %v303
        %vm1736 = vcmp.eq.s32.totalorder %v1686, %v304
        %vm1737 = vcmp.eq.s32.totalorder %v1689, %v301
        %vm1738 = vcmp.eq.s32.totalorder %v1689, %v302
        %vm1739 = vcmp.eq.s32.totalorder %v1689, %v303
        %vm1740 = vcmp.eq.s32.totalorder %v1689, %v304
        %vm1741 = vcmp.eq.s32.totalorder %v1692, %v301
        %vm1742 = vcmp.eq.s32.totalorder %v1692, %v302
        %vm1743 = vcmp.eq.s32.totalorder %v1692, %v303
        %vm1744 = vcmp.eq.s32.totalorder %v1692, %v304
        %vm1745 = vcmp.eq.s32.totalorder %v1695, %v301
        %vm1746 = vcmp.eq.s32.totalorder %v1695, %v302
        %vm1747 = vcmp.eq.s32.totalorder %v1695, %v303
        %vm1748 = vcmp.eq.s32.totalorder %v1695, %v304
        %vm1749 = vcmp.eq.s32.totalorder %v1698, %v301
        %vm1750 = vcmp.eq.s32.totalorder %v1698, %v302
        %vm1751 = vcmp.eq.s32.totalorder %v1698, %v303
        %vm1752 = vcmp.eq.s32.totalorder %v1698, %v304
        %vm1753 = vcmp.eq.s32.totalorder %v1701, %v301
        %vm1754 = vcmp.eq.s32.totalorder %v1701, %v302
        %vm1755 = vcmp.eq.s32.totalorder %v1701, %v303
        %vm1756 = vcmp.eq.s32.totalorder %v1701, %v304
        %vm1757 = vcmp.eq.s32.totalorder %v1704, %v301
        %vm1758 = vcmp.eq.s32.totalorder %v1704, %v302
        %vm1759 = vcmp.eq.s32.totalorder %v1704, %v303
        %vm1760 = vcmp.eq.s32.totalorder %v1704, %v304
        %vm1761 = vcmp.eq.s32.totalorder %v1707, %v301
        %vm1762 = vcmp.eq.s32.totalorder %v1707, %v302
        %vm1763 = vcmp.eq.s32.totalorder %v1707, %v303
        %vm1764 = vcmp.eq.s32.totalorder %v1707, %v304
        %vm1765 = vcmp.eq.s32.totalorder %v1710, %v301
        %vm1766 = vcmp.eq.s32.totalorder %v1710, %v302
        %vm1767 = vcmp.eq.s32.totalorder %v1710, %v303
        %vm1768 = vcmp.eq.s32.totalorder %v1710, %v304
        %vm1769 = vcmp.eq.s32.totalorder %v1713, %v301
        %vm1770 = vcmp.eq.s32.totalorder %v1713, %v302
        %vm1771 = vcmp.eq.s32.totalorder %v1713, %v303
        %vm1772 = vcmp.eq.s32.totalorder %v1713, %v304
        %vm1773 = vcmp.eq.s32.totalorder %v1716, %v301
        %vm1774 = vcmp.eq.s32.totalorder %v1716, %v302
        %vm1775 = vcmp.eq.s32.totalorder %v1716, %v303
        %vm1776 = vcmp.eq.s32.totalorder %v1716, %v304
        %vm1777 = vcmp.eq.s32.totalorder %v1719, %v301
        %vm1778 = vcmp.eq.s32.totalorder %v1719, %v302
        %vm1779 = vcmp.eq.s32.totalorder %v1719, %v303
        %vm1780 = vcmp.eq.s32.totalorder %v1719, %v304
        %vm1781 = vcmp.eq.s32.totalorder %v1722, %v301
        %vm1782 = vcmp.eq.s32.totalorder %v1722, %v302
        %vm1783 = vcmp.eq.s32.totalorder %v1722, %v303
        %vm1784 = vcmp.eq.s32.totalorder %v1722, %v304
        %vm1785 = vcmp.eq.s32.totalorder %v1725, %v301
        %vm1786 = vcmp.eq.s32.totalorder %v1725, %v302
        %vm1787 = vcmp.eq.s32.totalorder %v1725, %v303
        %vm1788 = vcmp.eq.s32.totalorder %v1725, %v304
        %vm1789 = vcmp.eq.s32.totalorder %v1728, %v301
        %vm1790 = vcmp.eq.s32.totalorder %v1728, %v302
        %vm1791 = vcmp.eq.s32.totalorder %v1728, %v303
        %vm1792 = vcmp.eq.s32.totalorder %v1728, %v304
        %v1793 = vsel %vm1729, 1, 0
        %v1794 = vsel %vm1730, 1, 0
        %v1795 = vsel %vm1731, 1, 0
        %v1796 = vsel %vm1732, 1, 0
        %v1797 = vsel %vm1733, 1, 0
        %v1798 = vsel %vm1734, 1, 0
        %v1799 = vsel %vm1735, 1, 0
        %v1800 = vsel %vm1736, 1, 0
        %v1801 = vsel %vm1737, 1, 0
        %v1802 = vsel %vm1738, 1, 0
        %v1803 = vsel %vm1739, 1, 0
        %v1804 = vsel %vm1740, 1, 0
        %v1805 = vsel %vm1741, 1, 0
        %v1806 = vsel %vm1742, 1, 0
        %v1807 = vsel %vm1743, 1, 0
        %v1808 = vsel %vm1744, 1, 0
        %v1809 = vsel %vm1745, 1, 0
        %v1810 = vsel %vm1746, 1, 0
        %v1811 = vsel %vm1747, 1, 0
        %v1812 = vsel %vm1748, 1, 0
        %v1813 = vsel %vm1749, 1, 0
        %v1814 = vsel %vm1750, 1, 0
        %v1815 = vsel %vm1751, 1, 0
        %v1816 = vsel %vm1752, 1, 0
        %v1817 = vsel %vm1753, 1, 0
        %v1818 = vsel %vm1754, 1, 0
        %v1819 = vsel %vm1755, 1, 0
        %v1820 = vsel %vm1756, 1, 0
        %v1821 = vsel %vm1757, 1, 0
        %v1822 = vsel %vm1758, 1, 0
        %v1823 = vsel %vm1759, 1, 0
        %v1824 = vsel %vm1760, 1, 0
        %v1825 = vsel %vm1761, 1, 0
        %v1826 = vsel %vm1762, 1, 0
        %v1827 = vsel %vm1763, 1, 0
        %v1828 = vsel %vm1764, 1, 0
        %v1829 = vsel %vm1765, 1, 0
        %v1830 = vsel %vm1766, 1, 0
        %v1831 = vsel %vm1767, 1, 0
        %v1832 = vsel %vm1768, 1, 0
        %v1833 = vsel %vm1769, 1, 0
        %v1834 = vsel %vm1770, 1, 0
        %v1835 = vsel %vm1771, 1, 0
        %v1836 = vsel %vm1772, 1, 0
        %v1837 = vsel %vm1773, 1, 0
        %v1838 = vsel %vm1774, 1, 0
        %v1839 = vsel %vm1775, 1, 0
        %v1840 = vsel %vm1776, 1, 0
        %v1841 = vsel %vm1777, 1, 0
        %v1842 = vsel %vm1778, 1, 0
        %v1843 = vsel %vm1779, 1, 0
        %v1844 = vsel %vm1780, 1, 0
        %v1845 = vsel %vm1781, 1, 0
        %v1846 = vsel %vm1782, 1, 0
        %v1847 = vsel %vm1783, 1, 0
        %v1848 = vsel %vm1784, 1, 0
        %v1849 = vsel %vm1785, 1, 0
        %v1850 = vsel %vm1786, 1, 0
        %v1851 = vsel %vm1787, 1, 0
        %v1852 = vsel %vm1788, 1, 0
        %v1853 = vsel %vm1789, 1, 0
        %v1854 = vsel %vm1790, 1, 0
        %v1855 = vsel %vm1791, 1, 0
        %v1856 = vsel %vm1792, 1, 0
        %v1857 = vadd.s32 %v1617, %v1793
        %v1858 = vadd.s32 %v1618, %v1794
        %v1859 = vadd.s32 %v1619, %v1795
        %v1860 = vadd.s32 %v1620, %v1796
        %v1861 = vadd.s32 %v1621, %v1797
        %v1862 = vadd.s32 %v1622, %v1798
        %v1863 = vadd.s32 %v1623, %v1799
        %v1864 = vadd.s32 %v1624, %v1800
        %v1865 = vadd.s32 %v1625, %v1801
        %v1866 = vadd.s32 %v1626, %v1802
        %v1867 = vadd.s32 %v1627, %v1803
        %v1868 = vadd.s32 %v1628, %v1804
        %v1869 = vadd.s32 %v1629, %v1805
        %v1870 = vadd.s32 %v1630, %v1806
        %v1871 = vadd.s32 %v1631, %v1807
        %v1872 = vadd.s32 %v1632, %v1808
        %v1873 = vadd.s32 %v1633, %v1809
        %v1874 = vadd.s32 %v1634, %v1810
        %v1875 = vadd.s32 %v1635, %v1811
        %v1876 = vadd.s32 %v1636, %v1812
        %v1877 = vadd.s32 %v1637, %v1813
        %v1878 = vadd.s32 %v1638, %v1814
        %v1879 = vadd.s32 %v1639, %v1815
        %v1880 = vadd.s32 %v1640, %v1816
        %v1881 = vadd.s32 %v1641, %v1817
        %v1882 = vadd.s32 %v1642, %v1818
        %v1883 = vadd.s32 %v1643, %v1819
        %v1884 = vadd.s32 %v1644, %v1820
        %v1885 = vadd.s32 %v1645, %v1821
        %v1886 = vadd.s32 %v1646, %v1822
        %v1887 = vadd.s32 %v1647, %v1823
        %v1888 = vadd.s32 %v1648, %v1824
        %v1889 = vadd.s32 %v1649, %v1825
        %v1890 = vadd.s32 %v1650, %v1826
        %v1891 = vadd.s32 %v1651, %v1827
        %v1892 = vadd.s32 %v1652, %v1828
        %v1893 = vadd.s32 %v1653, %v1829
        %v1894 = vadd.s32 %v1654, %v1830
        %v1895 = vadd.s32 %v1655, %v1831
        %v1896 = vadd.s32 %v1656, %v1832
        %v1897 = vadd.s32 %v1657, %v1833
        %v1898 = vadd.s32 %v1658, %v1834
        %v1899 = vadd.s32 %v1659, %v1835
        %v1900 = vadd.s32 %v1660, %v1836
        %v1901 = vadd.s32 %v1661, %v1837
        %v1902 = vadd.s32 %v1662, %v1838
        %v1903 = vadd.s32 %v1663, %v1839
        %v1904 = vadd.s32 %v1664, %v1840
        %v1905 = vadd.s32 %v1665, %v1841
        %v1906 = vadd.s32 %v1666, %v1842
        %v1907 = vadd.s32 %v1667, %v1843
        %v1908 = vadd.s32 %v1668, %v1844
        %v1909 = vadd.s32 %v1669, %v1845
        %v1910 = vadd.s32 %v1670, %v1846
        %v1911 = vadd.s32 %v1671, %v1847
        %v1912 = vadd.s32 %v1672, %v1848
        %v1913 = vadd.s32 %v1673, %v1849
        %v1914 = vadd.s32 %v1674, %v1850
        %v1915 = vadd.s32 %v1675, %v1851
        %v1916 = vadd.s32 %v1676, %v1852
        %v1917 = vadd.s32 %v1677, %v1853
        %v1918 = vadd.s32 %v1678, %v1854
        %v1919 = vadd.s32 %v1679, %v1855
        %v1920 = vadd.s32 %v1680, %v1856
        %1921 = vset.pattern.permute.xlu0 7
        %1922 = vperm.xlu0 %1921, %v284
        %v1923 = vpop.permute.xlu0 %1922
        %1924 = vset.pattern.permute.xlu0 7
        %1925 = vperm.xlu0 %1924, %v285
        %v1926 = vpop.permute.xlu0 %1925
        %1927 = vset.pattern.permute.xlu0 7
        %1928 = vperm.xlu0 %1927, %v286
        %v1929 = vpop.permute.xlu0 %1928
        %1930 = vset.pattern.permute.xlu0 7
        %1931 = vperm.xlu0 %1930, %v287
        %v1932 = vpop.permute.xlu0 %1931
        %1933 = vset.pattern.permute.xlu0 7
        %1934 = vperm.xlu0 %1933, %v288
        %v1935 = vpop.permute.xlu0 %1934
        %1936 = vset.pattern.permute.xlu0 7
        %1937 = vperm.xlu0 %1936, %v289
        %v1938 = vpop.permute.xlu0 %1937
        %1939 = vset.pattern.permute.xlu0 7
        %1940 = vperm.xlu0 %1939, %v290
        %v1941 = vpop.permute.xlu0 %1940
        %1942 = vset.pattern.permute.xlu0 7
        %1943 = vperm.xlu0 %1942, %v291
        %v1944 = vpop.permute.xlu0 %1943
        %1945 = vset.pattern.permute.xlu0 7
        %1946 = vperm.xlu0 %1945, %v292
        %v1947 = vpop.permute.xlu0 %1946
        %1948 = vset.pattern.permute.xlu0 7
        %1949 = vperm.xlu0 %1948, %v293
        %v1950 = vpop.permute.xlu0 %1949
        %1951 = vset.pattern.permute.xlu0 7
        %1952 = vperm.xlu0 %1951, %v294
        %v1953 = vpop.permute.xlu0 %1952
        %1954 = vset.pattern.permute.xlu0 7
        %1955 = vperm.xlu0 %1954, %v295
        %v1956 = vpop.permute.xlu0 %1955
        %1957 = vset.pattern.permute.xlu0 7
        %1958 = vperm.xlu0 %1957, %v296
        %v1959 = vpop.permute.xlu0 %1958
        %1960 = vset.pattern.permute.xlu0 7
        %1961 = vperm.xlu0 %1960, %v297
        %v1962 = vpop.permute.xlu0 %1961
        %1963 = vset.pattern.permute.xlu0 7
        %1964 = vperm.xlu0 %1963, %v298
        %v1965 = vpop.permute.xlu0 %1964
        %1966 = vset.pattern.permute.xlu0 7
        %1967 = vperm.xlu0 %1966, %v299
        %v1968 = vpop.permute.xlu0 %1967
        %vm1969 = vcmp.eq.s32.totalorder %v1923, %v301
        %vm1970 = vcmp.eq.s32.totalorder %v1923, %v302
        %vm1971 = vcmp.eq.s32.totalorder %v1923, %v303
        %vm1972 = vcmp.eq.s32.totalorder %v1923, %v304
        %vm1973 = vcmp.eq.s32.totalorder %v1926, %v301
        %vm1974 = vcmp.eq.s32.totalorder %v1926, %v302
        %vm1975 = vcmp.eq.s32.totalorder %v1926, %v303
        %vm1976 = vcmp.eq.s32.totalorder %v1926, %v304
        %vm1977 = vcmp.eq.s32.totalorder %v1929, %v301
        %vm1978 = vcmp.eq.s32.totalorder %v1929, %v302
        %vm1979 = vcmp.eq.s32.totalorder %v1929, %v303
        %vm1980 = vcmp.eq.s32.totalorder %v1929, %v304
        %vm1981 = vcmp.eq.s32.totalorder %v1932, %v301
        %vm1982 = vcmp.eq.s32.totalorder %v1932, %v302
        %vm1983 = vcmp.eq.s32.totalorder %v1932, %v303
        %vm1984 = vcmp.eq.s32.totalorder %v1932, %v304
        %vm1985 = vcmp.eq.s32.totalorder %v1935, %v301
        %vm1986 = vcmp.eq.s32.totalorder %v1935, %v302
        %vm1987 = vcmp.eq.s32.totalorder %v1935, %v303
        %vm1988 = vcmp.eq.s32.totalorder %v1935, %v304
        %vm1989 = vcmp.eq.s32.totalorder %v1938, %v301
        %vm1990 = vcmp.eq.s32.totalorder %v1938, %v302
        %vm1991 = vcmp.eq.s32.totalorder %v1938, %v303
        %vm1992 = vcmp.eq.s32.totalorder %v1938, %v304
        %vm1993 = vcmp.eq.s32.totalorder %v1941, %v301
        %vm1994 = vcmp.eq.s32.totalorder %v1941, %v302
        %vm1995 = vcmp.eq.s32.totalorder %v1941, %v303
        %vm1996 = vcmp.eq.s32.totalorder %v1941, %v304
        %vm1997 = vcmp.eq.s32.totalorder %v1944, %v301
        %vm1998 = vcmp.eq.s32.totalorder %v1944, %v302
        %vm1999 = vcmp.eq.s32.totalorder %v1944, %v303
        %vm2000 = vcmp.eq.s32.totalorder %v1944, %v304
        %vm2001 = vcmp.eq.s32.totalorder %v1947, %v301
        %vm2002 = vcmp.eq.s32.totalorder %v1947, %v302
        %vm2003 = vcmp.eq.s32.totalorder %v1947, %v303
        %vm2004 = vcmp.eq.s32.totalorder %v1947, %v304
        %vm2005 = vcmp.eq.s32.totalorder %v1950, %v301
        %vm2006 = vcmp.eq.s32.totalorder %v1950, %v302
        %vm2007 = vcmp.eq.s32.totalorder %v1950, %v303
        %vm2008 = vcmp.eq.s32.totalorder %v1950, %v304
        %vm2009 = vcmp.eq.s32.totalorder %v1953, %v301
        %vm2010 = vcmp.eq.s32.totalorder %v1953, %v302
        %vm2011 = vcmp.eq.s32.totalorder %v1953, %v303
        %vm2012 = vcmp.eq.s32.totalorder %v1953, %v304
        %vm2013 = vcmp.eq.s32.totalorder %v1956, %v301
        %vm2014 = vcmp.eq.s32.totalorder %v1956, %v302
        %vm2015 = vcmp.eq.s32.totalorder %v1956, %v303
        %vm2016 = vcmp.eq.s32.totalorder %v1956, %v304
        %vm2017 = vcmp.eq.s32.totalorder %v1959, %v301
        %vm2018 = vcmp.eq.s32.totalorder %v1959, %v302
        %vm2019 = vcmp.eq.s32.totalorder %v1959, %v303
        %vm2020 = vcmp.eq.s32.totalorder %v1959, %v304
        %vm2021 = vcmp.eq.s32.totalorder %v1962, %v301
        %vm2022 = vcmp.eq.s32.totalorder %v1962, %v302
        %vm2023 = vcmp.eq.s32.totalorder %v1962, %v303
        %vm2024 = vcmp.eq.s32.totalorder %v1962, %v304
        %vm2025 = vcmp.eq.s32.totalorder %v1965, %v301
        %vm2026 = vcmp.eq.s32.totalorder %v1965, %v302
        %vm2027 = vcmp.eq.s32.totalorder %v1965, %v303
        %vm2028 = vcmp.eq.s32.totalorder %v1965, %v304
        %vm2029 = vcmp.eq.s32.totalorder %v1968, %v301
        %vm2030 = vcmp.eq.s32.totalorder %v1968, %v302
        %vm2031 = vcmp.eq.s32.totalorder %v1968, %v303
        %vm2032 = vcmp.eq.s32.totalorder %v1968, %v304
        %v2033 = vsel %vm1969, 1, 0
        %v2034 = vsel %vm1970, 1, 0
        %v2035 = vsel %vm1971, 1, 0
        %v2036 = vsel %vm1972, 1, 0
        %v2037 = vsel %vm1973, 1, 0
        %v2038 = vsel %vm1974, 1, 0
        %v2039 = vsel %vm1975, 1, 0
        %v2040 = vsel %vm1976, 1, 0
        %v2041 = vsel %vm1977, 1, 0
        %v2042 = vsel %vm1978, 1, 0
        %v2043 = vsel %vm1979, 1, 0
        %v2044 = vsel %vm1980, 1, 0
        %v2045 = vsel %vm1981, 1, 0
        %v2046 = vsel %vm1982, 1, 0
        %v2047 = vsel %vm1983, 1, 0
        %v2048 = vsel %vm1984, 1, 0
        %v2049 = vsel %vm1985, 1, 0
        %v2050 = vsel %vm1986, 1, 0
        %v2051 = vsel %vm1987, 1, 0
        %v2052 = vsel %vm1988, 1, 0
        %v2053 = vsel %vm1989, 1, 0
        %v2054 = vsel %vm1990, 1, 0
        %v2055 = vsel %vm1991, 1, 0
        %v2056 = vsel %vm1992, 1, 0
        %v2057 = vsel %vm1993, 1, 0
        %v2058 = vsel %vm1994, 1, 0
        %v2059 = vsel %vm1995, 1, 0
        %v2060 = vsel %vm1996, 1, 0
        %v2061 = vsel %vm1997, 1, 0
        %v2062 = vsel %vm1998, 1, 0
        %v2063 = vsel %vm1999, 1, 0
        %v2064 = vsel %vm2000, 1, 0
        %v2065 = vsel %vm2001, 1, 0
        %v2066 = vsel %vm2002, 1, 0
        %v2067 = vsel %vm2003, 1, 0
        %v2068 = vsel %vm2004, 1, 0
        %v2069 = vsel %vm2005, 1, 0
        %v2070 = vsel %vm2006, 1, 0
        %v2071 = vsel %vm2007, 1, 0
        %v2072 = vsel %vm2008, 1, 0
        %v2073 = vsel %vm2009, 1, 0
        %v2074 = vsel %vm2010, 1, 0
        %v2075 = vsel %vm2011, 1, 0
        %v2076 = vsel %vm2012, 1, 0
        %v2077 = vsel %vm2013, 1, 0
        %v2078 = vsel %vm2014, 1, 0
        %v2079 = vsel %vm2015, 1, 0
        %v2080 = vsel %vm2016, 1, 0
        %v2081 = vsel %vm2017, 1, 0
        %v2082 = vsel %vm2018, 1, 0
        %v2083 = vsel %vm2019, 1, 0
        %v2084 = vsel %vm2020, 1, 0
        %v2085 = vsel %vm2021, 1, 0
        %v2086 = vsel %vm2022, 1, 0
        %v2087 = vsel %vm2023, 1, 0
        %v2088 = vsel %vm2024, 1, 0
        %v2089 = vsel %vm2025, 1, 0
        %v2090 = vsel %vm2026, 1, 0
        %v2091 = vsel %vm2027, 1, 0
        %v2092 = vsel %vm2028, 1, 0
        %v2093 = vsel %vm2029, 1, 0
        %v2094 = vsel %vm2030, 1, 0
        %v2095 = vsel %vm2031, 1, 0
        %v2096 = vsel %vm2032, 1, 0
        %v2097 = vadd.s32 %v1857, %v2033
        %v2098 = vadd.s32 %v1858, %v2034
        %v2099 = vadd.s32 %v1859, %v2035
        %v2100 = vadd.s32 %v1860, %v2036
        %v2101 = vadd.s32 %v1861, %v2037
        %v2102 = vadd.s32 %v1862, %v2038
        %v2103 = vadd.s32 %v1863, %v2039
        %v2104 = vadd.s32 %v1864, %v2040
        %v2105 = vadd.s32 %v1865, %v2041
        %v2106 = vadd.s32 %v1866, %v2042
        %v2107 = vadd.s32 %v1867, %v2043
        %v2108 = vadd.s32 %v1868, %v2044
        %v2109 = vadd.s32 %v1869, %v2045
        %v2110 = vadd.s32 %v1870, %v2046
        %v2111 = vadd.s32 %v1871, %v2047
        %v2112 = vadd.s32 %v1872, %v2048
        %v2113 = vadd.s32 %v1873, %v2049
        %v2114 = vadd.s32 %v1874, %v2050
        %v2115 = vadd.s32 %v1875, %v2051
        %v2116 = vadd.s32 %v1876, %v2052
        %v2117 = vadd.s32 %v1877, %v2053
        %v2118 = vadd.s32 %v1878, %v2054
        %v2119 = vadd.s32 %v1879, %v2055
        %v2120 = vadd.s32 %v1880, %v2056
        %v2121 = vadd.s32 %v1881, %v2057
        %v2122 = vadd.s32 %v1882, %v2058
        %v2123 = vadd.s32 %v1883, %v2059
        %v2124 = vadd.s32 %v1884, %v2060
        %v2125 = vadd.s32 %v1885, %v2061
        %v2126 = vadd.s32 %v1886, %v2062
        %v2127 = vadd.s32 %v1887, %v2063
        %v2128 = vadd.s32 %v1888, %v2064
        %v2129 = vadd.s32 %v1889, %v2065
        %v2130 = vadd.s32 %v1890, %v2066
        %v2131 = vadd.s32 %v1891, %v2067
        %v2132 = vadd.s32 %v1892, %v2068
        %v2133 = vadd.s32 %v1893, %v2069
        %v2134 = vadd.s32 %v1894, %v2070
        %v2135 = vadd.s32 %v1895, %v2071
        %v2136 = vadd.s32 %v1896, %v2072
        %v2137 = vadd.s32 %v1897, %v2073
        %v2138 = vadd.s32 %v1898, %v2074
        %v2139 = vadd.s32 %v1899, %v2075
        %v2140 = vadd.s32 %v1900, %v2076
        %v2141 = vadd.s32 %v1901, %v2077
        %v2142 = vadd.s32 %v1902, %v2078
        %v2143 = vadd.s32 %v1903, %v2079
        %v2144 = vadd.s32 %v1904, %v2080
        %v2145 = vadd.s32 %v1905, %v2081
        %v2146 = vadd.s32 %v1906, %v2082
        %v2147 = vadd.s32 %v1907, %v2083
        %v2148 = vadd.s32 %v1908, %v2084
        %v2149 = vadd.s32 %v1909, %v2085
        %v2150 = vadd.s32 %v1910, %v2086
        %v2151 = vadd.s32 %v1911, %v2087
        %v2152 = vadd.s32 %v1912, %v2088
        %v2153 = vadd.s32 %v1913, %v2089
        %v2154 = vadd.s32 %v1914, %v2090
        %v2155 = vadd.s32 %v1915, %v2091
        %v2156 = vadd.s32 %v1916, %v2092
        %v2157 = vadd.s32 %v1917, %v2093
        %v2158 = vadd.s32 %v1918, %v2094
        %v2159 = vadd.s32 %v1919, %v2095
        %v2160 = vadd.s32 %v1920, %v2096
        %v2161 = vcvt.s32.f32 %v2097
        %v2162 = vcvt.s32.f32 %v2098
        %v2163 = vcvt.s32.f32 %v2099
        %v2164 = vcvt.s32.f32 %v2100
        %v2165 = vcvt.s32.f32 %v2101
        %v2166 = vcvt.s32.f32 %v2102
        %v2167 = vcvt.s32.f32 %v2103
        %v2168 = vcvt.s32.f32 %v2104
        %v2169 = vcvt.s32.f32 %v2105
        %v2170 = vcvt.s32.f32 %v2106
        %v2171 = vcvt.s32.f32 %v2107
        %v2172 = vcvt.s32.f32 %v2108
        %v2173 = vcvt.s32.f32 %v2109
        %v2174 = vcvt.s32.f32 %v2110
        %v2175 = vcvt.s32.f32 %v2111
        %v2176 = vcvt.s32.f32 %v2112
        %v2177 = vcvt.s32.f32 %v2113
        %v2178 = vcvt.s32.f32 %v2114
        %v2179 = vcvt.s32.f32 %v2115
        %v2180 = vcvt.s32.f32 %v2116
        %v2181 = vcvt.s32.f32 %v2117
        %v2182 = vcvt.s32.f32 %v2118
        %v2183 = vcvt.s32.f32 %v2119
        %v2184 = vcvt.s32.f32 %v2120
        %v2185 = vcvt.s32.f32 %v2121
        %v2186 = vcvt.s32.f32 %v2122
        %v2187 = vcvt.s32.f32 %v2123
        %v2188 = vcvt.s32.f32 %v2124
        %v2189 = vcvt.s32.f32 %v2125
        %v2190 = vcvt.s32.f32 %v2126
        %v2191 = vcvt.s32.f32 %v2127
        %v2192 = vcvt.s32.f32 %v2128
        %v2193 = vcvt.s32.f32 %v2129
        %v2194 = vcvt.s32.f32 %v2130
        %v2195 = vcvt.s32.f32 %v2131
        %v2196 = vcvt.s32.f32 %v2132
        %v2197 = vcvt.s32.f32 %v2133
        %v2198 = vcvt.s32.f32 %v2134
        %v2199 = vcvt.s32.f32 %v2135
        %v2200 = vcvt.s32.f32 %v2136
        %v2201 = vcvt.s32.f32 %v2137
        %v2202 = vcvt.s32.f32 %v2138
        %v2203 = vcvt.s32.f32 %v2139
        %v2204 = vcvt.s32.f32 %v2140
        %v2205 = vcvt.s32.f32 %v2141
        %v2206 = vcvt.s32.f32 %v2142
        %v2207 = vcvt.s32.f32 %v2143
        %v2208 = vcvt.s32.f32 %v2144
        %v2209 = vcvt.s32.f32 %v2145
        %v2210 = vcvt.s32.f32 %v2146
        %v2211 = vcvt.s32.f32 %v2147
        %v2212 = vcvt.s32.f32 %v2148
        %v2213 = vcvt.s32.f32 %v2149
        %v2214 = vcvt.s32.f32 %v2150
        %v2215 = vcvt.s32.f32 %v2151
        %v2216 = vcvt.s32.f32 %v2152
        %v2217 = vcvt.s32.f32 %v2153
        %v2218 = vcvt.s32.f32 %v2154
        %v2219 = vcvt.s32.f32 %v2155
        %v2220 = vcvt.s32.f32 %v2156
        %v2221 = vcvt.s32.f32 %v2157
        %v2222 = vcvt.s32.f32 %v2158
        %v2223 = vcvt.s32.f32 %v2159
        %v2224 = vcvt.s32.f32 %v2160
        %v2225 = vmul.f32 %v2161, 0.125
        %v2226 = vmul.f32 %v2162, 0.125
        %v2227 = vmul.f32 %v2163, 0.125
        %v2228 = vmul.f32 %v2164, 0.125
        %v2229 = vmul.f32 %v2165, 0.125
        %v2230 = vmul.f32 %v2166, 0.125
        %v2231 = vmul.f32 %v2167, 0.125
        %v2232 = vmul.f32 %v2168, 0.125
        %v2233 = vmul.f32 %v2169, 0.125
        %v2234 = vmul.f32 %v2170, 0.125
        %v2235 = vmul.f32 %v2171, 0.125
        %v2236 = vmul.f32 %v2172, 0.125
        %v2237 = vmul.f32 %v2173, 0.125
        %v2238 = vmul.f32 %v2174, 0.125
        %v2239 = vmul.f32 %v2175, 0.125
        %v2240 = vmul.f32 %v2176, 0.125
        %v2241 = vmul.f32 %v2177, 0.125
        %v2242 = vmul.f32 %v2178, 0.125
        %v2243 = vmul.f32 %v2179, 0.125
        %v2244 = vmul.f32 %v2180, 0.125
        %v2245 = vmul.f32 %v2181, 0.125
        %v2246 = vmul.f32 %v2182, 0.125
        %v2247 = vmul.f32 %v2183, 0.125
        %v2248 = vmul.f32 %v2184, 0.125
        %v2249 = vmul.f32 %v2185, 0.125
        %v2250 = vmul.f32 %v2186, 0.125
        %v2251 = vmul.f32 %v2187, 0.125
        %v2252 = vmul.f32 %v2188, 0.125
        %v2253 = vmul.f32 %v2189, 0.125
        %v2254 = vmul.f32 %v2190, 0.125
        %v2255 = vmul.f32 %v2191, 0.125
        %v2256 = vmul.f32 %v2192, 0.125
        %v2257 = vmul.f32 %v2193, 0.125
        %v2258 = vmul.f32 %v2194, 0.125
        %v2259 = vmul.f32 %v2195, 0.125
        %v2260 = vmul.f32 %v2196, 0.125
        %v2261 = vmul.f32 %v2197, 0.125
        %v2262 = vmul.f32 %v2198, 0.125
        %v2263 = vmul.f32 %v2199, 0.125
        %v2264 = vmul.f32 %v2200, 0.125
        %v2265 = vmul.f32 %v2201, 0.125
        %v2266 = vmul.f32 %v2202, 0.125
        %v2267 = vmul.f32 %v2203, 0.125
        %v2268 = vmul.f32 %v2204, 0.125
        %v2269 = vmul.f32 %v2205, 0.125
        %v2270 = vmul.f32 %v2206, 0.125
        %v2271 = vmul.f32 %v2207, 0.125
        %v2272 = vmul.f32 %v2208, 0.125
        %v2273 = vmul.f32 %v2209, 0.125
        %v2274 = vmul.f32 %v2210, 0.125
        %v2275 = vmul.f32 %v2211, 0.125
        %v2276 = vmul.f32 %v2212, 0.125
        %v2277 = vmul.f32 %v2213, 0.125
        %v2278 = vmul.f32 %v2214, 0.125
        %v2279 = vmul.f32 %v2215, 0.125
        %v2280 = vmul.f32 %v2216, 0.125
        %v2281 = vmul.f32 %v2217, 0.125
        %v2282 = vmul.f32 %v2218, 0.125
        %v2283 = vmul.f32 %v2219, 0.125
        %v2284 = vmul.f32 %v2220, 0.125
        %v2285 = vmul.f32 %v2221, 0.125
        %v2286 = vmul.f32 %v2222, 0.125
        %v2287 = vmul.f32 %v2223, 0.125
        %v2288 = vmul.f32 %v2224, 0.125
        %v2289 = vpack.c.bf16 %v2229, %v2225
        %v2290 = vpack.c.bf16 %v2230, %v2226
        %v2291 = vpack.c.bf16 %v2231, %v2227
        %v2292 = vpack.c.bf16 %v2232, %v2228
        %v2293 = vpack.c.bf16 %v2237, %v2233
        %v2294 = vpack.c.bf16 %v2238, %v2234
        %v2295 = vpack.c.bf16 %v2239, %v2235
        %v2296 = vpack.c.bf16 %v2240, %v2236
        %v2297 = vpack.c.bf16 %v2245, %v2241
        %v2298 = vpack.c.bf16 %v2246, %v2242
        %v2299 = vpack.c.bf16 %v2247, %v2243
        %v2300 = vpack.c.bf16 %v2248, %v2244
        %v2301 = vpack.c.bf16 %v2253, %v2249
        %v2302 = vpack.c.bf16 %v2254, %v2250
        %v2303 = vpack.c.bf16 %v2255, %v2251
        %v2304 = vpack.c.bf16 %v2256, %v2252
        %v2305 = vpack.c.bf16 %v2261, %v2257
        %v2306 = vpack.c.bf16 %v2262, %v2258
        %v2307 = vpack.c.bf16 %v2263, %v2259
        %v2308 = vpack.c.bf16 %v2264, %v2260
        %v2309 = vpack.c.bf16 %v2269, %v2265
        %v2310 = vpack.c.bf16 %v2270, %v2266
        %v2311 = vpack.c.bf16 %v2271, %v2267
        %v2312 = vpack.c.bf16 %v2272, %v2268
        %v2313 = vpack.c.bf16 %v2277, %v2273
        %v2314 = vpack.c.bf16 %v2278, %v2274
        %v2315 = vpack.c.bf16 %v2279, %v2275
        %v2316 = vpack.c.bf16 %v2280, %v2276
        %v2317 = vpack.c.bf16 %v2285, %v2281
        %v2318 = vpack.c.bf16 %v2286, %v2282
        %v2319 = vpack.c.bf16 %v2287, %v2283
        %v2320 = vpack.c.bf16 %v2288, %v2284
        %v2321 = vld [vmem:[%s1] sm:$0xf]
        %v2322 = vld [vmem:[%s1 + $0x4] sm:$0xf]
        %v2323 = vld [vmem:[%s1 + $0x8] sm:$0xf]
        %v2324 = vld [vmem:[%s1 + $0xc] sm:$0xf]
        %v2325 = vld [vmem:[%s1 + $0x10] sm:$0xf]
        %v2326 = vld [vmem:[%s1 + $0x14] sm:$0xf]
        %v2327 = vld [vmem:[%s1 + $0x18] sm:$0xf]
        %v2328 = vld [vmem:[%s1 + $0x1c] sm:$0xf]
        %v2329 = vld [vmem:[%s1 + $0x20] sm:$0xf]
        %v2330 = vld [vmem:[%s1 + $0x24] sm:$0xf]
        %v2331 = vld [vmem:[%s1 + $0x28] sm:$0xf]
        %v2332 = vld [vmem:[%s1 + $0x2c] sm:$0xf]
        %v2333 = vld [vmem:[%s1 + $0x30] sm:$0xf]
        %v2334 = vld [vmem:[%s1 + $0x34] sm:$0xf]
        %v2335 = vld [vmem:[%s1 + $0x38] sm:$0xf]
        %v2336 = vld [vmem:[%s1 + $0x3c] sm:$0xf]
        %v2337 = vld [vmem:[%s1 + $0x40] sm:$0xf]
        %v2338 = vld [vmem:[%s1 + $0x44] sm:$0xf]
        %v2339 = vld [vmem:[%s1 + $0x48] sm:$0xf]
        %v2340 = vld [vmem:[%s1 + $0x4c] sm:$0xf]
        %v2341 = vld [vmem:[%s1 + $0x50] sm:$0xf]
        %v2342 = vld [vmem:[%s1 + $0x54] sm:$0xf]
        %v2343 = vld [vmem:[%s1 + $0x58] sm:$0xf]
        %v2344 = vld [vmem:[%s1 + $0x5c] sm:$0xf]
        %v2345 = vld [vmem:[%s1 + $0x60] sm:$0xf]
        %v2346 = vld [vmem:[%s1 + $0x64] sm:$0xf]
        %v2347 = vld [vmem:[%s1 + $0x68] sm:$0xf]
        %v2348 = vld [vmem:[%s1 + $0x6c] sm:$0xf]
        %v2349 = vld [vmem:[%s1 + $0x70] sm:$0xf]
        %v2350 = vld [vmem:[%s1 + $0x74] sm:$0xf]
        %v2351 = vld [vmem:[%s1 + $0x78] sm:$0xf]
        %v2352 = vld [vmem:[%s1 + $0x7c] sm:$0xf]
        %v2353 = vld [vmem:[%s1 + $0x80] sm:$0xf]
        %v2354 = vld [vmem:[%s1 + $0x84] sm:$0xf]
        %v2355 = vld [vmem:[%s1 + $0x88] sm:$0xf]
        %v2356 = vld [vmem:[%s1 + $0x8c] sm:$0xf]
        %v2357 = vld [vmem:[%s1 + $0x90] sm:$0xf]
        %v2358 = vld [vmem:[%s1 + $0x94] sm:$0xf]
        %v2359 = vld [vmem:[%s1 + $0x98] sm:$0xf]
        %v2360 = vld [vmem:[%s1 + $0x9c] sm:$0xf]
        %v2361 = vld [vmem:[%s1 + $0xa0] sm:$0xf]
        %v2362 = vld [vmem:[%s1 + $0xa4] sm:$0xf]
        %v2363 = vld [vmem:[%s1 + $0xa8] sm:$0xf]
        %v2364 = vld [vmem:[%s1 + $0xac] sm:$0xf]
        %v2365 = vld [vmem:[%s1 + $0xb0] sm:$0xf]
        %v2366 = vld [vmem:[%s1 + $0xb4] sm:$0xf]
        %v2367 = vld [vmem:[%s1 + $0xb8] sm:$0xf]
        %v2368 = vld [vmem:[%s1 + $0xbc] sm:$0xf]
        %v2369 = vld [vmem:[%s1 + $0xc0] sm:$0xf]
        %v2370 = vld [vmem:[%s1 + $0xc4] sm:$0xf]
        %v2371 = vld [vmem:[%s1 + $0xc8] sm:$0xf]
        %v2372 = vld [vmem:[%s1 + $0xcc] sm:$0xf]
        %v2373 = vld [vmem:[%s1 + $0xd0] sm:$0xf]
        %v2374 = vld [vmem:[%s1 + $0xd4] sm:$0xf]
        %v2375 = vld [vmem:[%s1 + $0xd8] sm:$0xf]
        %v2376 = vld [vmem:[%s1 + $0xdc] sm:$0xf]
        %v2377 = vld [vmem:[%s1 + $0xe0] sm:$0xf]
        %v2378 = vld [vmem:[%s1 + $0xe4] sm:$0xf]
        %v2379 = vld [vmem:[%s1 + $0xe8] sm:$0xf]
        %v2380 = vld [vmem:[%s1 + $0xec] sm:$0xf]
        %v2381 = vld [vmem:[%s1 + $0xf0] sm:$0xf]
        %v2382 = vld [vmem:[%s1 + $0xf4] sm:$0xf]
        %v2383 = vld [vmem:[%s1 + $0xf8] sm:$0xf]
        %v2384 = vld [vmem:[%s1 + $0xfc] sm:$0xf]
        %v2449 = vunpack.c.l.b16 %v2321
        %v2450 = vunpack.c.l.b16 %v2322
        %v2451 = vunpack.c.l.b16 %v2323
        %v2452 = vunpack.c.l.b16 %v2324
        %v2453 = vunpack.c.l.b16 %v2325
        %v2454 = vunpack.c.l.b16 %v2326
        %v2455 = vunpack.c.l.b16 %v2327
        %v2456 = vunpack.c.l.b16 %v2328
        %v2457 = vunpack.c.l.b16 %v2329
        %v2458 = vunpack.c.l.b16 %v2330
        %v2459 = vunpack.c.l.b16 %v2331
        %v2460 = vunpack.c.l.b16 %v2332
        %v2461 = vunpack.c.l.b16 %v2333
        %v2462 = vunpack.c.l.b16 %v2334
        %v2463 = vunpack.c.l.b16 %v2335
        %v2464 = vunpack.c.l.b16 %v2336
        %v2465 = vunpack.c.l.b16 %v2337
        %v2466 = vunpack.c.l.b16 %v2338
        %v2467 = vunpack.c.l.b16 %v2339
        %v2468 = vunpack.c.l.b16 %v2340
        %v2469 = vunpack.c.l.b16 %v2341
        %v2470 = vunpack.c.l.b16 %v2342
        %v2471 = vunpack.c.l.b16 %v2343
        %v2472 = vunpack.c.l.b16 %v2344
        %v2473 = vunpack.c.l.b16 %v2345
        %v2474 = vunpack.c.l.b16 %v2346
        %v2475 = vunpack.c.l.b16 %v2347
        %v2476 = vunpack.c.l.b16 %v2348
        %v2477 = vunpack.c.l.b16 %v2349
        %v2478 = vunpack.c.l.b16 %v2350
        %v2479 = vunpack.c.l.b16 %v2351
        %v2480 = vunpack.c.l.b16 %v2352
        %v2481 = vunpack.c.l.b16 %v2353
        %v2482 = vunpack.c.l.b16 %v2354
        %v2483 = vunpack.c.l.b16 %v2355
        %v2484 = vunpack.c.l.b16 %v2356
        %v2485 = vunpack.c.l.b16 %v2357
        %v2486 = vunpack.c.l.b16 %v2358
        %v2487 = vunpack.c.l.b16 %v2359
        %v2488 = vunpack.c.l.b16 %v2360
        %v2489 = vunpack.c.l.b16 %v2361
        %v2490 = vunpack.c.l.b16 %v2362
        %v2491 = vunpack.c.l.b16 %v2363
        %v2492 = vunpack.c.l.b16 %v2364
        %v2493 = vunpack.c.l.b16 %v2365
        %v2494 = vunpack.c.l.b16 %v2366
        %v2495 = vunpack.c.l.b16 %v2367
        %v2496 = vunpack.c.l.b16 %v2368
        %v2497 = vunpack.c.l.b16 %v2369
        %v2498 = vunpack.c.l.b16 %v2370
        %v2499 = vunpack.c.l.b16 %v2371
        %v2500 = vunpack.c.l.b16 %v2372
        %v2501 = vunpack.c.l.b16 %v2373
        %v2502 = vunpack.c.l.b16 %v2374
        %v2503 = vunpack.c.l.b16 %v2375
        %v2504 = vunpack.c.l.b16 %v2376
        %v2505 = vunpack.c.l.b16 %v2377
        %v2506 = vunpack.c.l.b16 %v2378
        %v2507 = vunpack.c.l.b16 %v2379
        %v2508 = vunpack.c.l.b16 %v2380
        %v2509 = vunpack.c.l.b16 %v2381
        %v2510 = vunpack.c.l.b16 %v2382
        %v2511 = vunpack.c.l.b16 %v2383
        %v2512 = vunpack.c.l.b16 %v2384
        %v2513 = vpack.c.b16 %v2450, %v2449
        %v2514 = vpack.c.b16 %v2452, %v2451
        %v2515 = vpack.c.b16 %v2454, %v2453
        %v2516 = vpack.c.b16 %v2456, %v2455
        %v2517 = vpack.c.b16 %v2458, %v2457
        %v2518 = vpack.c.b16 %v2460, %v2459
        %v2519 = vpack.c.b16 %v2462, %v2461
        %v2520 = vpack.c.b16 %v2464, %v2463
        %v2521 = vpack.c.b16 %v2466, %v2465
        %v2522 = vpack.c.b16 %v2468, %v2467
        %v2523 = vpack.c.b16 %v2470, %v2469
        %v2524 = vpack.c.b16 %v2472, %v2471
        %v2525 = vpack.c.b16 %v2474, %v2473
        %v2526 = vpack.c.b16 %v2476, %v2475
        %v2527 = vpack.c.b16 %v2478, %v2477
        %v2528 = vpack.c.b16 %v2480, %v2479
        %v2529 = vpack.c.b16 %v2482, %v2481
        %v2530 = vpack.c.b16 %v2484, %v2483
        %v2531 = vpack.c.b16 %v2486, %v2485
        %v2532 = vpack.c.b16 %v2488, %v2487
        %v2533 = vpack.c.b16 %v2490, %v2489
        %v2534 = vpack.c.b16 %v2492, %v2491
        %v2535 = vpack.c.b16 %v2494, %v2493
        %v2536 = vpack.c.b16 %v2496, %v2495
        %v2537 = vpack.c.b16 %v2498, %v2497
        %v2538 = vpack.c.b16 %v2500, %v2499
        %v2539 = vpack.c.b16 %v2502, %v2501
        %v2540 = vpack.c.b16 %v2504, %v2503
        %v2541 = vpack.c.b16 %v2506, %v2505
        %v2542 = vpack.c.b16 %v2508, %v2507
        %v2543 = vpack.c.b16 %v2510, %v2509
        %v2544 = vpack.c.b16 %v2512, %v2511
        %2577 = vmatprep.subr.bf16.mxu0 0
        %2578 = vmatpush1.bf16.msra.mxu0 %v2513
        %2579 = vmatprep.subr.bf16.mxu0 0
        %2580 = vmatpush1.bf16.msra.mxu0 %v2514
        %2581 = vmatprep.subr.bf16.mxu0 0
        %2582 = vmatpush1.bf16.msra.mxu0 %v2515
        %2583 = vmatprep.subr.bf16.mxu0 0
        %2584 = vmatpush1.bf16.msra.mxu0 %v2516
        %2585 = vmatprep.subr.bf16.mxu0 0
        %2586 = vmatpush1.bf16.msra.mxu0 %v2517
        %2587 = vmatprep.subr.bf16.mxu0 0
        %2588 = vmatpush1.bf16.msra.mxu0 %v2518
        %2589 = vmatprep.subr.bf16.mxu0 0
        %2590 = vmatpush1.bf16.msra.mxu0 %v2519
        %2591 = vmatprep.subr.bf16.mxu0 0
        %2592 = vmatpush1.bf16.msra.mxu0 %v2520
        %2593 = vmatprep.subr.bf16.mxu0 0
        %2594 = vmatpush1.bf16.msra.mxu0 %v2521
        %2595 = vmatprep.subr.bf16.mxu0 0
        %2596 = vmatpush1.bf16.msra.mxu0 %v2522
        %2597 = vmatprep.subr.bf16.mxu0 0
        %2598 = vmatpush1.bf16.msra.mxu0 %v2523
        %2599 = vmatprep.subr.bf16.mxu0 0
        %2600 = vmatpush1.bf16.msra.mxu0 %v2524
        %2601 = vmatprep.subr.bf16.mxu0 0
        %2602 = vmatpush1.bf16.msra.mxu0 %v2525
        %2603 = vmatprep.subr.bf16.mxu0 0
        %2604 = vmatpush1.bf16.msra.mxu0 %v2526
        %2605 = vmatprep.subr.bf16.mxu0 0
        %2606 = vmatpush1.bf16.msra.mxu0 %v2527
        %2607 = vmatprep.subr.bf16.mxu0 0
        %2608 = vmatpush1.bf16.msra.mxu0 %v2528
        %2609 = vmatprep.mubr.bf16.mxu0 %v2290
        %2610 = vmatmul.mubr.bf16.gmra.mrb[0].mxu0 %v2289
        %v2611 = vpop.f32.mrb[0].mxu0
        %v2612 = vadd.f32 0.0, %v2611
        %v2613 = vpop.f32.mrb[0].mxu0
        %v2614 = vpop.f32.mrb[0].mxu0
        %v2615 = vadd.f32 0.0, %v2614
        %v2616 = vpop.f32.mrb[0].mxu0
        %2617 = vmatprep.mubr.bf16.mxu0 %v2294
        %2618 = vmatmul.mubr.bf16.gmra.mrb[0].mxu0 %v2293
        %v2619 = vpop.f32.mrb[0].mxu0
        %v2620 = vadd.f32 0.0, %v2619
        %v2621 = vpop.f32.mrb[0].mxu0
        %v2622 = vpop.f32.mrb[0].mxu0
        %v2623 = vadd.f32 0.0, %v2622
        %v2624 = vpop.f32.mrb[0].mxu0
        %2625 = vmatprep.mubr.bf16.mxu0 %v2298
        %2626 = vmatmul.mubr.bf16.gmra.mrb[0].mxu0 %v2297
        %v2627 = vpop.f32.mrb[0].mxu0
        %v2628 = vadd.f32 0.0, %v2627
        %v2629 = vpop.f32.mrb[0].mxu0
        %v2630 = vpop.f32.mrb[0].mxu0
        %v2631 = vadd.f32 0.0, %v2630
        %v2632 = vpop.f32.mrb[0].mxu0
        %2633 = vmatprep.mubr.bf16.mxu0 %v2302
        %2634 = vmatmul.mubr.bf16.gmra.mrb[0].mxu0 %v2301
        %v2635 = vpop.f32.mrb[0].mxu0
        %v2636 = vadd.f32 0.0, %v2635
        %v2637 = vpop.f32.mrb[0].mxu0
        %v2638 = vpop.f32.mrb[0].mxu0
        %v2639 = vadd.f32 0.0, %v2638
        %v2640 = vpop.f32.mrb[0].mxu0
        %2641 = vmatprep.mubr.bf16.mxu0 %v2306
        %2642 = vmatmul.mubr.bf16.gmra.mrb[0].mxu0 %v2305
        %v2643 = vpop.f32.mrb[0].mxu0
        %v2644 = vadd.f32 0.0, %v2643
        %v2645 = vpop.f32.mrb[0].mxu0
        %v2646 = vpop.f32.mrb[0].mxu0
        %v2647 = vadd.f32 0.0, %v2646
        %v2648 = vpop.f32.mrb[0].mxu0
        %2649 = vmatprep.mubr.bf16.mxu0 %v2310
        %2650 = vmatmul.mubr.bf16.gmra.mrb[0].mxu0 %v2309
        %v2651 = vpop.f32.mrb[0].mxu0
        %v2652 = vadd.f32 0.0, %v2651
        %v2653 = vpop.f32.mrb[0].mxu0
        %v2654 = vpop.f32.mrb[0].mxu0
        %v2655 = vadd.f32 0.0, %v2654
        %v2656 = vpop.f32.mrb[0].mxu0
        %2657 = vmatprep.mubr.bf16.mxu0 %v2314
        %2658 = vmatmul.mubr.bf16.gmra.mrb[0].mxu0 %v2313
        %v2659 = vpop.f32.mrb[0].mxu0
        %v2660 = vadd.f32 0.0, %v2659
        %v2661 = vpop.f32.mrb[0].mxu0
        %v2662 = vpop.f32.mrb[0].mxu0
        %v2663 = vadd.f32 0.0, %v2662
        %v2664 = vpop.f32.mrb[0].mxu0
        %2665 = vmatprep.mubr.bf16.mxu0 %v2318
        %2666 = vmatmul.mubr.bf16.gmra.mrb[0].mxu0 %v2317
        %v2667 = vpop.f32.mrb[0].mxu0
        %v2668 = vadd.f32 0.0, %v2667
        %v2669 = vpop.f32.mrb[0].mxu0
        %v2670 = vpop.f32.mrb[0].mxu0
        %v2671 = vadd.f32 0.0, %v2670
        %v2672 = vpop.f32.mrb[0].mxu0
        %2673 = vdwg.mxu0
        %2674 = vmatprep.subr.bf16.mxu0 0
        %2675 = vmatpush1.bf16.msra.mxu0 %v2529
        %2676 = vmatprep.subr.bf16.mxu0 0
        %2677 = vmatpush1.bf16.msra.mxu0 %v2530
        %2678 = vmatprep.subr.bf16.mxu0 0
        %2679 = vmatpush1.bf16.msra.mxu0 %v2531
        %2680 = vmatprep.subr.bf16.mxu0 0
        %2681 = vmatpush1.bf16.msra.mxu0 %v2532
        %2682 = vmatprep.subr.bf16.mxu0 0
        %2683 = vmatpush1.bf16.msra.mxu0 %v2533
        %2684 = vmatprep.subr.bf16.mxu0 0
        %2685 = vmatpush1.bf16.msra.mxu0 %v2534
        %2686 = vmatprep.subr.bf16.mxu0 0
        %2687 = vmatpush1.bf16.msra.mxu0 %v2535
        %2688 = vmatprep.subr.bf16.mxu0 0
        %2689 = vmatpush1.bf16.msra.mxu0 %v2536
        %2690 = vmatprep.subr.bf16.mxu0 0
        %2691 = vmatpush1.bf16.msra.mxu0 %v2537
        %2692 = vmatprep.subr.bf16.mxu0 0
        %2693 = vmatpush1.bf16.msra.mxu0 %v2538
        %2694 = vmatprep.subr.bf16.mxu0 0
        %2695 = vmatpush1.bf16.msra.mxu0 %v2539
        %2696 = vmatprep.subr.bf16.mxu0 0
        %2697 = vmatpush1.bf16.msra.mxu0 %v2540
        %2698 = vmatprep.subr.bf16.mxu0 0
        %2699 = vmatpush1.bf16.msra.mxu0 %v2541
        %2700 = vmatprep.subr.bf16.mxu0 0
        %2701 = vmatpush1.bf16.msra.mxu0 %v2542
        %2702 = vmatprep.subr.bf16.mxu0 0
        %2703 = vmatpush1.bf16.msra.mxu0 %v2543
        %2704 = vmatprep.subr.bf16.mxu0 0
        %2705 = vmatpush1.bf16.msra.mxu0 %v2544
        %2706 = vmatprep.mubr.bf16.mxu0 %v2292
        %2707 = vmatmul.mubr.bf16.gmra.mrb[0].mxu0 %v2291
        %v2708 = vpop.f32.mrb[0].mxu0
        %v2709 = vadd.f32 %v2612, %v2708
        %v2710 = vpop.f32.mrb[0].mxu0
        %v2711 = vpop.f32.mrb[0].mxu0
        %v2712 = vadd.f32 %v2615, %v2711
        %v2713 = vpop.f32.mrb[0].mxu0
        %2714 = vmatprep.mubr.bf16.mxu0 %v2296
        %2715 = vmatmul.mubr.bf16.gmra.mrb[0].mxu0 %v2295
        %v2716 = vpop.f32.mrb[0].mxu0
        %v2717 = vadd.f32 %v2620, %v2716
        %v2718 = vpop.f32.mrb[0].mxu0
        %v2719 = vpop.f32.mrb[0].mxu0
        %v2720 = vadd.f32 %v2623, %v2719
        %v2721 = vpop.f32.mrb[0].mxu0
        %2722 = vmatprep.mubr.bf16.mxu0 %v2300
        %2723 = vmatmul.mubr.bf16.gmra.mrb[0].mxu0 %v2299
        %v2724 = vpop.f32.mrb[0].mxu0
        %v2725 = vadd.f32 %v2628, %v2724
        %v2726 = vpop.f32.mrb[0].mxu0
        %v2727 = vpop.f32.mrb[0].mxu0
        %v2728 = vadd.f32 %v2631, %v2727
        %v2729 = vpop.f32.mrb[0].mxu0
        %2730 = vmatprep.mubr.bf16.mxu0 %v2304
        %2731 = vmatmul.mubr.bf16.gmra.mrb[0].mxu0 %v2303
        %v2732 = vpop.f32.mrb[0].mxu0
        %v2733 = vadd.f32 %v2636, %v2732
        %v2734 = vpop.f32.mrb[0].mxu0
        %v2735 = vpop.f32.mrb[0].mxu0
        %v2736 = vadd.f32 %v2639, %v2735
        %v2737 = vpop.f32.mrb[0].mxu0
        %2738 = vmatprep.mubr.bf16.mxu0 %v2308
        %2739 = vmatmul.mubr.bf16.gmra.mrb[0].mxu0 %v2307
        %v2740 = vpop.f32.mrb[0].mxu0
        %v2741 = vadd.f32 %v2644, %v2740
        %v2742 = vpop.f32.mrb[0].mxu0
        %v2743 = vpop.f32.mrb[0].mxu0
        %v2744 = vadd.f32 %v2647, %v2743
        %v2745 = vpop.f32.mrb[0].mxu0
        %2746 = vmatprep.mubr.bf16.mxu0 %v2312
        %2747 = vmatmul.mubr.bf16.gmra.mrb[0].mxu0 %v2311
        %v2748 = vpop.f32.mrb[0].mxu0
        %v2749 = vadd.f32 %v2652, %v2748
        %v2750 = vpop.f32.mrb[0].mxu0
        %v2751 = vpop.f32.mrb[0].mxu0
        %v2752 = vadd.f32 %v2655, %v2751
        %v2753 = vpop.f32.mrb[0].mxu0
        %2754 = vmatprep.mubr.bf16.mxu0 %v2316
        %2755 = vmatmul.mubr.bf16.gmra.mrb[0].mxu0 %v2315
        %v2756 = vpop.f32.mrb[0].mxu0
        %v2757 = vadd.f32 %v2660, %v2756
        %v2758 = vpop.f32.mrb[0].mxu0
        %v2759 = vpop.f32.mrb[0].mxu0
        %v2760 = vadd.f32 %v2663, %v2759
        %v2761 = vpop.f32.mrb[0].mxu0
        %2762 = vmatprep.mubr.bf16.mxu0 %v2320
        %2763 = vmatmul.mubr.bf16.gmra.mrb[0].mxu0 %v2319
        %v2764 = vpop.f32.mrb[0].mxu0
        %v2765 = vadd.f32 %v2668, %v2764
        %v2766 = vpop.f32.mrb[0].mxu0
        %v2767 = vpop.f32.mrb[0].mxu0
        %v2768 = vadd.f32 %v2671, %v2767
        %v2769 = vpop.f32.mrb[0].mxu0
        %2770 = vdwg.mxu0
        %v2771 = vpack.c.bf16 %v2712, %v2709
        %v2772 = vpack.c.bf16 %v2720, %v2717
        %v2773 = vpack.c.bf16 %v2728, %v2725
        %v2774 = vpack.c.bf16 %v2736, %v2733
        %v2775 = vpack.c.bf16 %v2744, %v2741
        %v2776 = vpack.c.bf16 %v2752, %v2749
        %v2777 = vpack.c.bf16 %v2760, %v2757
        %v2778 = vpack.c.bf16 %v2768, %v2765
        %v2779 = vld [vmem:[#allocation2] sm:$0xf]
        %v2780 = vld [vmem:[#allocation2 + $0x4] sm:$0xf]
        %v2781 = vld [vmem:[#allocation2 + $0x8] sm:$0xf]
        %v2782 = vld [vmem:[#allocation2 + $0xc] sm:$0xf]
        %v2783 = vld [vmem:[#allocation2 + $0x10] sm:$0xf]
        %v2784 = vld [vmem:[#allocation2 + $0x14] sm:$0xf]
        %v2785 = vld [vmem:[#allocation2 + $0x18] sm:$0xf]
        %v2786 = vld [vmem:[#allocation2 + $0x1c] sm:$0xf]
        %v2787 = vld [vmem:[#allocation2 + $0x20] sm:$0xf]
        %v2788 = vld [vmem:[#allocation2 + $0x24] sm:$0xf]
        %v2789 = vld [vmem:[#allocation2 + $0x28] sm:$0xf]
        %v2790 = vld [vmem:[#allocation2 + $0x2c] sm:$0xf]
        %v2791 = vld [vmem:[#allocation2 + $0x30] sm:$0xf]
        %v2792 = vld [vmem:[#allocation2 + $0x34] sm:$0xf]
        %v2793 = vld [vmem:[#allocation2 + $0x38] sm:$0xf]
        %v2794 = vld [vmem:[#allocation2 + $0x3c] sm:$0xf]
        %v2795 = vld [vmem:[%s3] sm:$0x1]
        %v2797 = vlaneseq
        %v2798 = vshrl.u32 %v2797, 7
        %v2799 = vsub.s32 0, %v2798
        %v2800 = vrot.slane %v2795, %v2799
        %v2818 = vunpack.c.l.b16 %v2779
        %v2819 = vunpack.c.l.b16 %v2780
        %v2820 = vunpack.c.l.b16 %v2781
        %v2821 = vunpack.c.l.b16 %v2782
        %v2822 = vunpack.c.l.b16 %v2783
        %v2823 = vunpack.c.l.b16 %v2784
        %v2824 = vunpack.c.l.b16 %v2785
        %v2825 = vunpack.c.l.b16 %v2786
        %v2826 = vunpack.c.l.b16 %v2787
        %v2827 = vunpack.c.l.b16 %v2788
        %v2828 = vunpack.c.l.b16 %v2789
        %v2829 = vunpack.c.l.b16 %v2790
        %v2830 = vunpack.c.l.b16 %v2791
        %v2831 = vunpack.c.l.b16 %v2792
        %v2832 = vunpack.c.l.b16 %v2793
        %v2833 = vunpack.c.l.b16 %v2794
        %v2834 = vpack.c.b16 %v2819, %v2818
        %v2835 = vpack.c.b16 %v2821, %v2820
        %v2836 = vpack.c.b16 %v2823, %v2822
        %v2837 = vpack.c.b16 %v2825, %v2824
        %v2838 = vpack.c.b16 %v2827, %v2826
        %v2839 = vpack.c.b16 %v2829, %v2828
        %v2840 = vpack.c.b16 %v2831, %v2830
        %v2841 = vpack.c.b16 %v2833, %v2832
        %2850 = vmatprep.subr.bf16.mxu0 0
        %2851 = vmatpush1.bf16.msra.mxu0 %v2834
        %2852 = vmatprep.subr.bf16.mxu0 0
        %2853 = vmatpush1.bf16.msra.mxu0 %v2835
        %2854 = vmatprep.subr.bf16.mxu0 0
        %2855 = vmatpush1.bf16.msra.mxu0 %v2836
        %2856 = vmatprep.subr.bf16.mxu0 0
        %2857 = vmatpush1.bf16.msra.mxu0 %v2837
        %2858 = vmatprep.subr.bf16.mxu0 0
        %2859 = vmatpush1.bf16.msra.mxu0 %v2838
        %2860 = vmatprep.subr.bf16.mxu0 0
        %2861 = vmatpush1.bf16.msra.mxu0 %v2839
        %2862 = vmatprep.subr.bf16.mxu0 0
        %2863 = vmatpush1.bf16.msra.mxu0 %v2840
        %2864 = vmatprep.subr.bf16.mxu0 0
        %2865 = vmatpush1.bf16.msra.mxu0 %v2841
        %2866 = vmatprep.subr.bf16.mxu0 0
        %2867 = vmatpush1.bf16.msra.mxu0 0
        %2868 = vmatprep.subr.bf16.mxu0 0
        %2869 = vmatpush1.bf16.msra.mxu0 0
        %2870 = vmatprep.subr.bf16.mxu0 0
        %2871 = vmatpush1.bf16.msra.mxu0 0
        %2872 = vmatprep.subr.bf16.mxu0 0
        %2873 = vmatpush1.bf16.msra.mxu0 0
        %2874 = vmatprep.subr.bf16.mxu0 0
        %2875 = vmatpush1.bf16.msra.mxu0 0
        %2876 = vmatprep.subr.bf16.mxu0 0
        %2877 = vmatpush1.bf16.msra.mxu0 0
        %2878 = vmatprep.subr.bf16.mxu0 0
        %2879 = vmatpush1.bf16.msra.mxu0 0
        %2880 = vmatprep.subr.bf16.mxu0 0
        %2881 = vmatpush1.bf16.msra.mxu0 0
        %2882 = vmatprep.mubr.bf16.mxu0 0
        %2883 = vmatmul.mubr.bf16.gmra.mrb[0].mxu0 %v2771
        %v2884 = vpop.f32.mrb[0].mxu0
        %v2885 = vadd.f32 %v2800, %v2884
        %v2886 = vpop.f32.mrb[0].mxu0
        %v2887 = vpop.f32.mrb[0].mxu0
        %v2888 = vadd.f32 %v2800, %v2887
        %v2889 = vpop.f32.mrb[0].mxu0
        %2890 = vmatprep.mubr.bf16.mxu0 0
        %2891 = vmatmul.mubr.bf16.gmra.mrb[0].mxu0 %v2772
        %v2892 = vpop.f32.mrb[0].mxu0
        %v2893 = vadd.f32 %v2800, %v2892
        %v2894 = vpop.f32.mrb[0].mxu0
        %v2895 = vpop.f32.mrb[0].mxu0
        %v2896 = vadd.f32 %v2800, %v2895
        %v2897 = vpop.f32.mrb[0].mxu0
        %2898 = vmatprep.mubr.bf16.mxu0 0
        %2899 = vmatmul.mubr.bf16.gmra.mrb[0].mxu0 %v2773
        %v2900 = vpop.f32.mrb[0].mxu0
        %v2901 = vadd.f32 %v2800, %v2900
        %v2902 = vpop.f32.mrb[0].mxu0
        %v2903 = vpop.f32.mrb[0].mxu0
        %v2904 = vadd.f32 %v2800, %v2903
        %v2905 = vpop.f32.mrb[0].mxu0
        %2906 = vmatprep.mubr.bf16.mxu0 0
        %2907 = vmatmul.mubr.bf16.gmra.mrb[0].mxu0 %v2774
        %v2908 = vpop.f32.mrb[0].mxu0
        %v2909 = vadd.f32 %v2800, %v2908
        %v2910 = vpop.f32.mrb[0].mxu0
        %v2911 = vpop.f32.mrb[0].mxu0
        %v2912 = vadd.f32 %v2800, %v2911
        %v2913 = vpop.f32.mrb[0].mxu0
        %2914 = vmatprep.mubr.bf16.mxu0 0
        %2915 = vmatmul.mubr.bf16.gmra.mrb[0].mxu0 %v2775
        %v2916 = vpop.f32.mrb[0].mxu0
        %v2917 = vadd.f32 %v2800, %v2916
        %v2918 = vpop.f32.mrb[0].mxu0
        %v2919 = vpop.f32.mrb[0].mxu0
        %v2920 = vadd.f32 %v2800, %v2919
        %v2921 = vpop.f32.mrb[0].mxu0
        %2922 = vmatprep.mubr.bf16.mxu0 0
        %2923 = vmatmul.mubr.bf16.gmra.mrb[0].mxu0 %v2776
        %v2924 = vpop.f32.mrb[0].mxu0
        %v2925 = vadd.f32 %v2800, %v2924
        %v2926 = vpop.f32.mrb[0].mxu0
        %v2927 = vpop.f32.mrb[0].mxu0
        %v2928 = vadd.f32 %v2800, %v2927
        %v2929 = vpop.f32.mrb[0].mxu0
        %2930 = vmatprep.mubr.bf16.mxu0 0
        %2931 = vmatmul.mubr.bf16.gmra.mrb[0].mxu0 %v2777
        %v2932 = vpop.f32.mrb[0].mxu0
        %v2933 = vadd.f32 %v2800, %v2932
        %v2934 = vpop.f32.mrb[0].mxu0
        %v2935 = vpop.f32.mrb[0].mxu0
        %v2936 = vadd.f32 %v2800, %v2935
        %v2937 = vpop.f32.mrb[0].mxu0
        %2938 = vmatprep.mubr.bf16.mxu0 0
        %2939 = vmatmul.mubr.bf16.gmra.mrb[0].mxu0 %v2778
        %v2940 = vpop.f32.mrb[0].mxu0
        %v2941 = vadd.f32 %v2800, %v2940
        %v2942 = vpop.f32.mrb[0].mxu0
        %v2943 = vpop.f32.mrb[0].mxu0
        %v2944 = vadd.f32 %v2800, %v2943
        %v2945 = vpop.f32.mrb[0].mxu0
        %2946 = vdwg.mxu0
        %v2947 = vmax.f32 %v2885, 0.0
        %v2948 = vmax.f32 %v2888, 0.0
        %v2949 = vmax.f32 %v2893, 0.0
        %v2950 = vmax.f32 %v2896, 0.0
        %v2951 = vmax.f32 %v2901, 0.0
        %v2952 = vmax.f32 %v2904, 0.0
        %v2953 = vmax.f32 %v2909, 0.0
        %v2954 = vmax.f32 %v2912, 0.0
        %v2955 = vmax.f32 %v2917, 0.0
        %v2956 = vmax.f32 %v2920, 0.0
        %v2957 = vmax.f32 %v2925, 0.0
        %v2958 = vmax.f32 %v2928, 0.0
        %v2959 = vmax.f32 %v2933, 0.0
        %v2960 = vmax.f32 %v2936, 0.0
        %v2961 = vmax.f32 %v2941, 0.0
        %v2962 = vmax.f32 %v2944, 0.0
        %v2963 = vpack.c.bf16 %v2948, %v2947
        %v2964 = vpack.c.bf16 %v2950, %v2949
        %v2965 = vpack.c.bf16 %v2952, %v2951
        %v2966 = vpack.c.bf16 %v2954, %v2953
        %v2967 = vpack.c.bf16 %v2956, %v2955
        %v2968 = vpack.c.bf16 %v2958, %v2957
        %v2969 = vpack.c.bf16 %v2960, %v2959
        %v2970 = vpack.c.bf16 %v2962, %v2961
        %v2971 = vld [vmem:[#allocation5] sm:$0xf]
        %v2972 = vld [vmem:[#allocation5 + $0x4] sm:$0xf]
        %v2973 = vld [vmem:[#allocation5 + $0x8] sm:$0xf]
        %v2974 = vld [vmem:[#allocation5 + $0xc] sm:$0xf]
        %v2975 = vld [vmem:[#allocation5 + $0x10] sm:$0xf]
        %v2976 = vld [vmem:[#allocation5 + $0x14] sm:$0xf]
        %v2977 = vld [vmem:[#allocation5 + $0x18] sm:$0xf]
        %v2978 = vld [vmem:[#allocation5 + $0x1c] sm:$0xf]
        %v2979 = vld [vmem:[#allocation5 + $0x20] sm:$0xf]
        %v2980 = vld [vmem:[#allocation5 + $0x24] sm:$0xf]
        %v2981 = vld [vmem:[#allocation5 + $0x28] sm:$0xf]
        %v2982 = vld [vmem:[#allocation5 + $0x2c] sm:$0xf]
        %v2983 = vld [vmem:[#allocation5 + $0x30] sm:$0xf]
        %v2984 = vld [vmem:[#allocation5 + $0x34] sm:$0xf]
        %v2985 = vld [vmem:[#allocation5 + $0x38] sm:$0xf]
        %v2986 = vld [vmem:[#allocation5 + $0x3c] sm:$0xf]
        %v2987 = vld [vmem:[%s5] sm:$0x1]
        %v2989 = vlaneseq
        %v2990 = vshrl.u32 %v2989, 7
        %v2991 = vsub.s32 0, %v2990
        %v2992 = vrot.slane %v2987, %v2991
        %v3010 = vunpack.c.l.b16 %v2971
        %v3011 = vunpack.c.l.b16 %v2972
        %v3012 = vunpack.c.l.b16 %v2973
        %v3013 = vunpack.c.l.b16 %v2974
        %v3014 = vunpack.c.l.b16 %v2975
        %v3015 = vunpack.c.l.b16 %v2976
        %v3016 = vunpack.c.l.b16 %v2977
        %v3017 = vunpack.c.l.b16 %v2978
        %v3018 = vunpack.c.l.b16 %v2979
        %v3019 = vunpack.c.l.b16 %v2980
        %v3020 = vunpack.c.l.b16 %v2981
        %v3021 = vunpack.c.l.b16 %v2982
        %v3022 = vunpack.c.l.b16 %v2983
        %v3023 = vunpack.c.l.b16 %v2984
        %v3024 = vunpack.c.l.b16 %v2985
        %v3025 = vunpack.c.l.b16 %v2986
        %v3026 = vpack.c.b16 %v3011, %v3010
        %v3027 = vpack.c.b16 %v3013, %v3012
        %v3028 = vpack.c.b16 %v3015, %v3014
        %v3029 = vpack.c.b16 %v3017, %v3016
        %v3030 = vpack.c.b16 %v3019, %v3018
        %v3031 = vpack.c.b16 %v3021, %v3020
        %v3032 = vpack.c.b16 %v3023, %v3022
        %v3033 = vpack.c.b16 %v3025, %v3024
        %3042 = vmatprep.subr.bf16.mxu0 0
        %3043 = vmatpush1.bf16.msra.mxu0 %v3026
        %3044 = vmatprep.subr.bf16.mxu0 0
        %3045 = vmatpush1.bf16.msra.mxu0 %v3027
        %3046 = vmatprep.subr.bf16.mxu0 0
        %3047 = vmatpush1.bf16.msra.mxu0 %v3028
        %3048 = vmatprep.subr.bf16.mxu0 0
        %3049 = vmatpush1.bf16.msra.mxu0 %v3029
        %3050 = vmatprep.subr.bf16.mxu0 0
        %3051 = vmatpush1.bf16.msra.mxu0 %v3030
        %3052 = vmatprep.subr.bf16.mxu0 0
        %3053 = vmatpush1.bf16.msra.mxu0 %v3031
        %3054 = vmatprep.subr.bf16.mxu0 0
        %3055 = vmatpush1.bf16.msra.mxu0 %v3032
        %3056 = vmatprep.subr.bf16.mxu0 0
        %3057 = vmatpush1.bf16.msra.mxu0 %v3033
        %3058 = vmatprep.subr.bf16.mxu0 0
        %3059 = vmatpush1.bf16.msra.mxu0 0
        %3060 = vmatprep.subr.bf16.mxu0 0
        %3061 = vmatpush1.bf16.msra.mxu0 0
        %3062 = vmatprep.subr.bf16.mxu0 0
        %3063 = vmatpush1.bf16.msra.mxu0 0
        %3064 = vmatprep.subr.bf16.mxu0 0
        %3065 = vmatpush1.bf16.msra.mxu0 0
        %3066 = vmatprep.subr.bf16.mxu0 0
        %3067 = vmatpush1.bf16.msra.mxu0 0
        %3068 = vmatprep.subr.bf16.mxu0 0
        %3069 = vmatpush1.bf16.msra.mxu0 0
        %3070 = vmatprep.subr.bf16.mxu0 0
        %3071 = vmatpush1.bf16.msra.mxu0 0
        %3072 = vmatprep.subr.bf16.mxu0 0
        %3073 = vmatpush1.bf16.msra.mxu0 0
        %3074 = vmatprep.mubr.bf16.mxu0 0
        %3075 = vmatmul.mubr.bf16.gmra.mrb[0].mxu0 %v2963
        %v3076 = vpop.f32.mrb[0].mxu0
        %v3077 = vadd.f32 %v2992, %v3076
        %v3078 = vpop.f32.mrb[0].mxu0
        %v3079 = vpop.f32.mrb[0].mxu0
        %v3080 = vadd.f32 %v2992, %v3079
        %v3081 = vpop.f32.mrb[0].mxu0
        %3082 = vmatprep.mubr.bf16.mxu0 0
        %3083 = vmatmul.mubr.bf16.gmra.mrb[0].mxu0 %v2964
        %v3084 = vpop.f32.mrb[0].mxu0
        %v3085 = vadd.f32 %v2992, %v3084
        %v3086 = vpop.f32.mrb[0].mxu0
        %v3087 = vpop.f32.mrb[0].mxu0
        %v3088 = vadd.f32 %v2992, %v3087
        %v3089 = vpop.f32.mrb[0].mxu0
        %3090 = vmatprep.mubr.bf16.mxu0 0
        %3091 = vmatmul.mubr.bf16.gmra.mrb[0].mxu0 %v2965
        %v3092 = vpop.f32.mrb[0].mxu0
        %v3093 = vadd.f32 %v2992, %v3092
        %v3094 = vpop.f32.mrb[0].mxu0
        %v3095 = vpop.f32.mrb[0].mxu0
        %v3096 = vadd.f32 %v2992, %v3095
        %v3097 = vpop.f32.mrb[0].mxu0
        %3098 = vmatprep.mubr.bf16.mxu0 0
        %3099 = vmatmul.mubr.bf16.gmra.mrb[0].mxu0 %v2966
        %v3100 = vpop.f32.mrb[0].mxu0
        %v3101 = vadd.f32 %v2992, %v3100
        %v3102 = vpop.f32.mrb[0].mxu0
        %v3103 = vpop.f32.mrb[0].mxu0
        %v3104 = vadd.f32 %v2992, %v3103
        %v3105 = vpop.f32.mrb[0].mxu0
        %3106 = vmatprep.mubr.bf16.mxu0 0
        %3107 = vmatmul.mubr.bf16.gmra.mrb[0].mxu0 %v2967
        %v3108 = vpop.f32.mrb[0].mxu0
        %v3109 = vadd.f32 %v2992, %v3108
        %v3110 = vpop.f32.mrb[0].mxu0
        %v3111 = vpop.f32.mrb[0].mxu0
        %v3112 = vadd.f32 %v2992, %v3111
        %v3113 = vpop.f32.mrb[0].mxu0
        %3114 = vmatprep.mubr.bf16.mxu0 0
        %3115 = vmatmul.mubr.bf16.gmra.mrb[0].mxu0 %v2968
        %v3116 = vpop.f32.mrb[0].mxu0
        %v3117 = vadd.f32 %v2992, %v3116
        %v3118 = vpop.f32.mrb[0].mxu0
        %v3119 = vpop.f32.mrb[0].mxu0
        %v3120 = vadd.f32 %v2992, %v3119
        %v3121 = vpop.f32.mrb[0].mxu0
        %3122 = vmatprep.mubr.bf16.mxu0 0
        %3123 = vmatmul.mubr.bf16.gmra.mrb[0].mxu0 %v2969
        %v3124 = vpop.f32.mrb[0].mxu0
        %v3125 = vadd.f32 %v2992, %v3124
        %v3126 = vpop.f32.mrb[0].mxu0
        %v3127 = vpop.f32.mrb[0].mxu0
        %v3128 = vadd.f32 %v2992, %v3127
        %v3129 = vpop.f32.mrb[0].mxu0
        %3130 = vmatprep.mubr.bf16.mxu0 0
        %3131 = vmatmul.mubr.bf16.gmra.mrb[0].mxu0 %v2970
        %v3132 = vpop.f32.mrb[0].mxu0
        %v3133 = vadd.f32 %v2992, %v3132
        %v3134 = vpop.f32.mrb[0].mxu0
        %v3135 = vpop.f32.mrb[0].mxu0
        %v3136 = vadd.f32 %v2992, %v3135
        %v3137 = vpop.f32.mrb[0].mxu0
        %3138 = vdwg.mxu0
        %3139 = vst [vmem:[%s275] sm:$0xff] %v3077
        %3140 = vst [vmem:[%s275 + $0x8] sm:$0xff] %v3080
        %3141 = vst [vmem:[%s275 + $0x10] sm:$0xff] %v3085
        %3142 = vst [vmem:[%s275 + $0x18] sm:$0xff] %v3088
        %3143 = vst [vmem:[%s275 + $0x20] sm:$0xff] %v3093
        %3144 = vst [vmem:[%s275 + $0x28] sm:$0xff] %v3096
        %3145 = vst [vmem:[%s275 + $0x30] sm:$0xff] %v3101
        %3146 = vst [vmem:[%s275 + $0x38] sm:$0xff] %v3104
        %3147 = vst [vmem:[%s275 + $0x40] sm:$0xff] %v3109
        %3148 = vst [vmem:[%s275 + $0x48] sm:$0xff] %v3112
        %3149 = vst [vmem:[%s275 + $0x50] sm:$0xff] %v3117
        %3150 = vst [vmem:[%s275 + $0x58] sm:$0xff] %v3120
        %3151 = vst [vmem:[%s275 + $0x60] sm:$0xff] %v3125
        %3152 = vst [vmem:[%s275 + $0x68] sm:$0xff] %v3128
        %3153 = vst [vmem:[%s275 + $0x70] sm:$0xff] %v3133
        %3154 = vst [vmem:[%s275 + $0x78] sm:$0xff] %v3136
        %s3155 = sand.u32 %s161, 1
        %s3156 = scalar_lea.sflag [#allocation4], %s3155
        %s3157 = sand.u32 %s161, 1
        %s3158 = smul.addr %s3157, 128
        %s3159 = scalar_lea.vmem [#allocation7], %s3158
        // Predicated region
        $region53: #{tpu_custom_call.1} parent=43 // pred_check
          %p3160 = pneg %p171
        $region54: #{tpu_custom_call.1} parent=43 // pred_check_branch
          %3162 = sbr.rel (%p3160) target = $region56
        $region55: #{tpu_custom_call.1} parent=43 // pred_region
          %s3163 = smul.u32 16, %s22
          %s3165 = ssub.s32 2048, 2048
          %3166 = vsyncadd %s3156, %s3165
          %s3167 = smul.addr %s3163, 128
          %s3168 = scalar_lea.hbm %s6, %s3167
          %s3169 = sshll.u32 %s3159, 4
          %s3170 = int_to_ptr.vmem [resolvable:$true] %s3169
          %3175 = dma.vmem_to_hbm [thread:$0]  %s3170, 2048, %s3168, %s3156, 128, 128, 8
        $region56: #{tpu_custom_call.1} parent=43 // pred_fallthru
          _
      $region44: #{tpu_custom_call.1} parent=5 // pred_fallthru
        _
      %p3176 = scmp.le.s32.totalorder 2, %s17
      // Predicated region
      $region57: #{tpu_custom_call.1} parent=5 // pred_check
        %p3177 = pneg %p3176
      $region58: #{tpu_custom_call.1} parent=5 // pred_check_branch
        %3179 = sbr.rel (%p3177) target = $region60
      $region59: #{tpu_custom_call.1} parent=5 // pred_region
        %s3180 = ssub.s32 %s17, 2
        // Predicated region
        $region61: #{tpu_custom_call.1} parent=59 // pred_check
          %p3181 = pneg %p177
        $region62: #{tpu_custom_call.1} parent=59 // pred_check_branch
          %3183 = sbr.rel (%p3181) target = $region64
        $region63: #{tpu_custom_call.1} parent=59 // pred_region
          %s3184 = sand.u32 %s162, 1
          %s3185 = scalar_lea.sflag [#allocation4], %s3184
          %s3186 = sand.u32 %s162, 1
          %s3187 = smul.addr %s3186, 128
          %s3188 = scalar_lea.vmem [#allocation7], %s3187
          %3189 = dma.done %s3185, 2048
        $region64: #{tpu_custom_call.1} parent=59 // pred_fallthru
          _
      $region60: #{tpu_custom_call.1} parent=5 // pred_fallthru
        _
    $region6: #{tpu_custom_call.1} parent=1 // loop_footer
      %s21 = sadd.s32 1, %s17
    $region7: #{tpu_custom_call.1} parent=1 // loop_footer_branch
      %16 = sbr.rel target = $region3
    $region8: #{tpu_custom_call.1} parent=1 // loop_exit
      _
    %3190 = vsyncpa [#allocation3], 1
    %s3191 = scalar_lea.sflag [#allocation3], 1
    %3192 = vsyncpa %s3191, 1
    %3193 = vsyncpa [#allocation6], 1
    %3194 = vsyncpa [#allocation4], 1
    %s3195 = scalar_lea.sflag [#allocation4], 1
    %3196 = vsyncpa %s3195, 1

</llo_original>
